<compile_context>
chip_gen: v7x
topology: tpu7x:2x2x1
jax: 0.10.0
libtpu: 0.0.40
codegen_flags: <defaults>
</compile_context>

<pallas_src>
import functools

import jax
import jax.numpy as jnp
from jax import lax
from jax.experimental import pallas as pl
from jax.experimental.pallas import tpu as pltpu

EPS = 1e-5
LEAKY_SLOPE = 0.1
TILE_M = 512                      # HBM-bound 1x1 passes: ~85% of roofline at 512


def _vmem_limit_bytes():
    """Per-generation scoped-VMEM budget: ~half of physical, clamped 32-96 MiB."""
    cap = None
    try:
        info = pltpu.get_tpu_info()
        cap = int(getattr(info, "vmem_capacity_bytes", 0)) or None
    except Exception:
        cap = None
    if cap is None:
        cap = 64 * 1024 * 1024
    return int(min(max(cap // 2, 32 * 1024 * 1024), 96 * 1024 * 1024))


VMEM_LIMIT = _vmem_limit_bytes()


# ----------------------------- small helpers -------------------------------- #

def _round_up(n, m):
    return (n + m - 1) // m * m


def _tiles(m):
    """Pick (tile_m, padded_m) for an M-row tiled matmul."""
    tm = min(TILE_M, _round_up(m, 8))
    return tm, _round_up(m, tm)


def _pad_rows(x, mp):
    m = x.shape[0]
    return x if mp == m else jnp.pad(x, ((0, mp - m), (0, 0)))


def _pad_last(w, n):
    """Zero-pad the last axis of a 2-D or 3-D array to width n."""
    if w.shape[-1] == n:
        return w
    pad = [(0, 0)] * (w.ndim - 1) + [(0, n - w.shape[-1])]
    return jnp.pad(w, pad)


# ----------------------------- Pallas kernels ------------------------------- #

def _matmul_stats_kernel(x_ref, w_ref, y_ref, stats_ref):
    """y = x @ w (f32 acc, bf16 store); per-tile partial [sum; sumsq] output."""
    y = jnp.dot(x_ref[...], w_ref[...], preferred_element_type=jnp.float32)
    y_ref[...] = y.astype(y_ref.dtype)
    stats_ref[0:1, :] = jnp.sum(y, axis=0, keepdims=True)
    stats_ref[1:2, :] = jnp.sum(y * y, axis=0, keepdims=True)


def _bn_act_matmul_kernel(y_ref, scale_ref, shift_ref, w_ref, b_ref, o_ref):
    """o = leaky_relu(y*scale + shift) @ w + b  (BN-apply fused with 1x1 conv)."""
    z = y_ref[...].astype(jnp.float32) * scale_ref[...] + shift_ref[...]
    z = jnp.where(z > 0, z, LEAKY_SLOPE * z)
    o = jnp.dot(z.astype(w_ref.dtype), w_ref[...],
                preferred_element_type=jnp.float32) + b_ref[...]
    o_ref[...] = o.astype(o_ref.dtype)


def _matmul_bias_add_kernel(x_ref, u_ref, w_ref, b_ref, o_ref):
    """o = x @ w + b + u  (1x1 conv with bias, fused residual add)."""
    o = jnp.dot(x_ref[...], w_ref[...], preferred_element_type=jnp.float32)
    o_ref[...] = o + b_ref[...] + u_ref[...].astype(jnp.float32)


def _conv3x3_stats_kernel(x_ref, mask_ref, w_ref, y_ref, stats_ref, *, wp):
    """3x3 / pad-1 conv of one image as 9 constant-row-offset matmuls (K = C)
    on a flattened padded slab; emits per-image masked [sum; sumsq] partials."""
    rout = y_ref.shape[0]
    n = w_ref.shape[2]
    acc = jnp.zeros((rout, n), jnp.float32)
    for k in range(9):                      # k = ky*3 + kx (same as PyTorch OIHW taps)
        ofs = (k // 3) * wp + (k % 3)
        acc += jnp.dot(x_ref[ofs:ofs + rout, :], w_ref[k],
                       preferred_element_type=jnp.float32)
    y_ref[...] = acc.astype(y_ref.dtype)

    m = mask_ref[...]                       # 1.0 on valid rows, 0.0 on garbage columns
    stats_ref[0:1, :] = jnp.sum(acc * m, axis=0, keepdims=True)
    stats_ref[1:2, :] = jnp.sum(acc * acc * m, axis=0, keepdims=True)


# ----------------------------- pallas_call wrappers -------------------------- #

def matmul_stats(x, w):
    """Tiled (M,K)@(K,N) -> bf16 (M,N) plus per-channel [sum; sumsq] over M."""
    m, k = x.shape
    n = w.shape[1]
    tm, mp = _tiles(m)
    ntiles = mp // tm
    xp = _pad_rows(x, mp)                  # zero rows contribute 0 to the stats
    y, stats = pl.pallas_call(
        _matmul_stats_kernel,
        out_shape=(jax.ShapeDtypeStruct((mp, n), jnp.bfloat16),
                   jax.ShapeDtypeStruct((ntiles, 2, n), jnp.float32)),
        grid=(ntiles,),
        in_specs=[pl.BlockSpec((tm, k), lambda i: (i, 0)),
                  pl.BlockSpec((k, n), lambda i: (0, 0))],
        out_specs=(pl.BlockSpec((tm, n), lambda i: (i, 0)),
                   pl.BlockSpec((None, 2, n), lambda i: (i, 0, 0))),
        compiler_params=pltpu.CompilerParams(
            dimension_semantics=("parallel",),
            vmem_limit_bytes=VMEM_LIMIT),
    )(xp, w)
    return y[:m], jnp.sum(stats, axis=0)   # tiny (ntiles,2,n) reduce in XLA


def bn_act_matmul(y, scale, shift, w, b, out_dtype=jnp.float32):
    """Tiled fused BN-apply + LeakyReLU + 1x1-conv(+bias)."""
    m, cin = y.shape
    n = w.shape[1]
    tm, mp = _tiles(m)
    yp = _pad_rows(y, mp)
    out = pl.pallas_call(
        _bn_act_matmul_kernel,
        out_shape=jax.ShapeDtypeStruct((mp, n), out_dtype),
        grid=(mp // tm,),
        in_specs=[pl.BlockSpec((tm, cin), lambda i: (i, 0)),
                  pl.BlockSpec((1, cin), lambda i: (0, 0)),
                  pl.BlockSpec((1, cin), lambda i: (0, 0)),
                  pl.BlockSpec((cin, n), lambda i: (0, 0)),
                  pl.BlockSpec((1, n), lambda i: (0, 0))],
        out_specs=pl.BlockSpec((tm, n), lambda i: (i, 0)),
        compiler_params=pltpu.CompilerParams(
            dimension_semantics=("parallel",),
            vmem_limit_bytes=VMEM_LIMIT),
    )(yp, scale, shift, w, b)
    return out[:m]


def matmul_bias_add(x, u, w, b):
    """Tiled 1x1 conv with bias and fused elementwise add of u."""
    m, k = x.shape
    n = w.shape[1]
    tm, mp = _tiles(m)
    xp = _pad_rows(x, mp)
    up = _pad_rows(u, mp)
    out = pl.pallas_call(
        _matmul_bias_add_kernel,
        out_shape=jax.ShapeDtypeStruct((mp, n), jnp.float32),
        grid=(mp // tm,),
        in_specs=[pl.BlockSpec((tm, k), lambda i: (i, 0)),
                  pl.BlockSpec((tm, n), lambda i: (i, 0)),
                  pl.BlockSpec((k, n), lambda i: (0, 0)),
                  pl.BlockSpec((1, n), lambda i: (0, 0))],
        out_specs=pl.BlockSpec((tm, n), lambda i: (i, 0)),
        compiler_params=pltpu.CompilerParams(
            dimension_semantics=("parallel",),
            vmem_limit_bytes=VMEM_LIMIT),
    )(xp, up, w, b)
    return out[:m]


def conv3x3_stats(slab, w, h, w_valid):
    """3x3 / pad-1 conv on per-image flattened padded slabs (see _flatten_padded).
    Output rows are laid out as (h, w') with w' in [0, w_valid+2); columns
    w' >= w_valid are garbage, masked out of the BN stats / dropped by caller."""
    bsz, rpad, cin = slab.shape
    n = w.shape[2]
    wp = w_valid + 2
    rout = h * wp
    r = jnp.arange(rout, dtype=jnp.int32)
    mask = ((r % wp) < w_valid).astype(jnp.float32).reshape(rout, 1)
    kern = functools.partial(_conv3x3_stats_kernel, wp=wp)
    y_wide, stats = pl.pallas_call(
        kern,
        out_shape=(jax.ShapeDtypeStruct((bsz, rout, n), jnp.bfloat16),
                   jax.ShapeDtypeStruct((bsz, 2, n), jnp.float32)),
        grid=(bsz,),
        in_specs=[pl.BlockSpec((None, rpad, cin), lambda i: (i, 0, 0)),
                  pl.BlockSpec((rout, 1), lambda i: (0, 0)),
                  pl.BlockSpec((9, cin, n), lambda i: (0, 0, 0))],
        out_specs=(pl.BlockSpec((None, rout, n), lambda i: (i, 0, 0)),
                   pl.BlockSpec((None, 2, n), lambda i: (i, 0, 0))),
        compiler_params=pltpu.CompilerParams(
            dimension_semantics=("parallel",),      # per-image partial stats, no races
            vmem_limit_bytes=VMEM_LIMIT),
    )(slab, mask, w)
    return y_wide, jnp.sum(stats, axis=0)


# ----------------------------- layout glue (XLA) ----------------------------- #

def _flatten_padded(x_nhwc):
    """Zero-pad H by (1,2), W by (1,1) and flatten (H,W) so a 3x3/pad-1 conv
    becomes 9 constant-row-offset matmuls on the flat (rows, C) matrix."""
    b, h, w, c = x_nhwc.shape
    xp = jnp.pad(x_nhwc, ((0, 0), (1, 2), (1, 1), (0, 0)))
    return xp.reshape(b, (h + 3) * (w + 2), c)


def _upsample2x(x_nhwc):
    # F.interpolate(scale_factor=2, mode='nearest') on NHWC
    return jnp.repeat(jnp.repeat(x_nhwc, 2, axis=1), 2, axis=2)


def _bn_scale_shift(stats, count, gamma, beta):
    mean = stats[0:1] / count
    var = jnp.maximum(stats[1:2] / count - mean * mean, 0.0)  # biased var (train mode)
    scale = gamma * lax.rsqrt(var + EPS)
    shift = beta - mean * scale
    return scale, shift


# ----------------------------- parameters ------------------------------------ #

def init_params(key, in_channels, num_classes):
    c = in_channels
    p = (num_classes + 5) * 3
    ks = jax.random.split(key, 13)
    w = lambda k, shape: 0.1 * jax.random.normal(k, shape, jnp.float32)
    return {
        "conv1_w": w(ks[0], (c, c // 2)),                 # 1x1: C -> C//2
        "bn1_gamma": 1.0 + 0.1 * jax.random.normal(ks[1], (1, c // 2), jnp.float32),
        "bn1_beta": 0.1 * jax.random.normal(ks[2], (1, c // 2), jnp.float32),
        # 3x3 conv on cat([x2, up(x3)]), tap-major merged weight:
        # conv2_w[k, i, o] <-> W_pt[o, i, ky, kx] with k = ky*3 + kx.
        "conv2_w": w(ks[3], (9, c, c)),
        "bn2_gamma": 1.0 + 0.1 * jax.random.normal(ks[4], (1, c), jnp.float32),
        "bn2_beta": 0.1 * jax.random.normal(ks[5], (1, c), jnp.float32),
        # prediction1 acts on cat([x1, up(t2)]) -> split along input channels.
        "pred1_wa": w(ks[6], (c // 4, p)),
        "pred1_wb": w(ks[7], (c, p)),
        "pred1_b": w(ks[8], (1, p)),
        "pred2_w": w(ks[9], (c, p)),
        "pred2_b": w(ks[10], (1, p)),
        "pred3_w": w(ks[11], (c // 2, p)),
        "pred3_b": w(ks[12], (1, p)),
    }


# ----------------------------- forward ---------------------------------------- #

def yolop_head_forward(params, x1, x2, x3):
    """x1/x2/x3 are NCHW f32; returns (pred1, pred2, pred3) in NCHW."""
    f32, bf16 = jnp.float32, jnp.bfloat16
    p = params["pred2_w"].shape[1]
    pw = _round_up(p, 128)                    # lane-dense single-head output width
    cw = 2 * pw                               # lane-dense combined-head output width

    # single NCHW -> NHWC layout change at the boundary; NHWC row-matrices after
    x1h = jnp.transpose(x1, (0, 2, 3, 1))
    x2h = jnp.transpose(x2, (0, 2, 3, 1))
    x3h = jnp.transpose(x3, (0, 2, 3, 1))
    b, h3, w3, c = x3h.shape
    h2, w2 = 2 * h3, 2 * w3
    h1, w1 = x1h.shape[1], x1h.shape[2]
    ch = c // 2
    ch_pad = _round_up(ch, 128)               # lane-dense conv1 output channels
    c2_pad = _round_up(c, 128)                # lane-dense conv2 output channels

    # ---- stage 1: conv1 (1x1, no bias) + BN1 batch-stats (parallel partials) --
    w1p = _pad_last(params["conv1_w"], ch_pad).astype(bf16)
    x3_rows = x3h.reshape(b * h3 * w3, c).astype(bf16)
    y3_raw, stats1 = matmul_stats(x3_rows, w1p)            # bf16 (M3, ch_pad)
    g1 = _pad_last(params["bn1_gamma"], ch_pad)
    b1 = _pad_last(params["bn1_beta"], ch_pad)
    scale1, shift1 = _bn_scale_shift(stats1, b * h3 * w3, g1, b1)

    # ---- pred3: BN1-apply + LeakyReLU + 1x1 conv fused; upsample commuted -----
    wp3 = _pad_last(jnp.pad(params["pred3_w"], ((0, ch_pad - ch), (0, 0))), pw)
    bp3 = _pad_last(params["pred3_b"], pw)
    pred3_lo = bn_act_matmul(y3_raw, scale1, shift1, wp3.astype(bf16), bp3,
                             out_dtype=f32)[:, :p]
    pred3 = _upsample2x(pred3_lo.reshape(b, h3, w3, p))     # (B, H2, W2, P)

    # ---- stage 2: conv2 (3x3, pad 1) on the merged (concatenated) slab --------
    # BN1-apply + LeakyReLU + nearest-2x upsample + concat + zero-pad fuse into
    # the single XLA pad/reshape pass that builds the bf16 slab for the kernel.
    t3 = (y3_raw[:, :ch].astype(f32) * scale1[:, :ch] + shift1[:, :ch])
    t3 = jnp.where(t3 > 0, t3, LEAKY_SLOPE * t3).reshape(b, h3, w3, ch)
    cat2 = jnp.concatenate([x2h.astype(bf16), _upsample2x(t3).astype(bf16)], axis=-1)
    slab = _flatten_padded(cat2)                            # (B, (H2+3)*(W2+2), C)
    w2p = _pad_last(params["conv2_w"], c2_pad).astype(bf16)  # (9, C, c2_pad)
    y2_wide, stats2 = conv3x3_stats(slab, w2p, h2, w2)      # bf16 (B, rout, c2_pad)
    g2 = _pad_last(params["bn2_gamma"], c2_pad)
    b2 = _pad_last(params["bn2_beta"], c2_pad)
    scale2, shift2 = _bn_scale_shift(stats2, b * h2 * w2, g2, b2)

    # ---- pred2 + the t2 part of pred1 in one lane-dense fused matmul ----------
    wc = jnp.zeros((c2_pad, cw), f32)
    wc = wc.at[:c, :p].set(params["pred2_w"]).at[:c, pw:pw + p].set(params["pred1_wb"])
    bc = jnp.zeros((1, cw), f32).at[:, :p].set(params["pred2_b"])
    wpc = w2 + 2
    out2 = bn_act_matmul(y2_wide.reshape(b * h2 * wpc, c2_pad),
                         scale2, shift2, wc.astype(bf16), bc, out_dtype=bf16)
    out2 = out2.reshape(b, h2, wpc, cw)[:, :, :w2, :]       # drop garbage columns
    pred2 = _upsample2x(out2[..., :p]).astype(f32)          # (B, H1, W1, P)
    u1 = _upsample2x(out2[..., pw:2 * pw])                  # pred1's t2 contribution

    # ---- pred1: x1 part (1x1 conv + bias) with the + u1 add fused in-kernel ---
    wp1 = _pad_last(params["pred1_wa"], pw).astype(bf16)
    bp1 = _pad_last(params["pred1_b"], pw)
    x1_rows = x1h.reshape(b * h1 * w1, c // 4).astype(bf16)
    u1_rows = u1.reshape(b * h1 * w1, pw)
    pred1 = matmul_bias_add(x1_rows, u1_rows, wp1, bp1)[:, :p].reshape(b, h1, w1, p)

    to_nchw = lambda t: jnp.transpose(t, (0, 3, 1, 2)).astype(f32)
    return to_nchw(pred1), to_nchw(pred2), to_nchw(pred3)


# ----------------------------- pure-JAX reference ----------------------------- #

def reference_forward(params, x1, x2, x3):
    """Straightforward XLA reference (same bf16 quantization of inputs/weights)."""
    f32, bf16 = jnp.float32, jnp.bfloat16
    q = lambda t: t.astype(bf16).astype(f32)
    to_nhwc = lambda t: jnp.transpose(t, (0, 2, 3, 1))
    x1h, x2h, x3h = map(to_nhwc, (x1, x2, x3))
    c = x3h.shape[-1]

    def bn_lrelu(y, gamma, beta):
        mean = jnp.mean(y, axis=(0, 1, 2), keepdims=True)
        var = jnp.mean((y - mean) ** 2, axis=(0, 1, 2), keepdims=True)
        z = (y - mean) * lax.rsqrt(var + EPS) * gamma.reshape(1, 1, 1, -1) \
            + beta.reshape(1, 1, 1, -1)
        return jnp.where(z > 0, z, LEAKY_SLOPE * z)

    t3 = jnp.einsum('bhwc,cd->bhwd', q(x3h), q(params["conv1_w"]))
    t3 = _upsample2x(bn_lrelu(t3, params["bn1_gamma"], params["bn1_beta"]))
    cat2 = jnp.concatenate([q(x2h), t3], axis=-1)
    w2 = q(params["conv2_w"]).reshape(3, 3, c, c)            # (ky,kx,cin,cout) = HWIO
    t2 = lax.conv_general_dilated(cat2, w2, (1, 1), 'SAME',
                                  dimension_numbers=('NHWC', 'HWIO', 'NHWC'))
    t2 = _upsample2x(bn_lrelu(t2, params["bn2_gamma"], params["bn2_beta"]))
    cat1 = jnp.concatenate([q(x1h), t2], axis=-1)
    wp1 = jnp.concatenate([q(params["pred1_wa"]), q(params["pred1_wb"])], axis=0)
    pred1 = jnp.einsum('bhwc,cp->bhwp', cat1, wp1) + params["pred1_b"].reshape(1, 1, 1, -1)
    pred2 = jnp.einsum('bhwc,cp->bhwp', t2, q(params["pred2_w"])) \
        + params["pred2_b"].reshape(1, 1, 1, -1)
    pred3 = jnp.einsum('bhwc,cp->bhwp', t3, q(params["pred3_w"])) \
        + params["pred3_b"].reshape(1, 1, 1, -1)
    to_nchw = lambda t: jnp.transpose(t, (0, 3, 1, 2))
    return to_nchw(pred1), to_nchw(pred2), to_nchw(pred3)


# ----------------------------- main -------------------------------------------- #

if __name__ == "__main__":
    key = jax.random.PRNGKey(0)
    C, num_classes, B = 8, 3, 2            # P = (3 + 5) * 3 = 24
    H3, W3 = 4, 4
    k1, k2, k3, kp = jax.random.split(key, 4)

    # feature-pyramid inputs (NCHW): deepest level has most channels / smallest HW
    x3 = jax.random.normal(k3, (B, C, H3, W3), jnp.float32)
    x2 = jax.random.normal(k2, (B, C // 2, 2 * H3, 2 * W3), jnp.float32)
    x1 = jax.random.normal(k1, (B, C // 4, 4 * H3, 4 * W3), jnp.float32)

    params = init_params(kp, C, num_classes)
    fwd = jax.jit(functools.partial(yolop_head_forward, params))
    pred1, pred2, pred3 = fwd(x1, x2, x3)
    jax.block_until_ready((pred1, pred2, pred3))

    P = (num_classes + 5) * 3
    assert pred1.shape == (B, P, 4 * H3, 4 * W3), pred1.shape
    assert pred2.shape == (B, P, 4 * H3, 4 * W3), pred2.shape
    assert pred3.shape == (B, P, 2 * H3, 2 * W3), pred3.shape

    # numerical sanity check against the pure-JAX reference of the same forward
    r1, r2, r3 = jax.jit(functools.partial(reference_forward, params))(x1, x2, x3)
    err = max(float(jnp.max(jnp.abs(pred1 - r1))),
              float(jnp.max(jnp.abs(pred2 - r2))),
              float(jnp.max(jnp.abs(pred3 - r3))))
    assert err < 5e-2, f"max abs diff vs reference: {err}"
    print("KERNEL_OK")
</pallas_src>

<mosaic_0001>
module attributes {stable_mosaic.version = 11 : i64} {
  func.func @_matmul_stats_kernel(%arg0: i32, %arg1: memref<32x8xbf16, #tpu.memory_space<vmem>>, %arg2: memref<8x128xbf16, #tpu.memory_space<vmem>>, %arg3: memref<32x128xbf16, #tpu.memory_space<vmem>>, %arg4: memref<1x2x128xf32, #tpu.memory_space<vmem>>) attributes {dimension_semantics = [#tpu.dimension_semantics<parallel>], iteration_bounds = array<i64: 1>, scalar_prefetch = 0 : i64, scratch_operands = 0 : i64, tpu.core_type = #tpu.core_type<tc>, window_params = [{transform_indices = @transform_0, window_bounds = array<i64: 32, 8>}, {pipeline_mode = #tpu.pipeline_mode<synchronous>, transform_indices = @transform_1, window_bounds = array<i64: 8, 128>}, {transform_indices = @transform_2, window_bounds = array<i64: 32, 128>}, {transform_indices = @transform_3, window_bounds = array<i64: 1, 2, 128>}]} {
    %c0 = arith.constant 0 : index
    %c0_0 = arith.constant 0 : index
    %0 = vector.load %arg1[%c0, %c0_0] : memref<32x8xbf16, #tpu.memory_space<vmem>>, vector<32x8xbf16>
    %c0_1 = arith.constant 0 : index
    %c0_2 = arith.constant 0 : index
    %1 = vector.load %arg2[%c0_1, %c0_2] : memref<8x128xbf16, #tpu.memory_space<vmem>>, vector<8x128xbf16>
    %cst = arith.constant dense<0.000000e+00> : vector<32x128xf32>
    %2 = tpu.matmul %0, %1, %cst {dimension_numbers = #tpu.dot_dimension_numbers<[1], [0], [0], [1], [0, 0, 1, 1], [], []>} : vector<32x8xbf16>, vector<8x128xbf16>, vector<32x128xf32> -> vector<32x128xf32>
    %3 = arith.truncf %2 : vector<32x128xf32> to vector<32x128xbf16>
    %c0_3 = arith.constant 0 : index
    %c0_4 = arith.constant 0 : index
    %4 = vector.load %arg3[%c0_3, %c0_4] : memref<32x128xbf16, #tpu.memory_space<vmem>>, vector<32x128xbf16>
    tpu.vector_store %arg3[%c0_3, %c0_4], %3 {strides = array<i32>} : memref<32x128xbf16, #tpu.memory_space<vmem>>, vector<32x128xbf16>,
    %cst_5 = arith.constant dense<0.000000e+00> : vector<128xf32>
    %5 = vector.multi_reduction <add>, %2, %cst_5 [0] : vector<32x128xf32> to vector<128xf32>
    %6 = vector.shape_cast %5 : vector<128xf32> to vector<1x128xf32>
    %c0_6 = arith.constant 0 : index
    %c0_7 = arith.constant 0 : index
    %c0_8 = arith.constant 0 : index
    %7 = vector.load %arg4[%c0_6, %c0_7, %c0_8] : memref<1x2x128xf32, #tpu.memory_space<vmem>>, vector<1x1x128xf32>
    %8 = vector.shape_cast %7 : vector<1x1x128xf32> to vector<1x128xf32>
    %9 = vector.shape_cast %6 : vector<1x128xf32> to vector<1x1x128xf32>
    tpu.vector_store %arg4[%c0_6, %c0_7, %c0_8], %9 {strides = array<i32>} : memref<1x2x128xf32, #tpu.memory_space<vmem>>, vector<1x1x128xf32>,
    %10 = arith.mulf %2, %2 : vector<32x128xf32>
    %cst_9 = arith.constant dense<0.000000e+00> : vector<128xf32>
    %11 = vector.multi_reduction <add>, %10, %cst_9 [0] : vector<32x128xf32> to vector<128xf32>
    %12 = vector.shape_cast %11 : vector<128xf32> to vector<1x128xf32>
    %c0_10 = arith.constant 0 : index
    %c1 = arith.constant 1 : index
    %c0_11 = arith.constant 0 : index
    %13 = vector.load %arg4[%c0_10, %c1, %c0_11] : memref<1x2x128xf32, #tpu.memory_space<vmem>>, vector<1x1x128xf32>
    %14 = vector.shape_cast %13 : vector<1x1x128xf32> to vector<1x128xf32>
    %15 = vector.shape_cast %12 : vector<1x128xf32> to vector<1x1x128xf32>
    tpu.vector_store %arg4[%c0_10, %c1, %c0_11], %15 {strides = array<i32>} : memref<1x2x128xf32, #tpu.memory_space<vmem>>, vector<1x1x128xf32>,
    return
  }
  func.func @transform_0(%arg0: i32) -> (i32, i32) {
    %c0_i32 = arith.constant 0 : i32
    %c0_i32_0 = arith.constant 0 : i32
    return %arg0, %c0_i32 : i32, i32
  }
  func.func @transform_1(%arg0: i32) -> (i32, i32) {
    %c0_i32 = arith.constant 0 : i32
    %c0_i32_0 = arith.constant 0 : i32
    %c0_i32_1 = arith.constant 0 : i32
    return %c0_i32, %c0_i32_0 : i32, i32
  }
  func.func @transform_2(%arg0: i32) -> (i32, i32) {
    %c0_i32 = arith.constant 0 : i32
    %c0_i32_0 = arith.constant 0 : i32
    return %arg0, %c0_i32 : i32, i32
  }
  func.func @transform_3(%arg0: i32) -> (i32, i32, i32) {
    %c0_i32 = arith.constant 0 : i32
    %c0_i32_0 = arith.constant 0 : i32
    %c0_i32_1 = arith.constant 0 : i32
    return %arg0, %c0_i32, %c0_i32_0 : i32, i32, i32
  }
}

module attributes {stable_mosaic.version = 11 : i64} {
  func.func @_conv3x3_stats_kernel(%arg0: i32, %arg1: memref<1x110x8xbf16, #tpu.memory_space<vmem>>, %arg2: memref<80x1xf32, #tpu.memory_space<vmem>>, %arg3: memref<9x8x128xbf16, #tpu.memory_space<vmem>>, %arg4: memref<1x80x128xbf16, #tpu.memory_space<vmem>>, %arg5: memref<1x2x128xf32, #tpu.memory_space<vmem>>) attributes {dimension_semantics = [#tpu.dimension_semantics<parallel>], iteration_bounds = array<i64: 2>, scalar_prefetch = 0 : i64, scratch_operands = 0 : i64, tpu.core_type = #tpu.core_type<tc>, window_params = [{transform_indices = @transform_0, window_bounds = array<i64: 1, 110, 8>}, {pipeline_mode = #tpu.pipeline_mode<synchronous>, transform_indices = @transform_1, window_bounds = array<i64: 80, 1>}, {pipeline_mode = #tpu.pipeline_mode<synchronous>, transform_indices = @transform_2, window_bounds = array<i64: 9, 8, 128>}, {transform_indices = @transform_3, window_bounds = array<i64: 1, 80, 128>}, {transform_indices = @transform_4, window_bounds = array<i64: 1, 2, 128>}]} {
    %cst = arith.constant 0.000000e+00 : f32
    %0 = vector.broadcast %cst : f32 to vector<80x128xf32>
    %c0 = arith.constant 0 : index
    %c0_0 = arith.constant 0 : index
    %c0_1 = arith.constant 0 : index
    %1 = vector.load %arg1[%c0, %c0_0, %c0_1] : memref<1x110x8xbf16, #tpu.memory_space<vmem>>, vector<1x80x8xbf16>
    %2 = vector.shape_cast %1 : vector<1x80x8xbf16> to vector<80x8xbf16>
    %c0_2 = arith.constant 0 : index
    %c0_3 = arith.constant 0 : index
    %c0_4 = arith.constant 0 : index
    %3 = vector.load %arg3[%c0_2, %c0_3, %c0_4] : memref<9x8x128xbf16, #tpu.memory_space<vmem>>, vector<1x8x128xbf16>
    %4 = vector.shape_cast %3 : vector<1x8x128xbf16> to vector<8x128xbf16>
    %cst_5 = arith.constant dense<0.000000e+00> : vector<80x128xf32>
    %5 = tpu.matmul %2, %4, %cst_5 {dimension_numbers = #tpu.dot_dimension_numbers<[1], [0], [0], [1], [0, 0, 1, 1], [], []>} : vector<80x8xbf16>, vector<8x128xbf16>, vector<80x128xf32> -> vector<80x128xf32>
    %6 = arith.addf %0, %5 : vector<80x128xf32>
    %c0_6 = arith.constant 0 : index
    %c1 = arith.constant 1 : index
    %c0_7 = arith.constant 0 : index
    %7 = vector.load %arg1[%c0_6, %c1, %c0_7] : memref<1x110x8xbf16, #tpu.memory_space<vmem>>, vector<1x80x8xbf16>
    %8 = vector.shape_cast %7 : vector<1x80x8xbf16> to vector<80x8xbf16>
    %c1_8 = arith.constant 1 : index
    %c0_9 = arith.constant 0 : index
    %c0_10 = arith.constant 0 : index
    %9 = vector.load %arg3[%c1_8, %c0_9, %c0_10] : memref<9x8x128xbf16, #tpu.memory_space<vmem>>, vector<1x8x128xbf16>
    %10 = vector.shape_cast %9 : vector<1x8x128xbf16> to vector<8x128xbf16>
    %cst_11 = arith.constant dense<0.000000e+00> : vector<80x128xf32>
    %11 = tpu.matmul %8, %10, %cst_11 {dimension_numbers = #tpu.dot_dimension_numbers<[1], [0], [0], [1], [0, 0, 1, 1], [], []>} : vector<80x8xbf16>, vector<8x128xbf16>, vector<80x128xf32> -> vector<80x128xf32>
    %12 = arith.addf %6, %11 : vector<80x128xf32>
    %c0_12 = arith.constant 0 : index
    %c2 = arith.constant 2 : index
    %c0_13 = arith.constant 0 : index
    %13 = vector.load %arg1[%c0_12, %c2, %c0_13] : memref<1x110x8xbf16, #tpu.memory_space<vmem>>, vector<1x80x8xbf16>
    %14 = vector.shape_cast %13 : vector<1x80x8xbf16> to vector<80x8xbf16>
    %c2_14 = arith.constant 2 : index
    %c0_15 = arith.constant 0 : index
    %c0_16 = arith.constant 0 : index
    %15 = vector.load %arg3[%c2_14, %c0_15, %c0_16] : memref<9x8x128xbf16, #tpu.memory_space<vmem>>, vector<1x8x128xbf16>
    %16 = vector.shape_cast %15 : vector<1x8x128xbf16> to vector<8x128xbf16>
    %cst_17 = arith.constant dense<0.000000e+00> : vector<80x128xf32>
    %17 = tpu.matmul %14, %16, %cst_17 {dimension_numbers = #tpu.dot_dimension_numbers<[1], [0], [0], [1], [0, 0, 1, 1], [], []>} : vector<80x8xbf16>, vector<8x128xbf16>, vector<80x128xf32> -> vector<80x128xf32>
    %18 = arith.addf %12, %17 : vector<80x128xf32>
    %c0_18 = arith.constant 0 : index
    %c10 = arith.constant 10 : index
    %c0_19 = arith.constant 0 : index
    %19 = vector.load %arg1[%c0_18, %c10, %c0_19] : memref<1x110x8xbf16, #tpu.memory_space<vmem>>, vector<1x80x8xbf16>
    %20 = vector.shape_cast %19 : vector<1x80x8xbf16> to vector<80x8xbf16>
    %c3 = arith.constant 3 : index
    %c0_20 = arith.constant 0 : index
    %c0_21 = arith.constant 0 : index
    %21 = vector.load %arg3[%c3, %c0_20, %c0_21] : memref<9x8x128xbf16, #tpu.memory_space<vmem>>, vector<1x8x128xbf16>
    %22 = vector.shape_cast %21 : vector<1x8x128xbf16> to vector<8x128xbf16>
    %cst_22 = arith.constant dense<0.000000e+00> : vector<80x128xf32>
    %23 = tpu.matmul %20, %22, %cst_22 {dimension_numbers = #tpu.dot_dimension_numbers<[1], [0], [0], [1], [0, 0, 1, 1], [], []>} : vector<80x8xbf16>, vector<8x128xbf16>, vector<80x128xf32> -> vector<80x128xf32>
    %24 = arith.addf %18, %23 : vector<80x128xf32>
    %c0_23 = arith.constant 0 : index
    %c11 = arith.constant 11 : index
    %c0_24 = arith.constant 0 : index
    %25 = vector.load %arg1[%c0_23, %c11, %c0_24] : memref<1x110x8xbf16, #tpu.memory_space<vmem>>, vector<1x80x8xbf16>
    %26 = vector.shape_cast %25 : vector<1x80x8xbf16> to vector<80x8xbf16>
    %c4 = arith.constant 4 : index
    %c0_25 = arith.constant 0 : index
    %c0_26 = arith.constant 0 : index
    %27 = vector.load %arg3[%c4, %c0_25, %c0_26] : memref<9x8x128xbf16, #tpu.memory_space<vmem>>, vector<1x8x128xbf16>
    %28 = vector.shape_cast %27 : vector<1x8x128xbf16> to vector<8x128xbf16>
    %cst_27 = arith.constant dense<0.000000e+00> : vector<80x128xf32>
    %29 = tpu.matmul %26, %28, %cst_27 {dimension_numbers = #tpu.dot_dimension_numbers<[1], [0], [0], [1], [0, 0, 1, 1], [], []>} : vector<80x8xbf16>, vector<8x128xbf16>, vector<80x128xf32> -> vector<80x128xf32>
    %30 = arith.addf %24, %29 : vector<80x128xf32>
    %c0_28 = arith.constant 0 : index
    %c12 = arith.constant 12 : index
    %c0_29 = arith.constant 0 : index
    %31 = vector.load %arg1[%c0_28, %c12, %c0_29] : memref<1x110x8xbf16, #tpu.memory_space<vmem>>, vector<1x80x8xbf16>
    %32 = vector.shape_cast %31 : vector<1x80x8xbf16> to vector<80x8xbf16>
    %c5 = arith.constant 5 : index
    %c0_30 = arith.constant 0 : index
    %c0_31 = arith.constant 0 : index
    %33 = vector.load %arg3[%c5, %c0_30, %c0_31] : memref<9x8x128xbf16, #tpu.memory_space<vmem>>, vector<1x8x128xbf16>
    %34 = vector.shape_cast %33 : vector<1x8x128xbf16> to vector<8x128xbf16>
    %cst_32 = arith.constant dense<0.000000e+00> : vector<80x128xf32>
    %35 = tpu.matmul %32, %34, %cst_32 {dimension_numbers = #tpu.dot_dimension_numbers<[1], [0], [0], [1], [0, 0, 1, 1], [], []>} : vector<80x8xbf16>, vector<8x128xbf16>, vector<80x128xf32> -> vector<80x128xf32>
    %36 = arith.addf %30, %35 : vector<80x128xf32>
    %c0_33 = arith.constant 0 : index
    %c20 = arith.constant 20 : index
    %c0_34 = arith.constant 0 : index
    %37 = vector.load %arg1[%c0_33, %c20, %c0_34] : memref<1x110x8xbf16, #tpu.memory_space<vmem>>, vector<1x80x8xbf16>
    %38 = vector.shape_cast %37 : vector<1x80x8xbf16> to vector<80x8xbf16>
    %c6 = arith.constant 6 : index
    %c0_35 = arith.constant 0 : index
    %c0_36 = arith.constant 0 : index
    %39 = vector.load %arg3[%c6, %c0_35, %c0_36] : memref<9x8x128xbf16, #tpu.memory_space<vmem>>, vector<1x8x128xbf16>
    %40 = vector.shape_cast %39 : vector<1x8x128xbf16> to vector<8x128xbf16>
    %cst_37 = arith.constant dense<0.000000e+00> : vector<80x128xf32>
    %41 = tpu.matmul %38, %40, %cst_37 {dimension_numbers = #tpu.dot_dimension_numbers<[1], [0], [0], [1], [0, 0, 1, 1], [], []>} : vector<80x8xbf16>, vector<8x128xbf16>, vector<80x128xf32> -> vector<80x128xf32>
    %42 = arith.addf %36, %41 : vector<80x128xf32>
    %c0_38 = arith.constant 0 : index
    %c21 = arith.constant 21 : index
    %c0_39 = arith.constant 0 : index
    %43 = vector.load %arg1[%c0_38, %c21, %c0_39] : memref<1x110x8xbf16, #tpu.memory_space<vmem>>, vector<1x80x8xbf16>
    %44 = vector.shape_cast %43 : vector<1x80x8xbf16> to vector<80x8xbf16>
    %c7 = arith.constant 7 : index
    %c0_40 = arith.constant 0 : index
    %c0_41 = arith.constant 0 : index
    %45 = vector.load %arg3[%c7, %c0_40, %c0_41] : memref<9x8x128xbf16, #tpu.memory_space<vmem>>, vector<1x8x128xbf16>
    %46 = vector.shape_cast %45 : vector<1x8x128xbf16> to vector<8x128xbf16>
    %cst_42 = arith.constant dense<0.000000e+00> : vector<80x128xf32>
    %47 = tpu.matmul %44, %46, %cst_42 {dimension_numbers = #tpu.dot_dimension_numbers<[1], [0], [0], [1], [0, 0, 1, 1], [], []>} : vector<80x8xbf16>, vector<8x128xbf16>, vector<80x128xf32> -> vector<80x128xf32>
    %48 = arith.addf %42, %47 : vector<80x128xf32>
    %c0_43 = arith.constant 0 : index
    %c22 = arith.constant 22 : index
    %c0_44 = arith.constant 0 : index
    %49 = vector.load %arg1[%c0_43, %c22, %c0_44] : memref<1x110x8xbf16, #tpu.memory_space<vmem>>, vector<1x80x8xbf16>
    %50 = vector.shape_cast %49 : vector<1x80x8xbf16> to vector<80x8xbf16>
    %c8 = arith.constant 8 : index
    %c0_45 = arith.constant 0 : index
    %c0_46 = arith.constant 0 : index
    %51 = vector.load %arg3[%c8, %c0_45, %c0_46] : memref<9x8x128xbf16, #tpu.memory_space<vmem>>, vector<1x8x128xbf16>
    %52 = vector.shape_cast %51 : vector<1x8x128xbf16> to vector<8x128xbf16>
    %cst_47 = arith.constant dense<0.000000e+00> : vector<80x128xf32>
    %53 = tpu.matmul %50, %52, %cst_47 {dimension_numbers = #tpu.dot_dimension_numbers<[1], [0], [0], [1], [0, 0, 1, 1], [], []>} : vector<80x8xbf16>, vector<8x128xbf16>, vector<80x128xf32> -> vector<80x128xf32>
    %54 = arith.addf %48, %53 : vector<80x128xf32>
    %55 = arith.truncf %54 : vector<80x128xf32> to vector<80x128xbf16>
    %c0_48 = arith.constant 0 : index
    %c0_49 = arith.constant 0 : index
    %c0_50 = arith.constant 0 : index
    %56 = vector.load %arg4[%c0_48, %c0_49, %c0_50] : memref<1x80x128xbf16, #tpu.memory_space<vmem>>, vector<1x80x128xbf16>
    %57 = vector.shape_cast %56 : vector<1x80x128xbf16> to vector<80x128xbf16>
    %58 = vector.shape_cast %55 : vector<80x128xbf16> to vector<1x80x128xbf16>
    tpu.vector_store %arg4[%c0_48, %c0_49, %c0_50], %58 {strides = array<i32>} : memref<1x80x128xbf16, #tpu.memory_space<vmem>>, vector<1x80x128xbf16>,
    %c0_51 = arith.constant 0 : index
    %c0_52 = arith.constant 0 : index
    %59 = vector.load %arg2[%c0_51, %c0_52] : memref<80x1xf32, #tpu.memory_space<vmem>>, vector<80x1xf32>
    %60 = vector.broadcast %59 : vector<80x1xf32> to vector<80x128xf32>
    %61 = arith.mulf %54, %60 : vector<80x128xf32>
    %cst_53 = arith.constant dense<0.000000e+00> : vector<128xf32>
    %62 = vector.multi_reduction <add>, %61, %cst_53 [0] : vector<80x128xf32> to vector<128xf32>
    %63 = vector.shape_cast %62 : vector<128xf32> to vector<1x128xf32>
    %c0_54 = arith.constant 0 : index
    %c0_55 = arith.constant 0 : index
    %c0_56 = arith.constant 0 : index
    %64 = vector.load %arg5[%c0_54, %c0_55, %c0_56] : memref<1x2x128xf32, #tpu.memory_space<vmem>>, vector<1x1x128xf32>
    %65 = vector.shape_cast %64 : vector<1x1x128xf32> to vector<1x128xf32>
    %66 = vector.shape_cast %63 : vector<1x128xf32> to vector<1x1x128xf32>
    tpu.vector_store %arg5[%c0_54, %c0_55, %c0_56], %66 {strides = array<i32>} : memref<1x2x128xf32, #tpu.memory_space<vmem>>, vector<1x1x128xf32>,
    %67 = arith.mulf %54, %54 : vector<80x128xf32>
    %68 = vector.broadcast %59 : vector<80x1xf32> to vector<80x128xf32>
    %69 = arith.mulf %67, %68 : vector<80x128xf32>
    %cst_57 = arith.constant dense<0.000000e+00> : vector<128xf32>
    %70 = vector.multi_reduction <add>, %69, %cst_57 [0] : vector<80x128xf32> to vector<128xf32>
    %71 = vector.shape_cast %70 : vector<128xf32> to vector<1x128xf32>
    %c0_58 = arith.constant 0 : index
    %c1_59 = arith.constant 1 : index
    %c0_60 = arith.constant 0 : index
    %72 = vector.load %arg5[%c0_58, %c1_59, %c0_60] : memref<1x2x128xf32, #tpu.memory_space<vmem>>, vector<1x1x128xf32>
    %73 = vector.shape_cast %72 : vector<1x1x128xf32> to vector<1x128xf32>
    %74 = vector.shape_cast %71 : vector<1x128xf32> to vector<1x1x128xf32>
    tpu.vector_store %arg5[%c0_58, %c1_59, %c0_60], %74 {strides = array<i32>} : memref<1x2x128xf32, #tpu.memory_space<vmem>>, vector<1x1x128xf32>,
    return
  }
  func.func @transform_0(%arg0: i32) -> (i32, i32, i32) {
    %c0_i32 = arith.constant 0 : i32
    %c0_i32_0 = arith.constant 0 : i32
    %c0_i32_1 = arith.constant 0 : i32
    return %arg0, %c0_i32, %c0_i32_0 : i32, i32, i32
  }
  func.func @transform_1(%arg0: i32) -> (i32, i32) {
    %c0_i32 = arith.constant 0 : i32
    %c0_i32_0 = arith.constant 0 : i32
    %c0_i32_1 = arith.constant 0 : i32
    return %c0_i32, %c0_i32_0 : i32, i32
  }
  func.func @transform_2(%arg0: i32) -> (i32, i32, i32) {
    %c0_i32 = arith.constant 0 : i32
    %c0_i32_0 = arith.constant 0 : i32
    %c0_i32_1 = arith.constant 0 : i32
    %c0_i32_2 = arith.constant 0 : i32
    return %c0_i32, %c0_i32_0, %c0_i32_1 : i32, i32, i32
  }
  func.func @transform_3(%arg0: i32) -> (i32, i32, i32) {
    %c0_i32 = arith.constant 0 : i32
    %c0_i32_0 = arith.constant 0 : i32
    %c0_i32_1 = arith.constant 0 : i32
    return %arg0, %c0_i32, %c0_i32_0 : i32, i32, i32
  }
  func.func @transform_4(%arg0: i32) -> (i32, i32, i32) {
    %c0_i32 = arith.constant 0 : i32
    %c0_i32_0 = arith.constant 0 : i32
    %c0_i32_1 = arith.constant 0 : i32
    return %arg0, %c0_i32, %c0_i32_0 : i32, i32, i32
  }
}

module attributes {stable_mosaic.version = 11 : i64} {
  func.func @_bn_act_matmul_kernel(%arg0: i32, %arg1: memref<160x128xbf16, #tpu.memory_space<vmem>>, %arg2: memref<1x128xf32, #tpu.memory_space<vmem>>, %arg3: memref<1x128xf32, #tpu.memory_space<vmem>>, %arg4: memref<128x256xbf16, #tpu.memory_space<vmem>>, %arg5: memref<1x256xf32, #tpu.memory_space<vmem>>, %arg6: memref<160x256xbf16, #tpu.memory_space<vmem>>) attributes {dimension_semantics = [#tpu.dimension_semantics<parallel>], iteration_bounds = array<i64: 1>, scalar_prefetch = 0 : i64, scratch_operands = 0 : i64, tpu.core_type = #tpu.core_type<tc>, window_params = [{transform_indices = @transform_0, window_bounds = array<i64: 160, 128>}, {pipeline_mode = #tpu.pipeline_mode<synchronous>, transform_indices = @transform_1, window_bounds = array<i64: 1, 128>}, {pipeline_mode = #tpu.pipeline_mode<synchronous>, transform_indices = @transform_2, window_bounds = array<i64: 1, 128>}, {pipeline_mode = #tpu.pipeline_mode<synchronous>, transform_indices = @transform_3, window_bounds = array<i64: 128, 256>}, {pipeline_mode = #tpu.pipeline_mode<synchronous>, transform_indices = @transform_4, window_bounds = array<i64: 1, 256>}, {transform_indices = @transform_5, window_bounds = array<i64: 160, 256>}]} {
    %c0 = arith.constant 0 : index
    %c0_0 = arith.constant 0 : index
    %0 = vector.load %arg1[%c0, %c0_0] : memref<160x128xbf16, #tpu.memory_space<vmem>>, vector<160x128xbf16>
    %1 = arith.extf %0 : vector<160x128xbf16> to vector<160x128xf32>
    %c0_1 = arith.constant 0 : index
    %c0_2 = arith.constant 0 : index
    %2 = vector.load %arg2[%c0_1, %c0_2] : memref<1x128xf32, #tpu.memory_space<vmem>>, vector<1x128xf32>
    %3 = vector.broadcast %2 : vector<1x128xf32> to vector<160x128xf32>
    %4 = arith.mulf %1, %3 : vector<160x128xf32>
    %c0_3 = arith.constant 0 : index
    %c0_4 = arith.constant 0 : index
    %5 = vector.load %arg3[%c0_3, %c0_4] : memref<1x128xf32, #tpu.memory_space<vmem>>, vector<1x128xf32>
    %6 = vector.broadcast %5 : vector<1x128xf32> to vector<160x128xf32>
    %7 = arith.addf %4, %6 : vector<160x128xf32>
    %cst = arith.constant 0.000000e+00 : f32
    %8 = vector.broadcast %cst : f32 to vector<160x128xf32>
    %9 = arith.cmpf ogt, %7, %8 : vector<160x128xf32>
    %cst_5 = arith.constant 1.000000e-01 : f32
    %10 = vector.broadcast %cst_5 : f32 to vector<160x128xf32>
    %11 = arith.mulf %10, %7 : vector<160x128xf32>
    %12 = arith.select %9, %7, %11 : vector<160x128xi1>, vector<160x128xf32>
    %13 = arith.truncf %12 : vector<160x128xf32> to vector<160x128xbf16>
    %c0_6 = arith.constant 0 : index
    %c0_7 = arith.constant 0 : index
    %14 = vector.load %arg4[%c0_6, %c0_7] : memref<128x256xbf16, #tpu.memory_space<vmem>>, vector<128x256xbf16>
    %cst_8 = arith.constant dense<0.000000e+00> : vector<160x256xf32>
    %15 = tpu.matmul %13, %14, %cst_8 {dimension_numbers = #tpu.dot_dimension_numbers<[1], [0], [0], [1], [0, 0, 1, 1], [], []>} : vector<160x128xbf16>, vector<128x256xbf16>, vector<160x256xf32> -> vector<160x256xf32>
    %c0_9 = arith.constant 0 : index
    %c0_10 = arith.constant 0 : index
    %16 = vector.load %arg5[%c0_9, %c0_10] : memref<1x256xf32, #tpu.memory_space<vmem>>, vector<1x256xf32>
    %17 = vector.broadcast %16 : vector<1x256xf32> to vector<160x256xf32>
    %18 = arith.addf %15, %17 : vector<160x256xf32>
    %19 = arith.truncf %18 : vector<160x256xf32> to vector<160x256xbf16>
    %c0_11 = arith.constant 0 : index
    %c0_12 = arith.constant 0 : index
    %20 = vector.load %arg6[%c0_11, %c0_12] : memref<160x256xbf16, #tpu.memory_space<vmem>>, vector<160x256xbf16>
    tpu.vector_store %arg6[%c0_11, %c0_12], %19 {strides = array<i32>} : memref<160x256xbf16, #tpu.memory_space<vmem>>, vector<160x256xbf16>,
    return
  }
  func.func @transform_0(%arg0: i32) -> (i32, i32) {
    %c0_i32 = arith.constant 0 : i32
    %c0_i32_0 = arith.constant 0 : i32
    return %arg0, %c0_i32 : i32, i32
  }
  func.func @transform_1(%arg0: i32) -> (i32, i32) {
    %c0_i32 = arith.constant 0 : i32
    %c0_i32_0 = arith.constant 0 : i32
    %c0_i32_1 = arith.constant 0 : i32
    return %c0_i32, %c0_i32_0 : i32, i32
  }
  func.func @transform_2(%arg0: i32) -> (i32, i32) {
    %c0_i32 = arith.constant 0 : i32
    %c0_i32_0 = arith.constant 0 : i32
    %c0_i32_1 = arith.constant 0 : i32
    return %c0_i32, %c0_i32_0 : i32, i32
  }
  func.func @transform_3(%arg0: i32) -> (i32, i32) {
    %c0_i32 = arith.constant 0 : i32
    %c0_i32_0 = arith.constant 0 : i32
    %c0_i32_1 = arith.constant 0 : i32
    return %c0_i32, %c0_i32_0 : i32, i32
  }
  func.func @transform_4(%arg0: i32) -> (i32, i32) {
    %c0_i32 = arith.constant 0 : i32
    %c0_i32_0 = arith.constant 0 : i32
    %c0_i32_1 = arith.constant 0 : i32
    return %c0_i32, %c0_i32_0 : i32, i32
  }
  func.func @transform_5(%arg0: i32) -> (i32, i32) {
    %c0_i32 = arith.constant 0 : i32
    %c0_i32_0 = arith.constant 0 : i32
    return %arg0, %c0_i32 : i32, i32
  }
}

module attributes {stable_mosaic.version = 11 : i64} {
  func.func @_matmul_bias_add_kernel(%arg0: i32, %arg1: memref<512x2xbf16, #tpu.memory_space<vmem>>, %arg2: memref<512x128xbf16, #tpu.memory_space<vmem>>, %arg3: memref<2x128xbf16, #tpu.memory_space<vmem>>, %arg4: memref<1x128xf32, #tpu.memory_space<vmem>>, %arg5: memref<512x128xf32, #tpu.memory_space<vmem>>) attributes {dimension_semantics = [#tpu.dimension_semantics<parallel>], iteration_bounds = array<i64: 1>, scalar_prefetch = 0 : i64, scratch_operands = 0 : i64, tpu.core_type = #tpu.core_type<tc>, window_params = [{transform_indices = @transform_0, window_bounds = array<i64: 512, 2>}, {transform_indices = @transform_1, window_bounds = array<i64: 512, 128>}, {pipeline_mode = #tpu.pipeline_mode<synchronous>, transform_indices = @transform_2, window_bounds = array<i64: 2, 128>}, {pipeline_mode = #tpu.pipeline_mode<synchronous>, transform_indices = @transform_3, window_bounds = array<i64: 1, 128>}, {transform_indices = @transform_4, window_bounds = array<i64: 512, 128>}]} {
    %c0 = arith.constant 0 : index
    %c0_0 = arith.constant 0 : index
    %0 = vector.load %arg1[%c0, %c0_0] : memref<512x2xbf16, #tpu.memory_space<vmem>>, vector<512x2xbf16>
    %c0_1 = arith.constant 0 : index
    %c0_2 = arith.constant 0 : index
    %1 = vector.load %arg3[%c0_1, %c0_2] : memref<2x128xbf16, #tpu.memory_space<vmem>>, vector<2x128xbf16>
    %cst = arith.constant dense<0.000000e+00> : vector<512x128xf32>
    %2 = tpu.matmul %0, %1, %cst {dimension_numbers = #tpu.dot_dimension_numbers<[1], [0], [0], [1], [0, 0, 1, 1], [], []>} : vector<512x2xbf16>, vector<2x128xbf16>, vector<512x128xf32> -> vector<512x128xf32>
    %c0_3 = arith.constant 0 : index
    %c0_4 = arith.constant 0 : index
    %3 = vector.load %arg4[%c0_3, %c0_4] : memref<1x128xf32, #tpu.memory_space<vmem>>, vector<1x128xf32>
    %4 = vector.broadcast %3 : vector<1x128xf32> to vector<512x128xf32>
    %5 = arith.addf %2, %4 : vector<512x128xf32>
    %c0_5 = arith.constant 0 : index
    %c0_6 = arith.constant 0 : index
    %6 = vector.load %arg2[%c0_5, %c0_6] : memref<512x128xbf16, #tpu.memory_space<vmem>>, vector<512x128xbf16>
    %7 = arith.extf %6 : vector<512x128xbf16> to vector<512x128xf32>
    %8 = arith.addf %5, %7 : vector<512x128xf32>
    %c0_7 = arith.constant 0 : index
    %c0_8 = arith.constant 0 : index
    %9 = vector.load %arg5[%c0_7, %c0_8] : memref<512x128xf32, #tpu.memory_space<vmem>>, vector<512x128xf32>
    tpu.vector_store %arg5[%c0_7, %c0_8], %8 {strides = array<i32>} : memref<512x128xf32, #tpu.memory_space<vmem>>, vector<512x128xf32>,
    return
  }
  func.func @transform_0(%arg0: i32) -> (i32, i32) {
    %c0_i32 = arith.constant 0 : i32
    %c0_i32_0 = arith.constant 0 : i32
    return %arg0, %c0_i32 : i32, i32
  }
  func.func @transform_1(%arg0: i32) -> (i32, i32) {
    %c0_i32 = arith.constant 0 : i32
    %c0_i32_0 = arith.constant 0 : i32
    return %arg0, %c0_i32 : i32, i32
  }
  func.func @transform_2(%arg0: i32) -> (i32, i32) {
    %c0_i32 = arith.constant 0 : i32
    %c0_i32_0 = arith.constant 0 : i32
    %c0_i32_1 = arith.constant 0 : i32
    return %c0_i32, %c0_i32_0 : i32, i32
  }
  func.func @transform_3(%arg0: i32) -> (i32, i32) {
    %c0_i32 = arith.constant 0 : i32
    %c0_i32_0 = arith.constant 0 : i32
    %c0_i32_1 = arith.constant 0 : i32
    return %c0_i32, %c0_i32_0 : i32, i32
  }
  func.func @transform_4(%arg0: i32) -> (i32, i32) {
    %c0_i32 = arith.constant 0 : i32
    %c0_i32_0 = arith.constant 0 : i32
    return %arg0, %c0_i32 : i32, i32
  }
}

module attributes {stable_mosaic.version = 11 : i64} {
  func.func @_bn_act_matmul_kernel(%arg0: i32, %arg1: memref<32x128xbf16, #tpu.memory_space<vmem>>, %arg2: memref<1x128xf32, #tpu.memory_space<vmem>>, %arg3: memref<1x128xf32, #tpu.memory_space<vmem>>, %arg4: memref<128x128xbf16, #tpu.memory_space<vmem>>, %arg5: memref<1x128xf32, #tpu.memory_space<vmem>>, %arg6: memref<32x128xf32, #tpu.memory_space<vmem>>) attributes {dimension_semantics = [#tpu.dimension_semantics<parallel>], iteration_bounds = array<i64: 1>, scalar_prefetch = 0 : i64, scratch_operands = 0 : i64, tpu.core_type = #tpu.core_type<tc>, window_params = [{transform_indices = @transform_0, window_bounds = array<i64: 32, 128>}, {pipeline_mode = #tpu.pipeline_mode<synchronous>, transform_indices = @transform_1, window_bounds = array<i64: 1, 128>}, {pipeline_mode = #tpu.pipeline_mode<synchronous>, transform_indices = @transform_2, window_bounds = array<i64: 1, 128>}, {pipeline_mode = #tpu.pipeline_mode<synchronous>, transform_indices = @transform_3, window_bounds = array<i64: 128, 128>}, {pipeline_mode = #tpu.pipeline_mode<synchronous>, transform_indices = @transform_4, window_bounds = array<i64: 1, 128>}, {transform_indices = @transform_5, window_bounds = array<i64: 32, 128>}]} {
    %c0 = arith.constant 0 : index
    %c0_0 = arith.constant 0 : index
    %0 = vector.load %arg1[%c0, %c0_0] : memref<32x128xbf16, #tpu.memory_space<vmem>>, vector<32x128xbf16>
    %1 = arith.extf %0 : vector<32x128xbf16> to vector<32x128xf32>
    %c0_1 = arith.constant 0 : index
    %c0_2 = arith.constant 0 : index
    %2 = vector.load %arg2[%c0_1, %c0_2] : memref<1x128xf32, #tpu.memory_space<vmem>>, vector<1x128xf32>
    %3 = vector.broadcast %2 : vector<1x128xf32> to vector<32x128xf32>
    %4 = arith.mulf %1, %3 : vector<32x128xf32>
    %c0_3 = arith.constant 0 : index
    %c0_4 = arith.constant 0 : index
    %5 = vector.load %arg3[%c0_3, %c0_4] : memref<1x128xf32, #tpu.memory_space<vmem>>, vector<1x128xf32>
    %6 = vector.broadcast %5 : vector<1x128xf32> to vector<32x128xf32>
    %7 = arith.addf %4, %6 : vector<32x128xf32>
    %cst = arith.constant 0.000000e+00 : f32
    %8 = vector.broadcast %cst : f32 to vector<32x128xf32>
    %9 = arith.cmpf ogt, %7, %8 : vector<32x128xf32>
    %cst_5 = arith.constant 1.000000e-01 : f32
    %10 = vector.broadcast %cst_5 : f32 to vector<32x128xf32>
    %11 = arith.mulf %10, %7 : vector<32x128xf32>
    %12 = arith.select %9, %7, %11 : vector<32x128xi1>, vector<32x128xf32>
    %13 = arith.truncf %12 : vector<32x128xf32> to vector<32x128xbf16>
    %c0_6 = arith.constant 0 : index
    %c0_7 = arith.constant 0 : index
    %14 = vector.load %arg4[%c0_6, %c0_7] : memref<128x128xbf16, #tpu.memory_space<vmem>>, vector<128x128xbf16>
    %cst_8 = arith.constant dense<0.000000e+00> : vector<32x128xf32>
    %15 = tpu.matmul %13, %14, %cst_8 {dimension_numbers = #tpu.dot_dimension_numbers<[1], [0], [0], [1], [0, 0, 1, 1], [], []>} : vector<32x128xbf16>, vector<128x128xbf16>, vector<32x128xf32> -> vector<32x128xf32>
    %c0_9 = arith.constant 0 : index
    %c0_10 = arith.constant 0 : index
    %16 = vector.load %arg5[%c0_9, %c0_10] : memref<1x128xf32, #tpu.memory_space<vmem>>, vector<1x128xf32>
    %17 = vector.broadcast %16 : vector<1x128xf32> to vector<32x128xf32>
    %18 = arith.addf %15, %17 : vector<32x128xf32>
    %c0_11 = arith.constant 0 : index
    %c0_12 = arith.constant 0 : index
    %19 = vector.load %arg6[%c0_11, %c0_12] : memref<32x128xf32, #tpu.memory_space<vmem>>, vector<32x128xf32>
    tpu.vector_store %arg6[%c0_11, %c0_12], %18 {strides = array<i32>} : memref<32x128xf32, #tpu.memory_space<vmem>>, vector<32x128xf32>,
    return
  }
  func.func @transform_0(%arg0: i32) -> (i32, i32) {
    %c0_i32 = arith.constant 0 : i32
    %c0_i32_0 = arith.constant 0 : i32
    return %arg0, %c0_i32 : i32, i32
  }
  func.func @transform_1(%arg0: i32) -> (i32, i32) {
    %c0_i32 = arith.constant 0 : i32
    %c0_i32_0 = arith.constant 0 : i32
    %c0_i32_1 = arith.constant 0 : i32
    return %c0_i32, %c0_i32_0 : i32, i32
  }
  func.func @transform_2(%arg0: i32) -> (i32, i32) {
    %c0_i32 = arith.constant 0 : i32
    %c0_i32_0 = arith.constant 0 : i32
    %c0_i32_1 = arith.constant 0 : i32
    return %c0_i32, %c0_i32_0 : i32, i32
  }
  func.func @transform_3(%arg0: i32) -> (i32, i32) {
    %c0_i32 = arith.constant 0 : i32
    %c0_i32_0 = arith.constant 0 : i32
    %c0_i32_1 = arith.constant 0 : i32
    return %c0_i32, %c0_i32_0 : i32, i32
  }
  func.func @transform_4(%arg0: i32) -> (i32, i32) {
    %c0_i32 = arith.constant 0 : i32
    %c0_i32_0 = arith.constant 0 : i32
    %c0_i32_1 = arith.constant 0 : i32
    return %c0_i32, %c0_i32_0 : i32, i32
  }
  func.func @transform_5(%arg0: i32) -> (i32, i32) {
    %c0_i32 = arith.constant 0 : i32
    %c0_i32_0 = arith.constant 0 : i32
    return %arg0, %c0_i32 : i32, i32
  }
}

</mosaic_0001>

<llo_original>
// kernel: yolop_head_forward.5
$region0: #{yolop_head_forward.5}
  #allocation0 [shape = 'u32[]', space=smem, size = 0x4, offset = 0x4, fixed_abs, tag = 'smem constant byte address 0x4 - core index']
  #allocation1 [shape = 'u32[144,128]{1,0:T(1,128)}', space=vmem, size = 0x12000, scoped, tag = 'internal scratch']
  %s0 = inlined_call_operand.vmem [shape: bf16[32,8], index: 0, kind: input, shape index: {}]
  %s1 = inlined_call_operand.vmem [shape: bf16[8,128], index: 1, kind: input, shape index: {}]
  %s2 = inlined_call_operand.vmem [shape: bf16[32,128], index: 2, kind: output, shape index: {0}]
  %s3 = inlined_call_operand.vmem [shape: f32[1,2,128], index: 3, kind: output, shape index: {1}]
  %4 = xla_tuple %s2, %s3
  %s5 = sld [smem:[#allocation0]]
  $region26: #{yolop_head_forward.5} parent=0
    _
  %s7 = ssub.s32 1, %s5
  %s8 = scalar_select 0, %s7, %s5
  // Predicated region
  $region2: #{yolop_head_forward.5} parent=0 // pred_check
    _
  $region3: #{yolop_head_forward.5} parent=0 // pred_check_branch
    %10 = sbr.rel (0) target = $region5
  $region4: #{yolop_head_forward.5} parent=0 // pred_region
    _
  $region5: #{yolop_head_forward.5} parent=0 // pred_fallthru
    _
  // Predicated region
  $region6: #{yolop_head_forward.5} parent=0 // pred_check
    _
  $region7: #{yolop_head_forward.5} parent=0 // pred_check_branch
    %12 = sbr.rel (0) target = $region9
  $region8: #{yolop_head_forward.5} parent=0 // pred_region
    _
  $region9: #{yolop_head_forward.5} parent=0 // pred_fallthru
    _
  %v14 = vld [vmem:[%s0] sm:$0xf]
  %v15 = vld [vmem:[%s0 + $0x4] sm:$0xf]
  %v16 = vld [vmem:[%s0 + $0x8] sm:$0xf]
  %v17 = vld [vmem:[%s0 + $0xc] sm:$0xf]
  %v18 = vld [vmem:[%s1] sm:$0xf]
  %v23 = vunpack.c.l.b16 %v14
  %v24 = vunpack.c.l.b16 %v15
  %v25 = vunpack.c.l.b16 %v16
  %v26 = vunpack.c.l.b16 %v17
  %v27 = vpack.c.b16 %v24, %v23
  %v28 = vpack.c.b16 %v26, %v25
  %vm29 = vcmask 64512
  %v31 = vsel %vm29, %v27, 0
  %v34 = vsel %vm29, %v28, 0
  %vm36 = vcmask 1043456
  %v38 = vsel %vm36, %v18, 0
  %40 = vmatprep.subr.bf16.mxu0 0
  %41 = vmatpush1.bf16.msra.mxu0 %v38
  %42 = vmatprep.subr.bf16.mxu0 0
  %43 = vmatpush1.bf16.msra.mxu0 0
  %44 = vmatprep.subr.bf16.mxu0 0
  %45 = vmatpush1.bf16.msra.mxu0 0
  %46 = vmatprep.subr.bf16.mxu0 0
  %47 = vmatpush1.bf16.msra.mxu0 0
  %48 = vmatprep.subr.bf16.mxu0 0
  %49 = vmatpush1.bf16.msra.mxu0 0
  %50 = vmatprep.subr.bf16.mxu0 0
  %51 = vmatpush1.bf16.msra.mxu0 0
  %52 = vmatprep.subr.bf16.mxu0 0
  %53 = vmatpush1.bf16.msra.mxu0 0
  %54 = vmatprep.subr.bf16.mxu0 0
  %55 = vmatpush1.bf16.msra.mxu0 0
  %56 = vmatprep.subr.bf16.mxu0 0
  %57 = vmatpush1.bf16.msra.mxu0 0
  %58 = vmatprep.subr.bf16.mxu0 0
  %59 = vmatpush1.bf16.msra.mxu0 0
  %60 = vmatprep.subr.bf16.mxu0 0
  %61 = vmatpush1.bf16.msra.mxu0 0
  %62 = vmatprep.subr.bf16.mxu0 0
  %63 = vmatpush1.bf16.msra.mxu0 0
  %64 = vmatprep.subr.bf16.mxu0 0
  %65 = vmatpush1.bf16.msra.mxu0 0
  %66 = vmatprep.subr.bf16.mxu0 0
  %67 = vmatpush1.bf16.msra.mxu0 0
  %68 = vmatprep.subr.bf16.mxu0 0
  %69 = vmatpush1.bf16.msra.mxu0 0
  %70 = vmatprep.subr.bf16.mxu0 0
  %71 = vmatpush1.bf16.msra.mxu0 0
  %72 = vmatprep.mubr.bf16.mxu0 0
  %73 = vmatmul.mubr.bf16.gmra.mrb[0].mxu0 %v31
  %v74 = vpop.f32.mrb[0].mxu0
  %v75 = vadd.f32 0.0, %v74
  %v76 = vpop.f32.mrb[0].mxu0
  %v77 = vpop.f32.mrb[0].mxu0
  %v78 = vadd.f32 0.0, %v77
  %v79 = vpop.f32.mrb[0].mxu0
  %80 = vmatprep.mubr.bf16.mxu0 0
  %81 = vmatmul.mubr.bf16.gmra.mrb[0].mxu0 %v34
  %v82 = vpop.f32.mrb[0].mxu0
  %v83 = vadd.f32 0.0, %v82
  %v84 = vpop.f32.mrb[0].mxu0
  %v85 = vpop.f32.mrb[0].mxu0
  %v86 = vadd.f32 0.0, %v85
  %v87 = vpop.f32.mrb[0].mxu0
  %88 = vdwg.mxu0
  %v89 = vpack.c.bf16 %v78, %v75
  %v90 = vpack.c.bf16 %v86, %v83
  %v93 = vunpack.c.l.b16 %v89
  %v94 = vunpack.c.h.b16 %v89
  %v95 = vunpack.c.l.b16 %v90
  %v96 = vunpack.c.h.b16 %v90
  %v97 = vpack.c.b16 %v93, %v93
  %v98 = vpack.c.b16 %v94, %v94
  %v99 = vpack.c.b16 %v95, %v95
  %v100 = vpack.c.b16 %v96, %v96
  %105 = vst [vmem:[%s2] sm:$0xf] %v97
  %106 = vst [vmem:[%s2 + $0x4] sm:$0xf] %v98
  %107 = vst [vmem:[%s2 + $0x8] sm:$0xf] %v99
  %108 = vst [vmem:[%s2 + $0xc] sm:$0xf] %v100
  %v109 = vadd.f32 %v75, %v78
  %v110 = vadd.f32 %v109, %v83
  %v111 = vadd.f32 %v110, %v86
  %v112 = vrot.slane %v111, 4
  %v113 = vadd.f32 %v111, %v112
  %v114 = vrot.slane %v113, 2
  %v115 = vadd.f32 %v113, %v114
  %v116 = vrot.slane %v115, 1
  %v117 = vadd.f32 %v115, %v116
  %118 = vst [vmem:[%s3] sm:$0x1] %v117
  %v119 = vmul.f32 %v75, %v75
  %v120 = vmul.f32 %v78, %v78
  %v121 = vmul.f32 %v83, %v83
  %v122 = vmul.f32 %v86, %v86
  %v123 = vadd.f32 %v119, %v120
  %v124 = vadd.f32 %v123, %v121
  %v125 = vadd.f32 %v124, %v122
  %v126 = vrot.slane %v125, 4
  %v127 = vadd.f32 %v125, %v126
  %v128 = vrot.slane %v127, 2
  %v129 = vadd.f32 %v127, %v128
  %v130 = vrot.slane %v129, 1
  %v131 = vadd.f32 %v129, %v130
  %132 = vst [vmem:[%s3 + $0x1] sm:$0x1] %v131
  // Predicated region
  $region10: #{yolop_head_forward.5} parent=0 // pred_check
    _
  $region11: #{yolop_head_forward.5} parent=0 // pred_check_branch
    %134 = sbr.rel (0) target = $region13
  $region12: #{yolop_head_forward.5} parent=0 // pred_region
    _
  $region13: #{yolop_head_forward.5} parent=0 // pred_fallthru
    _
  // Predicated region
  $region14: #{yolop_head_forward.5} parent=0 // pred_check
    _
  $region15: #{yolop_head_forward.5} parent=0 // pred_check_branch
    %136 = sbr.rel (0) target = $region17
  $region16: #{yolop_head_forward.5} parent=0 // pred_region
    _
  $region17: #{yolop_head_forward.5} parent=0 // pred_fallthru
    _
  // Predicated region
  $region18: #{yolop_head_forward.5} parent=0 // pred_check
    _
  $region19: #{yolop_head_forward.5} parent=0 // pred_check_branch
    %138 = sbr.rel (0) target = $region21
  $region20: #{yolop_head_forward.5} parent=0 // pred_region
    _
  $region21: #{yolop_head_forward.5} parent=0 // pred_fallthru
    _
  // Predicated region
  $region22: #{yolop_head_forward.5} parent=0 // pred_check
    _
  $region23: #{yolop_head_forward.5} parent=0 // pred_check_branch
    %140 = sbr.rel (0) target = $region25
  $region24: #{yolop_head_forward.5} parent=0 // pred_region
    _
  $region25: #{yolop_head_forward.5} parent=0 // pred_fallthru
    _

// kernel: yolop_head_forward.8
$region0: #{yolop_head_forward.8}
  #allocation0 [shape = 'u32[]', space=smem, size = 0x4, offset = 0x4, fixed_abs, tag = 'smem constant byte address 0x4 - core index']
  #allocation1 [shape = 'u32[144,128]{1,0:T(1,128)}', space=vmem, size = 0x12000, scoped, tag = 'internal scratch']
  %s0 = inlined_call_operand.vmem [shape: bf16[160,128], index: 0, kind: input, shape index: {}]
  %s1 = inlined_call_operand.vmem [shape: f32[1,128], index: 1, kind: input, shape index: {}]
  %s2 = inlined_call_operand.vmem [shape: f32[1,128], index: 2, kind: input, shape index: {}]
  %s3 = inlined_call_operand.vmem [shape: bf16[128,256], index: 3, kind: input, shape index: {}]
  %s4 = inlined_call_operand.vmem [shape: f32[1,256], index: 4, kind: input, shape index: {}]
  %s5 = inlined_call_operand.vmem [shape: bf16[160,256], index: 5, kind: output, shape index: {}]
  %s6 = sld [smem:[#allocation0]]
  $region30: #{yolop_head_forward.8} parent=0
    _
  %s8 = ssub.s32 1, %s6
  %s9 = scalar_select 0, %s8, %s6
  // Predicated region
  $region2: #{yolop_head_forward.8} parent=0 // pred_check
    _
  $region3: #{yolop_head_forward.8} parent=0 // pred_check_branch
    %11 = sbr.rel (0) target = $region5
  $region4: #{yolop_head_forward.8} parent=0 // pred_region
    _
  $region5: #{yolop_head_forward.8} parent=0 // pred_fallthru
    _
  // Predicated region
  $region6: #{yolop_head_forward.8} parent=0 // pred_check
    _
  $region7: #{yolop_head_forward.8} parent=0 // pred_check_branch
    %13 = sbr.rel (0) target = $region9
  $region8: #{yolop_head_forward.8} parent=0 // pred_region
    _
  $region9: #{yolop_head_forward.8} parent=0 // pred_fallthru
    _
  // Predicated region
  $region10: #{yolop_head_forward.8} parent=0 // pred_check
    _
  $region11: #{yolop_head_forward.8} parent=0 // pred_check_branch
    %15 = sbr.rel (0) target = $region13
  $region12: #{yolop_head_forward.8} parent=0 // pred_region
    _
  $region13: #{yolop_head_forward.8} parent=0 // pred_fallthru
    _
  // Predicated region
  $region14: #{yolop_head_forward.8} parent=0 // pred_check
    _
  $region15: #{yolop_head_forward.8} parent=0 // pred_check_branch
    %17 = sbr.rel (0) target = $region17
  $region16: #{yolop_head_forward.8} parent=0 // pred_region
    _
  $region17: #{yolop_head_forward.8} parent=0 // pred_fallthru
    _
  // Predicated region
  $region18: #{yolop_head_forward.8} parent=0 // pred_check
    _
  $region19: #{yolop_head_forward.8} parent=0 // pred_check_branch
    %19 = sbr.rel (0) target = $region21
  $region20: #{yolop_head_forward.8} parent=0 // pred_region
    _
  $region21: #{yolop_head_forward.8} parent=0 // pred_fallthru
    _
  %v21 = vld [vmem:[%s0] sm:$0xf]
  %v22 = vld [vmem:[%s0 + $0x4] sm:$0xf]
  %v23 = vld [vmem:[%s0 + $0x8] sm:$0xf]
  %v24 = vld [vmem:[%s0 + $0xc] sm:$0xf]
  %v25 = vld [vmem:[%s0 + $0x10] sm:$0xf]
  %v26 = vld [vmem:[%s0 + $0x14] sm:$0xf]
  %v27 = vld [vmem:[%s0 + $0x18] sm:$0xf]
  %v28 = vld [vmem:[%s0 + $0x1c] sm:$0xf]
  %v29 = vld [vmem:[%s0 + $0x20] sm:$0xf]
  %v30 = vld [vmem:[%s0 + $0x24] sm:$0xf]
  %v31 = vld [vmem:[%s0 + $0x28] sm:$0xf]
  %v32 = vld [vmem:[%s0 + $0x2c] sm:$0xf]
  %v33 = vld [vmem:[%s0 + $0x30] sm:$0xf]
  %v34 = vld [vmem:[%s0 + $0x34] sm:$0xf]
  %v35 = vld [vmem:[%s0 + $0x38] sm:$0xf]
  %v36 = vld [vmem:[%s0 + $0x3c] sm:$0xf]
  %v37 = vld [vmem:[%s0 + $0x40] sm:$0xf]
  %v38 = vld [vmem:[%s0 + $0x44] sm:$0xf]
  %v39 = vld [vmem:[%s0 + $0x48] sm:$0xf]
  %v40 = vld [vmem:[%s0 + $0x4c] sm:$0xf]
  %v41 = vunpack.c.l.bf16 %v21
  %v42 = vunpack.c.l.bf16 %v22
  %v43 = vunpack.c.l.bf16 %v23
  %v44 = vunpack.c.l.bf16 %v24
  %v45 = vunpack.c.l.bf16 %v25
  %v46 = vunpack.c.l.bf16 %v26
  %v47 = vunpack.c.l.bf16 %v27
  %v48 = vunpack.c.l.bf16 %v28
  %v49 = vunpack.c.l.bf16 %v29
  %v50 = vunpack.c.l.bf16 %v30
  %v51 = vunpack.c.l.bf16 %v31
  %v52 = vunpack.c.l.bf16 %v32
  %v53 = vunpack.c.l.bf16 %v33
  %v54 = vunpack.c.l.bf16 %v34
  %v55 = vunpack.c.l.bf16 %v35
  %v56 = vunpack.c.l.bf16 %v36
  %v57 = vunpack.c.l.bf16 %v37
  %v58 = vunpack.c.l.bf16 %v38
  %v59 = vunpack.c.l.bf16 %v39
  %v60 = vunpack.c.l.bf16 %v40
  %v61 = vld [vmem:[%s1] sm:$0x1]
  %v63 = vlaneseq
  %v64 = vshrl.u32 %v63, 7
  %v65 = vsub.s32 0, %v64
  %v66 = vrot.slane %v61, %v65
  %v68 = vmul.f32 %v41, %v66
  %v69 = vmul.f32 %v42, %v66
  %v70 = vmul.f32 %v43, %v66
  %v71 = vmul.f32 %v44, %v66
  %v72 = vmul.f32 %v45, %v66
  %v73 = vmul.f32 %v46, %v66
  %v74 = vmul.f32 %v47, %v66
  %v75 = vmul.f32 %v48, %v66
  %v76 = vmul.f32 %v49, %v66
  %v77 = vmul.f32 %v50, %v66
  %v78 = vmul.f32 %v51, %v66
  %v79 = vmul.f32 %v52, %v66
  %v80 = vmul.f32 %v53, %v66
  %v81 = vmul.f32 %v54, %v66
  %v82 = vmul.f32 %v55, %v66
  %v83 = vmul.f32 %v56, %v66
  %v84 = vmul.f32 %v57, %v66
  %v85 = vmul.f32 %v58, %v66
  %v86 = vmul.f32 %v59, %v66
  %v87 = vmul.f32 %v60, %v66
  %v88 = vld [vmem:[%s2] sm:$0x1]
  %v90 = vlaneseq
  %v91 = vshrl.u32 %v90, 7
  %v92 = vsub.s32 0, %v91
  %v93 = vrot.slane %v88, %v92
  %v95 = vadd.f32 %v68, %v93
  %v96 = vadd.f32 %v69, %v93
  %v97 = vadd.f32 %v70, %v93
  %v98 = vadd.f32 %v71, %v93
  %v99 = vadd.f32 %v72, %v93
  %v100 = vadd.f32 %v73, %v93
  %v101 = vadd.f32 %v74, %v93
  %v102 = vadd.f32 %v75, %v93
  %v103 = vadd.f32 %v76, %v93
  %v104 = vadd.f32 %v77, %v93
  %v105 = vadd.f32 %v78, %v93
  %v106 = vadd.f32 %v79, %v93
  %v107 = vadd.f32 %v80, %v93
  %v108 = vadd.f32 %v81, %v93
  %v109 = vadd.f32 %v82, %v93
  %v110 = vadd.f32 %v83, %v93
  %v111 = vadd.f32 %v84, %v93
  %v112 = vadd.f32 %v85, %v93
  %v113 = vadd.f32 %v86, %v93
  %v114 = vadd.f32 %v87, %v93
  %vm115 = vcmp.gt.f32.partialorder %v95, 0.0
  %vm116 = vcmp.gt.f32.partialorder %v96, 0.0
  %vm117 = vcmp.gt.f32.partialorder %v97, 0.0
  %vm118 = vcmp.gt.f32.partialorder %v98, 0.0
  %vm119 = vcmp.gt.f32.partialorder %v99, 0.0
  %vm120 = vcmp.gt.f32.partialorder %v100, 0.0
  %vm121 = vcmp.gt.f32.partialorder %v101, 0.0
  %vm122 = vcmp.gt.f32.partialorder %v102, 0.0
  %vm123 = vcmp.gt.f32.partialorder %v103, 0.0
  %vm124 = vcmp.gt.f32.partialorder %v104, 0.0
  %vm125 = vcmp.gt.f32.partialorder %v105, 0.0
  %vm126 = vcmp.gt.f32.partialorder %v106, 0.0
  %vm127 = vcmp.gt.f32.partialorder %v107, 0.0
  %vm128 = vcmp.gt.f32.partialorder %v108, 0.0
  %vm129 = vcmp.gt.f32.partialorder %v109, 0.0
  %vm130 = vcmp.gt.f32.partialorder %v110, 0.0
  %vm131 = vcmp.gt.f32.partialorder %v111, 0.0
  %vm132 = vcmp.gt.f32.partialorder %v112, 0.0
  %vm133 = vcmp.gt.f32.partialorder %v113, 0.0
  %vm134 = vcmp.gt.f32.partialorder %v114, 0.0
  %v135 = vmul.f32 %v95, 0.1
  %v136 = vmul.f32 %v96, 0.1
  %v137 = vmul.f32 %v97, 0.1
  %v138 = vmul.f32 %v98, 0.1
  %v139 = vmul.f32 %v99, 0.1
  %v140 = vmul.f32 %v100, 0.1
  %v141 = vmul.f32 %v101, 0.1
  %v142 = vmul.f32 %v102, 0.1
  %v143 = vmul.f32 %v103, 0.1
  %v144 = vmul.f32 %v104, 0.1
  %v145 = vmul.f32 %v105, 0.1
  %v146 = vmul.f32 %v106, 0.1
  %v147 = vmul.f32 %v107, 0.1
  %v148 = vmul.f32 %v108, 0.1
  %v149 = vmul.f32 %v109, 0.1
  %v150 = vmul.f32 %v110, 0.1
  %v151 = vmul.f32 %v111, 0.1
  %v152 = vmul.f32 %v112, 0.1
  %v153 = vmul.f32 %v113, 0.1
  %v154 = vmul.f32 %v114, 0.1
  %v155 = vsel %vm115, %v95, %v135
  %v156 = vsel %vm116, %v96, %v136
  %v157 = vsel %vm117, %v97, %v137
  %v158 = vsel %vm118, %v98, %v138
  %v159 = vsel %vm119, %v99, %v139
  %v160 = vsel %vm120, %v100, %v140
  %v161 = vsel %vm121, %v101, %v141
  %v162 = vsel %vm122, %v102, %v142
  %v163 = vsel %vm123, %v103, %v143
  %v164 = vsel %vm124, %v104, %v144
  %v165 = vsel %vm125, %v105, %v145
  %v166 = vsel %vm126, %v106, %v146
  %v167 = vsel %vm127, %v107, %v147
  %v168 = vsel %vm128, %v108, %v148
  %v169 = vsel %vm129, %v109, %v149
  %v170 = vsel %vm130, %v110, %v150
  %v171 = vsel %vm131, %v111, %v151
  %v172 = vsel %vm132, %v112, %v152
  %v173 = vsel %vm133, %v113, %v153
  %v174 = vsel %vm134, %v114, %v154
  %v175 = vpack.c.bf16 %v156, %v155
  %v176 = vpack.c.bf16 %v158, %v157
  %v177 = vpack.c.bf16 %v160, %v159
  %v178 = vpack.c.bf16 %v162, %v161
  %v179 = vpack.c.bf16 %v164, %v163
  %v180 = vpack.c.bf16 %v166, %v165
  %v181 = vpack.c.bf16 %v168, %v167
  %v182 = vpack.c.bf16 %v170, %v169
  %v183 = vpack.c.bf16 %v172, %v171
  %v184 = vpack.c.bf16 %v174, %v173
  %v185 = vld [vmem:[%s3] sm:$0xff]
  %v186 = vld [vmem:[%s3 + $0x8] sm:$0xff]
  %v187 = vld [vmem:[%s3 + $0x10] sm:$0xff]
  %v188 = vld [vmem:[%s3 + $0x18] sm:$0xff]
  %v189 = vld [vmem:[%s3 + $0x20] sm:$0xff]
  %v190 = vld [vmem:[%s3 + $0x28] sm:$0xff]
  %v191 = vld [vmem:[%s3 + $0x30] sm:$0xff]
  %v192 = vld [vmem:[%s3 + $0x38] sm:$0xff]
  %v193 = vld [vmem:[%s3 + $0x40] sm:$0xff]
  %v194 = vld [vmem:[%s3 + $0x48] sm:$0xff]
  %v195 = vld [vmem:[%s3 + $0x50] sm:$0xff]
  %v196 = vld [vmem:[%s3 + $0x58] sm:$0xff]
  %v197 = vld [vmem:[%s3 + $0x60] sm:$0xff]
  %v198 = vld [vmem:[%s3 + $0x68] sm:$0xff]
  %v199 = vld [vmem:[%s3 + $0x70] sm:$0xff]
  %v200 = vld [vmem:[%s3 + $0x78] sm:$0xff]
  %v201 = vld [vmem:[%s4] sm:$0x3]
  %v203 = vlaneseq
  %v204 = vshrl.u32 %v203, 7
  %v205 = vsub.s32 0, %v204
  %v206 = vrot.slane %v201, %v205
  %v207 = vlaneseq
  %v208 = vshrl.u32 %v207, 7
  %v209 = vsub.s32 1, %v208
  %v210 = vrot.slane %v201, %v209
  %v229 = vunpack.c.l.b16 %v185
  %v230 = vunpack.c.h.b16 %v185
  %v231 = vunpack.c.l.b16 %v186
  %v232 = vunpack.c.h.b16 %v186
  %v233 = vunpack.c.l.b16 %v187
  %v234 = vunpack.c.h.b16 %v187
  %v235 = vunpack.c.l.b16 %v188
  %v236 = vunpack.c.h.b16 %v188
  %v237 = vunpack.c.l.b16 %v189
  %v238 = vunpack.c.h.b16 %v189
  %v239 = vunpack.c.l.b16 %v190
  %v240 = vunpack.c.h.b16 %v190
  %v241 = vunpack.c.l.b16 %v191
  %v242 = vunpack.c.h.b16 %v191
  %v243 = vunpack.c.l.b16 %v192
  %v244 = vunpack.c.h.b16 %v192
  %v245 = vunpack.c.l.b16 %v193
  %v246 = vunpack.c.h.b16 %v193
  %v247 = vunpack.c.l.b16 %v194
  %v248 = vunpack.c.h.b16 %v194
  %v249 = vunpack.c.l.b16 %v195
  %v250 = vunpack.c.h.b16 %v195
  %v251 = vunpack.c.l.b16 %v196
  %v252 = vunpack.c.h.b16 %v196
  %v253 = vunpack.c.l.b16 %v197
  %v254 = vunpack.c.h.b16 %v197
  %v255 = vunpack.c.l.b16 %v198
  %v256 = vunpack.c.h.b16 %v198
  %v257 = vunpack.c.l.b16 %v199
  %v258 = vunpack.c.h.b16 %v199
  %v259 = vunpack.c.l.b16 %v200
  %v260 = vunpack.c.h.b16 %v200
  %v261 = vpack.c.b16 %v231, %v229
  %v262 = vpack.c.b16 %v232, %v230
  %v263 = vpack.c.b16 %v235, %v233
  %v264 = vpack.c.b16 %v236, %v234
  %v265 = vpack.c.b16 %v239, %v237
  %v266 = vpack.c.b16 %v240, %v238
  %v267 = vpack.c.b16 %v243, %v241
  %v268 = vpack.c.b16 %v244, %v242
  %v269 = vpack.c.b16 %v247, %v245
  %v270 = vpack.c.b16 %v248, %v246
  %v271 = vpack.c.b16 %v251, %v249
  %v272 = vpack.c.b16 %v252, %v250
  %v273 = vpack.c.b16 %v255, %v253
  %v274 = vpack.c.b16 %v256, %v254
  %v275 = vpack.c.b16 %v259, %v257
  %v276 = vpack.c.b16 %v260, %v258
  %293 = vmatprep.subr.bf16.mxu0 %v262
  %294 = vmatpush1.bf16.msra.mxu0 %v261
  %295 = vmatprep.subr.bf16.mxu0 %v264
  %296 = vmatpush1.bf16.msra.mxu0 %v263
  %297 = vmatprep.subr.bf16.mxu0 %v266
  %298 = vmatpush1.bf16.msra.mxu0 %v265
  %299 = vmatprep.subr.bf16.mxu0 %v268
  %300 = vmatpush1.bf16.msra.mxu0 %v267
  %301 = vmatprep.subr.bf16.mxu0 %v270
  %302 = vmatpush1.bf16.msra.mxu0 %v269
  %303 = vmatprep.subr.bf16.mxu0 %v272
  %304 = vmatpush1.bf16.msra.mxu0 %v271
  %305 = vmatprep.subr.bf16.mxu0 %v274
  %306 = vmatpush1.bf16.msra.mxu0 %v273
  %307 = vmatprep.subr.bf16.mxu0 %v276
  %308 = vmatpush1.bf16.msra.mxu0 %v275
  %309 = vmatprep.subr.bf16.mxu0 0
  %310 = vmatpush1.bf16.msra.mxu0 0
  %311 = vmatprep.subr.bf16.mxu0 0
  %312 = vmatpush1.bf16.msra.mxu0 0
  %313 = vmatprep.subr.bf16.mxu0 0
  %314 = vmatpush1.bf16.msra.mxu0 0
  %315 = vmatprep.subr.bf16.mxu0 0
  %316 = vmatpush1.bf16.msra.mxu0 0
  %317 = vmatprep.subr.bf16.mxu0 0
  %318 = vmatpush1.bf16.msra.mxu0 0
  %319 = vmatprep.subr.bf16.mxu0 0
  %320 = vmatpush1.bf16.msra.mxu0 0
  %321 = vmatprep.subr.bf16.mxu0 0
  %322 = vmatpush1.bf16.msra.mxu0 0
  %323 = vmatprep.subr.bf16.mxu0 0
  %324 = vmatpush1.bf16.msra.mxu0 0
  %325 = vmatprep.mubr.bf16.mxu0 0
  %326 = vmatmul.mubr.bf16.gmra.mrb[0].mxu0 %v175
  %v327 = vpop.f32.mrb[0].mxu0
  %v328 = vadd.f32 %v206, %v327
  %v329 = vpop.f32.mrb[0].mxu0
  %v330 = vadd.f32 %v210, %v329
  %v331 = vpop.f32.mrb[0].mxu0
  %v332 = vadd.f32 %v206, %v331
  %v333 = vpop.f32.mrb[0].mxu0
  %v334 = vadd.f32 %v210, %v333
  %335 = vmatprep.mubr.bf16.mxu0 0
  %336 = vmatmul.mubr.bf16.gmra.mrb[0].mxu0 %v176
  %v337 = vpop.f32.mrb[0].mxu0
  %v338 = vadd.f32 %v206, %v337
  %v339 = vpop.f32.mrb[0].mxu0
  %v340 = vadd.f32 %v210, %v339
  %v341 = vpop.f32.mrb[0].mxu0
  %v342 = vadd.f32 %v206, %v341
  %v343 = vpop.f32.mrb[0].mxu0
  %v344 = vadd.f32 %v210, %v343
  %345 = vmatprep.mubr.bf16.mxu0 0
  %346 = vmatmul.mubr.bf16.gmra.mrb[0].mxu0 %v177
  %v347 = vpop.f32.mrb[0].mxu0
  %v348 = vadd.f32 %v206, %v347
  %v349 = vpop.f32.mrb[0].mxu0
  %v350 = vadd.f32 %v210, %v349
  %v351 = vpop.f32.mrb[0].mxu0
  %v352 = vadd.f32 %v206, %v351
  %v353 = vpop.f32.mrb[0].mxu0
  %v354 = vadd.f32 %v210, %v353
  %355 = vmatprep.mubr.bf16.mxu0 0
  %356 = vmatmul.mubr.bf16.gmra.mrb[0].mxu0 %v178
  %v357 = vpop.f32.mrb[0].mxu0
  %v358 = vadd.f32 %v206, %v357
  %v359 = vpop.f32.mrb[0].mxu0
  %v360 = vadd.f32 %v210, %v359
  %v361 = vpop.f32.mrb[0].mxu0
  %v362 = vadd.f32 %v206, %v361
  %v363 = vpop.f32.mrb[0].mxu0
  %v364 = vadd.f32 %v210, %v363
  %365 = vmatprep.mubr.bf16.mxu0 0
  %366 = vmatmul.mubr.bf16.gmra.mrb[0].mxu0 %v179
  %v367 = vpop.f32.mrb[0].mxu0
  %v368 = vadd.f32 %v206, %v367
  %v369 = vpop.f32.mrb[0].mxu0
  %v370 = vadd.f32 %v210, %v369
  %v371 = vpop.f32.mrb[0].mxu0
  %v372 = vadd.f32 %v206, %v371
  %v373 = vpop.f32.mrb[0].mxu0
  %v374 = vadd.f32 %v210, %v373
  %375 = vmatprep.mubr.bf16.mxu0 0
  %376 = vmatmul.mubr.bf16.gmra.mrb[0].mxu0 %v180
  %v377 = vpop.f32.mrb[0].mxu0
  %v378 = vadd.f32 %v206, %v377
  %v379 = vpop.f32.mrb[0].mxu0
  %v380 = vadd.f32 %v210, %v379
  %v381 = vpop.f32.mrb[0].mxu0
  %v382 = vadd.f32 %v206, %v381
  %v383 = vpop.f32.mrb[0].mxu0
  %v384 = vadd.f32 %v210, %v383
  %385 = vmatprep.mubr.bf16.mxu0 0
  %386 = vmatmul.mubr.bf16.gmra.mrb[0].mxu0 %v181
  %v387 = vpop.f32.mrb[0].mxu0
  %v388 = vadd.f32 %v206, %v387
  %v389 = vpop.f32.mrb[0].mxu0
  %v390 = vadd.f32 %v210, %v389
  %v391 = vpop.f32.mrb[0].mxu0
  %v392 = vadd.f32 %v206, %v391
  %v393 = vpop.f32.mrb[0].mxu0
  %v394 = vadd.f32 %v210, %v393
  %395 = vmatprep.mubr.bf16.mxu0 0
  %396 = vmatmul.mubr.bf16.gmra.mrb[0].mxu0 %v182
  %v397 = vpop.f32.mrb[0].mxu0
  %v398 = vadd.f32 %v206, %v397
  %v399 = vpop.f32.mrb[0].mxu0
  %v400 = vadd.f32 %v210, %v399
  %v401 = vpop.f32.mrb[0].mxu0
  %v402 = vadd.f32 %v206, %v401
  %v403 = vpop.f32.mrb[0].mxu0
  %v404 = vadd.f32 %v210, %v403
  %405 = vmatprep.mubr.bf16.mxu0 0
  %406 = vmatmul.mubr.bf16.gmra.mrb[0].mxu0 %v183
  %v407 = vpop.f32.mrb[0].mxu0
  %v408 = vadd.f32 %v206, %v407
  %v409 = vpop.f32.mrb[0].mxu0
  %v410 = vadd.f32 %v210, %v409
  %v411 = vpop.f32.mrb[0].mxu0
  %v412 = vadd.f32 %v206, %v411
  %v413 = vpop.f32.mrb[0].mxu0
  %v414 = vadd.f32 %v210, %v413
  %415 = vmatprep.mubr.bf16.mxu0 0
  %416 = vmatmul.mubr.bf16.gmra.mrb[0].mxu0 %v184
  %v417 = vpop.f32.mrb[0].mxu0
  %v418 = vadd.f32 %v206, %v417
  %v419 = vpop.f32.mrb[0].mxu0
  %v420 = vadd.f32 %v210, %v419
  %v421 = vpop.f32.mrb[0].mxu0
  %v422 = vadd.f32 %v206, %v421
  %v423 = vpop.f32.mrb[0].mxu0
  %v424 = vadd.f32 %v210, %v423
  %425 = vdwg.mxu0
  %v426 = vpack.c.bf16 %v332, %v328
  %v427 = vpack.c.bf16 %v334, %v330
  %v428 = vpack.c.bf16 %v342, %v338
  %v429 = vpack.c.bf16 %v344, %v340
  %v430 = vpack.c.bf16 %v352, %v348
  %v431 = vpack.c.bf16 %v354, %v350
  %v432 = vpack.c.bf16 %v362, %v358
  %v433 = vpack.c.bf16 %v364, %v360
  %v434 = vpack.c.bf16 %v372, %v368
  %v435 = vpack.c.bf16 %v374, %v370
  %v436 = vpack.c.bf16 %v382, %v378
  %v437 = vpack.c.bf16 %v384, %v380
  %v438 = vpack.c.bf16 %v392, %v388
  %v439 = vpack.c.bf16 %v394, %v390
  %v440 = vpack.c.bf16 %v402, %v398
  %v441 = vpack.c.bf16 %v404, %v400
  %v442 = vpack.c.bf16 %v412, %v408
  %v443 = vpack.c.bf16 %v414, %v410
  %v444 = vpack.c.bf16 %v422, %v418
  %v445 = vpack.c.bf16 %v424, %v420
  %v466 = vunpack.c.l.b16 %v426
  %v467 = vunpack.c.l.b16 %v427
  %v468 = vunpack.c.h.b16 %v426
  %v469 = vunpack.c.h.b16 %v427
  %v470 = vunpack.c.l.b16 %v428
  %v471 = vunpack.c.l.b16 %v429
  %v472 = vunpack.c.h.b16 %v428
  %v473 = vunpack.c.h.b16 %v429
  %v474 = vunpack.c.l.b16 %v430
  %v475 = vunpack.c.l.b16 %v431
  %v476 = vunpack.c.h.b16 %v430
  %v477 = vunpack.c.h.b16 %v431
  %v478 = vunpack.c.l.b16 %v432
  %v479 = vunpack.c.l.b16 %v433
  %v480 = vunpack.c.h.b16 %v432
  %v481 = vunpack.c.h.b16 %v433
  %v482 = vunpack.c.l.b16 %v434
  %v483 = vunpack.c.l.b16 %v435
  %v484 = vunpack.c.h.b16 %v434
  %v485 = vunpack.c.h.b16 %v435
  %v486 = vunpack.c.l.b16 %v436
  %v487 = vunpack.c.l.b16 %v437
  %v488 = vunpack.c.h.b16 %v436
  %v489 = vunpack.c.h.b16 %v437
  %v490 = vunpack.c.l.b16 %v438
  %v491 = vunpack.c.l.b16 %v439
  %v492 = vunpack.c.h.b16 %v438
  %v493 = vunpack.c.h.b16 %v439
  %v494 = vunpack.c.l.b16 %v440
  %v495 = vunpack.c.l.b16 %v441
  %v496 = vunpack.c.h.b16 %v440
  %v497 = vunpack.c.h.b16 %v441
  %v498 = vunpack.c.l.b16 %v442
  %v499 = vunpack.c.l.b16 %v443
  %v500 = vunpack.c.h.b16 %v442
  %v501 = vunpack.c.h.b16 %v443
  %v502 = vunpack.c.l.b16 %v444
  %v503 = vunpack.c.l.b16 %v445
  %v504 = vunpack.c.h.b16 %v444
  %v505 = vunpack.c.h.b16 %v445
  %v506 = vpack.c.b16 %v467, %v466
  %v507 = vpack.c.b16 %v469, %v468
  %v508 = vpack.c.b16 %v471, %v470
  %v509 = vpack.c.b16 %v473, %v472
  %v510 = vpack.c.b16 %v475, %v474
  %v511 = vpack.c.b16 %v477, %v476
  %v512 = vpack.c.b16 %v479, %v478
  %v513 = vpack.c.b16 %v481, %v480
  %v514 = vpack.c.b16 %v483, %v482
  %v515 = vpack.c.b16 %v485, %v484
  %v516 = vpack.c.b16 %v487, %v486
  %v517 = vpack.c.b16 %v489, %v488
  %v518 = vpack.c.b16 %v491, %v490
  %v519 = vpack.c.b16 %v493, %v492
  %v520 = vpack.c.b16 %v495, %v494
  %v521 = vpack.c.b16 %v497, %v496
  %v522 = vpack.c.b16 %v499, %v498
  %v523 = vpack.c.b16 %v501, %v500
  %v524 = vpack.c.b16 %v503, %v502
  %v525 = vpack.c.b16 %v505, %v504
  %546 = vst [vmem:[%s5] sm:$0xff] %v506
  %547 = vst [vmem:[%s5 + $0x8] sm:$0xff] %v507
  %548 = vst [vmem:[%s5 + $0x10] sm:$0xff] %v508
  %549 = vst [vmem:[%s5 + $0x18] sm:$0xff] %v509
  %550 = vst [vmem:[%s5 + $0x20] sm:$0xff] %v510
  %551 = vst [vmem:[%s5 + $0x28] sm:$0xff] %v511
  %552 = vst [vmem:[%s5 + $0x30] sm:$0xff] %v512
  %553 = vst [vmem:[%s5 + $0x38] sm:$0xff] %v513
  %554 = vst [vmem:[%s5 + $0x40] sm:$0xff] %v514
  %555 = vst [vmem:[%s5 + $0x48] sm:$0xff] %v515
  %556 = vst [vmem:[%s5 + $0x50] sm:$0xff] %v516
  %557 = vst [vmem:[%s5 + $0x58] sm:$0xff] %v517
  %558 = vst [vmem:[%s5 + $0x60] sm:$0xff] %v518
  %559 = vst [vmem:[%s5 + $0x68] sm:$0xff] %v519
  %560 = vst [vmem:[%s5 + $0x70] sm:$0xff] %v520
  %561 = vst [vmem:[%s5 + $0x78] sm:$0xff] %v521
  %562 = vst [vmem:[%s5 + $0x80] sm:$0xff] %v522
  %563 = vst [vmem:[%s5 + $0x88] sm:$0xff] %v523
  %564 = vst [vmem:[%s5 + $0x90] sm:$0xff] %v524
  %565 = vst [vmem:[%s5 + $0x98] sm:$0xff] %v525
  // Predicated region
  $region22: #{yolop_head_forward.8} parent=0 // pred_check
    _
  $region23: #{yolop_head_forward.8} parent=0 // pred_check_branch
    %567 = sbr.rel (0) target = $region25
  $region24: #{yolop_head_forward.8} parent=0 // pred_region
    _
  $region25: #{yolop_head_forward.8} parent=0 // pred_fallthru
    _
  // Predicated region
  $region26: #{yolop_head_forward.8} parent=0 // pred_check
    _
  $region27: #{yolop_head_forward.8} parent=0 // pred_check_branch
    %569 = sbr.rel (0) target = $region29
  $region28: #{yolop_head_forward.8} parent=0 // pred_region
    _
  $region29: #{yolop_head_forward.8} parent=0 // pred_fallthru
    _

// kernel: yolop_head_forward.7
$region0: #{yolop_head_forward.7}
  #allocation0 [shape = 'u32[]', space=smem, size = 0x4, offset = 0x4, fixed_abs, tag = 'smem constant byte address 0x4 - core index']
  #allocation1 [shape = 'u32[144,128]{1,0:T(1,128)}', space=vmem, size = 0x12000, scoped, tag = 'internal scratch']
  %s0 = inlined_call_operand.vmem [shape: bf16[2,110,8], index: 0, kind: input, shape index: {}]
  %s1 = inlined_call_operand.vmem [shape: f32[80,1], index: 1, kind: input, shape index: {}]
  %s2 = inlined_call_operand.vmem [shape: bf16[9,8,128], index: 2, kind: input, shape index: {}]
  %s3 = inlined_call_operand.vmem [shape: bf16[2,80,128], index: 3, kind: output, shape index: {0}]
  %s4 = inlined_call_operand.vmem [shape: f32[2,2,128], index: 4, kind: output, shape index: {1}]
  %5 = xla_tuple %s3, %s4
  %s6 = sld [smem:[#allocation0]]
  $region53: #{yolop_head_forward.7} parent=0
    _
  %s8 = ssub.s32 1, %s6
  %s9 = scalar_select 0, %s8, %s6
  loop: start=0, step=1, limit=4
  $region2: #{yolop_head_forward.7} parent=0 // loop_pre_header
    _
  $region3: #{yolop_head_forward.7} parent=0 // loop_header
    %s11 = sphi 0, %s15
    %p12 = scmp.ge.s32.totalorder %s11, 4
    %s21 = sphi 0, %s23
    %s24 = sphi 0, %s21
    %s25 = sphi 0, %s24
    %s41 = sphi 0, %s25
    %s45 = sphi 0, %s45
    %s47 = sphi 0, %s45
    %s48 = sphi 0, %s47
    %s62 = sphi 0, %s48
    %s66 = sphi 0, %s66
    %s68 = sphi 0, %s66
    %s69 = sphi 0, %s68
    %s83 = sphi 0, %s69
    %s89 = sphi 0, %s91
    %s92 = sphi 0, %s89
    %s93 = sphi 0, %s92
    %s109 = sphi 0, %s93
    %s115 = sphi 0, %s117
    %s118 = sphi 0, %s115
    %s119 = sphi 0, %s118
    %s135 = sphi 0, %s119
  $region4: #{yolop_head_forward.7} parent=0 // loop_header_branch
    %14 = sbr.rel (%p12) target = $region8
  $region5: #{yolop_head_forward.7} parent=0 // loop_body
    %s16 = ssub.s32 %s11, 1
    %s17 = ssub.s32 %s11, 2
    %s18 = sadd.s32 %s11, 1
    %s19 = ssub.s32 %s11, %s18
    %p20 = scmp.eq.s32.totalorder %s19, 0
    %s22 = sadd.s32 %s21, 1
    %s23 = scalar_select %p20, %s21, %s22
    %p26 = pneg %p20
    %p27 = scmp.eq.s32.totalorder %s11, 1
    %p28 = por %p26, %p27
    %p29 = scmp.ne.s32.totalorder %s21, %s24
    %p30 = scmp.eq.s32.totalorder %s11, 0
    %p31 = por %p29, %p30
    %p32 = scmp.ne.s32.totalorder %s21, %s24
    %p33 = scmp.eq.s32.totalorder %s16, 1
    %p34 = por %p32, %p33
    %p35 = scmp.ne.s32.totalorder %s24, %s25
    %p36 = scmp.eq.s32.totalorder %s16, 0
    %p37 = por %p35, %p36
    %p38 = scmp.ne.s32.totalorder %s24, %s25
    %p39 = scmp.eq.s32.totalorder %s17, 1
    %p40 = por %p38, %p39
    %p42 = scmp.ne.s32.totalorder %s25, %s41
    %p43 = scmp.eq.s32.totalorder %s17, 0
    %p44 = por %p42, %p43
    %s46 = sadd.s32 %s45, 1
    %p49 = scmp.eq.s32.totalorder %s11, 1
    %p50 = scmp.ne.s32.totalorder %s45, %s47
    %p51 = scmp.eq.s32.totalorder %s11, 0
    %p52 = por %p50, %p51
    %p53 = scmp.ne.s32.totalorder %s45, %s47
    %p54 = scmp.eq.s32.totalorder %s16, 1
    %p55 = por %p53, %p54
    %p56 = scmp.ne.s32.totalorder %s47, %s48
    %p57 = scmp.eq.s32.totalorder %s16, 0
    %p58 = por %p56, %p57
    %p59 = scmp.ne.s32.totalorder %s47, %s48
    %p60 = scmp.eq.s32.totalorder %s17, 1
    %p61 = por %p59, %p60
    %p63 = scmp.ne.s32.totalorder %s48, %s62
    %p64 = scmp.eq.s32.totalorder %s17, 0
    %p65 = por %p63, %p64
    %s67 = sadd.s32 %s66, 1
    %p70 = scmp.eq.s32.totalorder %s11, 1
    %p71 = scmp.ne.s32.totalorder %s66, %s68
    %p72 = scmp.eq.s32.totalorder %s11, 0
    %p73 = por %p71, %p72
    %p74 = scmp.ne.s32.totalorder %s66, %s68
    %p75 = scmp.eq.s32.totalorder %s16, 1
    %p76 = por %p74, %p75
    %p77 = scmp.ne.s32.totalorder %s68, %s69
    %p78 = scmp.eq.s32.totalorder %s16, 0
    %p79 = por %p77, %p78
    %p80 = scmp.ne.s32.totalorder %s68, %s69
    %p81 = scmp.eq.s32.totalorder %s17, 1
    %p82 = por %p80, %p81
    %p84 = scmp.ne.s32.totalorder %s69, %s83
    %p85 = scmp.eq.s32.totalorder %s17, 0
    %p86 = por %p84, %p85
    %s87 = ssub.s32 %s11, %s18
    %p88 = scmp.eq.s32.totalorder %s87, 0
    %s90 = sadd.s32 %s89, 1
    %s91 = scalar_select %p88, %s89, %s90
    %p94 = pneg %p88
    %p95 = scmp.eq.s32.totalorder %s11, 1
    %p96 = por %p94, %p95
    %p97 = scmp.ne.s32.totalorder %s89, %s92
    %p98 = scmp.eq.s32.totalorder %s11, 0
    %p99 = por %p97, %p98
    %p100 = scmp.ne.s32.totalorder %s89, %s92
    %p101 = scmp.eq.s32.totalorder %s16, 1
    %p102 = por %p100, %p101
    %p103 = scmp.ne.s32.totalorder %s92, %s93
    %p104 = scmp.eq.s32.totalorder %s16, 0
    %p105 = por %p103, %p104
    %p106 = scmp.ne.s32.totalorder %s92, %s93
    %p107 = scmp.eq.s32.totalorder %s17, 1
    %p108 = por %p106, %p107
    %p110 = scmp.ne.s32.totalorder %s93, %s109
    %p111 = scmp.eq.s32.totalorder %s17, 0
    %p112 = por %p110, %p111
    %s113 = ssub.s32 %s11, %s18
    %p114 = scmp.eq.s32.totalorder %s113, 0
    %s116 = sadd.s32 %s115, 1
    %s117 = scalar_select %p114, %s115, %s116
    %p120 = pneg %p114
    %p121 = scmp.eq.s32.totalorder %s11, 1
    %p122 = por %p120, %p121
    %p123 = scmp.ne.s32.totalorder %s115, %s118
    %p124 = scmp.eq.s32.totalorder %s11, 0
    %p125 = por %p123, %p124
    %p126 = scmp.ne.s32.totalorder %s115, %s118
    %p127 = scmp.eq.s32.totalorder %s16, 1
    %p128 = por %p126, %p127
    %p129 = scmp.ne.s32.totalorder %s118, %s119
    %p130 = scmp.eq.s32.totalorder %s16, 0
    %p131 = por %p129, %p130
    %p132 = scmp.ne.s32.totalorder %s118, %s119
    %p133 = scmp.eq.s32.totalorder %s17, 1
    %p134 = por %p132, %p133
    %p136 = scmp.ne.s32.totalorder %s119, %s135
    %p137 = scmp.eq.s32.totalorder %s17, 0
    %p138 = por %p136, %p137
    %p139 = scmp.le.s32.totalorder 1, %s11
    %p140 = scmp.lt.s32.totalorder %s11, 3
    %p141 = pnand %p139, %p140
    %p142 = pneg %p141
    // Predicated region
    $region9: #{yolop_head_forward.7} parent=5 // pred_check
      _
    $region10: #{yolop_head_forward.7} parent=5 // pred_check_branch
      %144 = sbr.rel (%p141) target = $region12
    $region11: #{yolop_head_forward.7} parent=5 // pred_region
      %s145 = ssub.s32 %s11, 1
      // Predicated region
      $region13: #{yolop_head_forward.7} parent=11 // pred_check
        %p146 = pneg %p58
      $region14: #{yolop_head_forward.7} parent=11 // pred_check_branch
        %148 = sbr.rel (%p146) target = $region16
      $region15: #{yolop_head_forward.7} parent=11 // pred_region
        _
      $region16: #{yolop_head_forward.7} parent=11 // pred_fallthru
        _
      // Predicated region
      $region17: #{yolop_head_forward.7} parent=11 // pred_check
        %p149 = pneg %p79
      $region18: #{yolop_head_forward.7} parent=11 // pred_check_branch
        %151 = sbr.rel (%p149) target = $region20
      $region19: #{yolop_head_forward.7} parent=11 // pred_region
        _
      $region20: #{yolop_head_forward.7} parent=11 // pred_fallthru
        _
    $region12: #{yolop_head_forward.7} parent=5 // pred_fallthru
      _
    %p152 = scmp.lt.s32.totalorder %s11, 2
    // Predicated region
    $region21: #{yolop_head_forward.7} parent=5 // pred_check
      %p153 = pneg %p152
    $region22: #{yolop_head_forward.7} parent=5 // pred_check_branch
      %155 = sbr.rel (%p153) target = $region24
    $region23: #{yolop_head_forward.7} parent=5 // pred_region
      // Predicated region
      $region25: #{yolop_head_forward.7} parent=23 // pred_check
        %p156 = pneg %p31
      $region26: #{yolop_head_forward.7} parent=23 // pred_check_branch
        %158 = sbr.rel (%p156) target = $region28
      $region27: #{yolop_head_forward.7} parent=23 // pred_region
        %p159 = scmp.lt.s32.totalorder %s11, 1
        %s160 = scalar_select %p159, %s11, 1
        %s161 = smul.addr %s160, 14
        %s162 = smul.addr %s161, 4
        %s163 = scalar_lea.vmem %s0, %s162
      $region28: #{yolop_head_forward.7} parent=23 // pred_fallthru
        _
    $region24: #{yolop_head_forward.7} parent=5 // pred_fallthru
      _
    %p164 = scmp.le.s32.totalorder 1, %s11
    %p165 = scmp.lt.s32.totalorder %s11, 3
    %p166 = pnand %p164, %p165
    %p167 = pneg %p166
    // Predicated region
    $region29: #{yolop_head_forward.7} parent=5 // pred_check
      _
    $region30: #{yolop_head_forward.7} parent=5 // pred_check_branch
      %169 = sbr.rel (%p166) target = $region32
    $region31: #{yolop_head_forward.7} parent=5 // pred_region
      %s170 = ssub.s32 %s11, 1
      %p171 = scmp.lt.s32.totalorder %s16, 1
      %s172 = scalar_select %p171, %s16, 1
      %s173 = smul.addr %s172, 14
      %s174 = smul.addr %s173, 4
      %s175 = scalar_lea.vmem %s0, %s174
      %p176 = pneg %p37
      %p177 = pneg %p34
      %p178 = pneg %p58
      %p179 = pneg %p55
      %p180 = pneg %p79
      %p181 = pneg %p76
      %p182 = pneg %p105
      %p183 = pneg %p102
      %p184 = scmp.lt.s32.totalorder %s16, 1
      %s185 = scalar_select %p184, %s16, 1
      %s186 = smul.addr %s185, 10
      %s187 = smul.addr %s186, 4
      %s188 = scalar_lea.vmem %s3, %s187
      %p189 = pneg %p131
      %p190 = pneg %p128
      %p191 = scmp.lt.s32.totalorder %s16, 1
      %s192 = scalar_select %p191, %s16, 1
      %s193 = smul.addr %s192, 2
      %s194 = scalar_lea.vmem %s4, %s193
      %p195 = scmp.lt.s32.totalorder %s16, 1
      %s196 = scalar_select %p195, %s16, 1
      %s197 = smul.addr %s196, 14
      %s198 = smul.addr %s197, 4
      %s199 = scalar_lea.vmem %s0, %s198
      %p200 = scmp.lt.s32.totalorder %s16, 1
      %s201 = scalar_select %p200, %s16, 1
      %s202 = smul.addr %s201, 10
      %s203 = smul.addr %s202, 4
      %s204 = scalar_lea.vmem %s3, %s203
      %p205 = scmp.lt.s32.totalorder %s16, 1
      %s206 = scalar_select %p205, %s16, 1
      %s207 = smul.addr %s206, 2
      %s208 = scalar_lea.vmem %s4, %s207
      %v210 = vld [vmem:[%s199] sm:$0xf]
      %v211 = vld [vmem:[%s199 + $0x4] sm:$0xf]
      %v212 = vld [vmem:[%s199 + $0x8] sm:$0xf]
      %v213 = vld [vmem:[%s199 + $0xc] sm:$0xf]
      %v214 = vld [vmem:[%s199 + $0x10] sm:$0xf]
      %v215 = vld [vmem:[%s199 + $0x14] sm:$0xf]
      %v216 = vld [vmem:[%s199 + $0x18] sm:$0xf]
      %v217 = vld [vmem:[%s199 + $0x1c] sm:$0xf]
      %v218 = vld [vmem:[%s199 + $0x20] sm:$0xf]
      %v219 = vld [vmem:[%s199 + $0x24] sm:$0xf]
      %v220 = vld [vmem:[%s2] sm:$0xf]
      %v221 = vld [vmem:[%s199 + $0x28] sm:$0x1]
      %s222 = scalar_lea.vmem %s2, 4
      %v223 = vld [vmem:[%s222] sm:$0xf]
      %v235 = vunpack.c.l.b16 %v210
      %v236 = vunpack.c.l.b16 %v211
      %v237 = vunpack.c.l.b16 %v212
      %v238 = vunpack.c.l.b16 %v213
      %v239 = vunpack.c.l.b16 %v214
      %v240 = vunpack.c.l.b16 %v215
      %v241 = vunpack.c.l.b16 %v216
      %v242 = vunpack.c.l.b16 %v217
      %v243 = vunpack.c.l.b16 %v218
      %v244 = vunpack.c.l.b16 %v219
      %v245 = vunpack.c.l.b16 %v221
      %v246 = vpack.c.b16 %v236, %v235
      %v247 = vpack.c.b16 %v238, %v237
      %v248 = vpack.c.b16 %v240, %v239
      %v249 = vpack.c.b16 %v242, %v241
      %v250 = vpack.c.b16 %v244, %v243
      %v251 = vpack.c.b16 %v245, %v245
      %vm252 = vsmask.f32 7424
      %v254 = vshrl.u32 %v246, 16
      %v256 = vshll.u32 %v246, 16
      %v258 = vrot.slane %v256, 1
      %v259 = vor.u32 %v254, %v258
      %v261 = vshll.u32 %v247, 16
      %v263 = vrot.slane %v261, 1
      %v264 = vsel %vm252, %v259, %v263
      %v265 = vshrl.u32 %v247, 16
      %v267 = vor.u32 %v265, %v263
      %v269 = vshll.u32 %v248, 16
      %v271 = vrot.slane %v269, 1
      %v272 = vsel %vm252, %v267, %v271
      %v273 = vshrl.u32 %v248, 16
      %v275 = vor.u32 %v273, %v271
      %v277 = vshll.u32 %v249, 16
      %v279 = vrot.slane %v277, 1
      %v280 = vsel %vm252, %v275, %v279
      %v281 = vshrl.u32 %v249, 16
      %v283 = vor.u32 %v281, %v279
      %v285 = vshll.u32 %v250, 16
      %v287 = vrot.slane %v285, 1
      %v288 = vsel %vm252, %v283, %v287
      %v289 = vshrl.u32 %v250, 16
      %v291 = vor.u32 %v289, %v287
      %v293 = vshll.u32 %v251, 16
      %v295 = vrot.slane %v293, 1
      %v296 = vsel %vm252, %v291, %v295
      %vm297 = vcmask 64512
      %v299 = vsel %vm297, %v264, 0
      %v302 = vsel %vm297, %v272, 0
      %v305 = vsel %vm297, %v280, 0
      %v308 = vsel %vm297, %v288, 0
      %v311 = vsel %vm297, %v296, 0
      %vm313 = vcmask 1043456
      %v315 = vsel %vm313, %v223, 0
      %317 = vmatprep.subr.bf16.mxu0 0
      %318 = vmatpush1.bf16.msra.mxu0 %v315
      %319 = vmatprep.subr.bf16.mxu0 0
      %320 = vmatpush1.bf16.msra.mxu0 0
      %321 = vmatprep.subr.bf16.mxu0 0
      %322 = vmatpush1.bf16.msra.mxu0 0
      %323 = vmatprep.subr.bf16.mxu0 0
      %324 = vmatpush1.bf16.msra.mxu0 0
      %325 = vmatprep.subr.bf16.mxu0 0
      %326 = vmatpush1.bf16.msra.mxu0 0
      %327 = vmatprep.subr.bf16.mxu0 0
      %328 = vmatpush1.bf16.msra.mxu0 0
      %329 = vmatprep.subr.bf16.mxu0 0
      %330 = vmatpush1.bf16.msra.mxu0 0
      %331 = vmatprep.subr.bf16.mxu0 0
      %332 = vmatpush1.bf16.msra.mxu0 0
      %333 = vmatprep.subr.bf16.mxu0 0
      %334 = vmatpush1.bf16.msra.mxu0 0
      %335 = vmatprep.subr.bf16.mxu0 0
      %336 = vmatpush1.bf16.msra.mxu0 0
      %337 = vmatprep.subr.bf16.mxu0 0
      %338 = vmatpush1.bf16.msra.mxu0 0
      %339 = vmatprep.subr.bf16.mxu0 0
      %340 = vmatpush1.bf16.msra.mxu0 0
      %341 = vmatprep.subr.bf16.mxu0 0
      %342 = vmatpush1.bf16.msra.mxu0 0
      %343 = vmatprep.subr.bf16.mxu0 0
      %344 = vmatpush1.bf16.msra.mxu0 0
      %345 = vmatprep.subr.bf16.mxu0 0
      %346 = vmatpush1.bf16.msra.mxu0 0
      %347 = vmatprep.subr.bf16.mxu0 0
      %348 = vmatpush1.bf16.msra.mxu0 0
      %349 = vmatprep.mubr.bf16.mxu0 0
      %350 = vmatmul.mubr.bf16.gmra.mrb[0].mxu0 %v299
      %v351 = vpop.f32.mrb[0].mxu0
      %v352 = vadd.f32 0.0, %v351
      %v353 = vpop.f32.mrb[0].mxu0
      %v354 = vpop.f32.mrb[0].mxu0
      %v355 = vadd.f32 0.0, %v354
      %v356 = vpop.f32.mrb[0].mxu0
      %357 = vmatprep.mubr.bf16.mxu0 0
      %358 = vmatmul.mubr.bf16.gmra.mrb[0].mxu0 %v302
      %v359 = vpop.f32.mrb[0].mxu0
      %v360 = vadd.f32 0.0, %v359
      %v361 = vpop.f32.mrb[0].mxu0
      %v362 = vpop.f32.mrb[0].mxu0
      %v363 = vadd.f32 0.0, %v362
      %v364 = vpop.f32.mrb[0].mxu0
      %365 = vmatprep.mubr.bf16.mxu0 0
      %366 = vmatmul.mubr.bf16.gmra.mrb[0].mxu0 %v305
      %v367 = vpop.f32.mrb[0].mxu0
      %v368 = vadd.f32 0.0, %v367
      %v369 = vpop.f32.mrb[0].mxu0
      %v370 = vpop.f32.mrb[0].mxu0
      %v371 = vadd.f32 0.0, %v370
      %v372 = vpop.f32.mrb[0].mxu0
      %373 = vmatprep.mubr.bf16.mxu0 0
      %374 = vmatmul.mubr.bf16.gmra.mrb[0].mxu0 %v308
      %v375 = vpop.f32.mrb[0].mxu0
      %v376 = vadd.f32 0.0, %v375
      %v377 = vpop.f32.mrb[0].mxu0
      %v378 = vpop.f32.mrb[0].mxu0
      %v379 = vadd.f32 0.0, %v378
      %v380 = vpop.f32.mrb[0].mxu0
      %381 = vmatprep.mubr.bf16.mxu0 0
      %382 = vmatmul.mubr.bf16.gmra.mrb[0].mxu0 %v311
      %v383 = vpop.f32.mrb[0].mxu0
      %v384 = vadd.f32 0.0, %v383
      %v385 = vpop.f32.mrb[0].mxu0
      %v386 = vpop.f32.mrb[0].mxu0
      %v387 = vadd.f32 0.0, %v386
      %v388 = vpop.f32.mrb[0].mxu0
      %389 = vdwg.mxu0
      %v390 = vsel %vm297, %v246, 0
      %v392 = vsel %vm297, %v247, 0
      %v394 = vsel %vm297, %v248, 0
      %v396 = vsel %vm297, %v249, 0
      %v398 = vsel %vm297, %v250, 0
      %v401 = vsel %vm313, %v220, 0
      %403 = vmatprep.subr.bf16.mxu0 0
      %404 = vmatpush1.bf16.msra.mxu0 %v401
      %405 = vmatprep.subr.bf16.mxu0 0
      %406 = vmatpush1.bf16.msra.mxu0 0
      %407 = vmatprep.subr.bf16.mxu0 0
      %408 = vmatpush1.bf16.msra.mxu0 0
      %409 = vmatprep.subr.bf16.mxu0 0
      %410 = vmatpush1.bf16.msra.mxu0 0
      %411 = vmatprep.subr.bf16.mxu0 0
      %412 = vmatpush1.bf16.msra.mxu0 0
      %413 = vmatprep.subr.bf16.mxu0 0
      %414 = vmatpush1.bf16.msra.mxu0 0
      %415 = vmatprep.subr.bf16.mxu0 0
      %416 = vmatpush1.bf16.msra.mxu0 0
      %417 = vmatprep.subr.bf16.mxu0 0
      %418 = vmatpush1.bf16.msra.mxu0 0
      %419 = vmatprep.subr.bf16.mxu0 0
      %420 = vmatpush1.bf16.msra.mxu0 0
      %421 = vmatprep.subr.bf16.mxu0 0
      %422 = vmatpush1.bf16.msra.mxu0 0
      %423 = vmatprep.subr.bf16.mxu0 0
      %424 = vmatpush1.bf16.msra.mxu0 0
      %425 = vmatprep.subr.bf16.mxu0 0
      %426 = vmatpush1.bf16.msra.mxu0 0
      %427 = vmatprep.subr.bf16.mxu0 0
      %428 = vmatpush1.bf16.msra.mxu0 0
      %429 = vmatprep.subr.bf16.mxu0 0
      %430 = vmatpush1.bf16.msra.mxu0 0
      %431 = vmatprep.subr.bf16.mxu0 0
      %432 = vmatpush1.bf16.msra.mxu0 0
      %433 = vmatprep.subr.bf16.mxu0 0
      %434 = vmatpush1.bf16.msra.mxu0 0
      %435 = vmatprep.mubr.bf16.mxu0 0
      %436 = vmatmul.mubr.bf16.gmra.mrb[0].mxu0 %v390
      %v437 = vpop.f32.mrb[0].mxu0
      %v438 = vadd.f32 %v352, %v437
      %v439 = vpop.f32.mrb[0].mxu0
      %v440 = vpop.f32.mrb[0].mxu0
      %v441 = vadd.f32 %v355, %v440
      %v442 = vpop.f32.mrb[0].mxu0
      %443 = vmatprep.mubr.bf16.mxu0 0
      %444 = vmatmul.mubr.bf16.gmra.mrb[0].mxu0 %v392
      %v445 = vpop.f32.mrb[0].mxu0
      %v446 = vadd.f32 %v360, %v445
      %v447 = vpop.f32.mrb[0].mxu0
      %v448 = vpop.f32.mrb[0].mxu0
      %v449 = vadd.f32 %v363, %v448
      %v450 = vpop.f32.mrb[0].mxu0
      %451 = vmatprep.mubr.bf16.mxu0 0
      %452 = vmatmul.mubr.bf16.gmra.mrb[0].mxu0 %v394
      %v453 = vpop.f32.mrb[0].mxu0
      %v454 = vadd.f32 %v368, %v453
      %v455 = vpop.f32.mrb[0].mxu0
      %v456 = vpop.f32.mrb[0].mxu0
      %v457 = vadd.f32 %v371, %v456
      %v458 = vpop.f32.mrb[0].mxu0
      %459 = vmatprep.mubr.bf16.mxu0 0
      %460 = vmatmul.mubr.bf16.gmra.mrb[0].mxu0 %v396
      %v461 = vpop.f32.mrb[0].mxu0
      %v462 = vadd.f32 %v376, %v461
      %v463 = vpop.f32.mrb[0].mxu0
      %v464 = vpop.f32.mrb[0].mxu0
      %v465 = vadd.f32 %v379, %v464
      %v466 = vpop.f32.mrb[0].mxu0
      %467 = vmatprep.mubr.bf16.mxu0 0
      %468 = vmatmul.mubr.bf16.gmra.mrb[0].mxu0 %v398
      %v469 = vpop.f32.mrb[0].mxu0
      %v470 = vadd.f32 %v384, %v469
      %v471 = vpop.f32.mrb[0].mxu0
      %v472 = vpop.f32.mrb[0].mxu0
      %v473 = vadd.f32 %v387, %v472
      %v474 = vpop.f32.mrb[0].mxu0
      %475 = vdwg.mxu0
      %v476 = vld [vmem:[%s199] sm:$0xe]
      %s477 = scalar_lea.vmem %s2, 8
      %v478 = vld [vmem:[%s477] sm:$0xf]
      %v480 = vunpack.c.l.b16 %v476
      %v481 = vpack.c.b16 %v236, %v480
      %vm482 = vcmask 1046528
      %v483 = vrot.slane %v481, 1
      %v484 = vrot.slane %v247, 1
      %v485 = vsel %vm482, %v483, %v484
      %v486 = vrot.slane %v248, 1
      %v487 = vsel %vm482, %v484, %v486
      %v488 = vrot.slane %v249, 1
      %v489 = vsel %vm482, %v486, %v488
      %v490 = vrot.slane %v250, 1
      %v491 = vsel %vm482, %v488, %v490
      %v492 = vrot.slane %v251, 1
      %v493 = vsel %vm482, %v490, %v492
      %v495 = vsel %vm297, %v485, 0
      %v498 = vsel %vm297, %v487, 0
      %v501 = vsel %vm297, %v489, 0
      %v504 = vsel %vm297, %v491, 0
      %v507 = vsel %vm297, %v493, 0
      %v510 = vsel %vm313, %v478, 0
      %512 = vmatprep.subr.bf16.mxu0 0
      %513 = vmatpush1.bf16.msra.mxu0 %v510
      %514 = vmatprep.subr.bf16.mxu0 0
      %515 = vmatpush1.bf16.msra.mxu0 0
      %516 = vmatprep.subr.bf16.mxu0 0
      %517 = vmatpush1.bf16.msra.mxu0 0
      %518 = vmatprep.subr.bf16.mxu0 0
      %519 = vmatpush1.bf16.msra.mxu0 0
      %520 = vmatprep.subr.bf16.mxu0 0
      %521 = vmatpush1.bf16.msra.mxu0 0
      %522 = vmatprep.subr.bf16.mxu0 0
      %523 = vmatpush1.bf16.msra.mxu0 0
      %524 = vmatprep.subr.bf16.mxu0 0
      %525 = vmatpush1.bf16.msra.mxu0 0
      %526 = vmatprep.subr.bf16.mxu0 0
      %527 = vmatpush1.bf16.msra.mxu0 0
      %528 = vmatprep.subr.bf16.mxu0 0
      %529 = vmatpush1.bf16.msra.mxu0 0
      %530 = vmatprep.subr.bf16.mxu0 0
      %531 = vmatpush1.bf16.msra.mxu0 0
      %532 = vmatprep.subr.bf16.mxu0 0
      %533 = vmatpush1.bf16.msra.mxu0 0
      %534 = vmatprep.subr.bf16.mxu0 0
      %535 = vmatpush1.bf16.msra.mxu0 0
      %536 = vmatprep.subr.bf16.mxu0 0
      %537 = vmatpush1.bf16.msra.mxu0 0
      %538 = vmatprep.subr.bf16.mxu0 0
      %539 = vmatpush1.bf16.msra.mxu0 0
      %540 = vmatprep.subr.bf16.mxu0 0
      %541 = vmatpush1.bf16.msra.mxu0 0
      %542 = vmatprep.subr.bf16.mxu0 0
      %543 = vmatpush1.bf16.msra.mxu0 0
      %544 = vmatprep.mubr.bf16.mxu0 0
      %545 = vmatmul.mubr.bf16.gmra.mrb[0].mxu0 %v495
      %v546 = vpop.f32.mrb[0].mxu0
      %v547 = vadd.f32 0.0, %v546
      %v548 = vpop.f32.mrb[0].mxu0
      %v549 = vpop.f32.mrb[0].mxu0
      %v550 = vadd.f32 0.0, %v549
      %v551 = vpop.f32.mrb[0].mxu0
      %552 = vmatprep.mubr.bf16.mxu0 0
      %553 = vmatmul.mubr.bf16.gmra.mrb[0].mxu0 %v498
      %v554 = vpop.f32.mrb[0].mxu0
      %v555 = vadd.f32 0.0, %v554
      %v556 = vpop.f32.mrb[0].mxu0
      %v557 = vpop.f32.mrb[0].mxu0
      %v558 = vadd.f32 0.0, %v557
      %v559 = vpop.f32.mrb[0].mxu0
      %560 = vmatprep.mubr.bf16.mxu0 0
      %561 = vmatmul.mubr.bf16.gmra.mrb[0].mxu0 %v501
      %v562 = vpop.f32.mrb[0].mxu0
      %v563 = vadd.f32 0.0, %v562
      %v564 = vpop.f32.mrb[0].mxu0
      %v565 = vpop.f32.mrb[0].mxu0
      %v566 = vadd.f32 0.0, %v565
      %v567 = vpop.f32.mrb[0].mxu0
      %568 = vmatprep.mubr.bf16.mxu0 0
      %569 = vmatmul.mubr.bf16.gmra.mrb[0].mxu0 %v504
      %v570 = vpop.f32.mrb[0].mxu0
      %v571 = vadd.f32 0.0, %v570
      %v572 = vpop.f32.mrb[0].mxu0
      %v573 = vpop.f32.mrb[0].mxu0
      %v574 = vadd.f32 0.0, %v573
      %v575 = vpop.f32.mrb[0].mxu0
      %576 = vmatprep.mubr.bf16.mxu0 0
      %577 = vmatmul.mubr.bf16.gmra.mrb[0].mxu0 %v507
      %v578 = vpop.f32.mrb[0].mxu0
      %v579 = vadd.f32 0.0, %v578
      %v580 = vpop.f32.mrb[0].mxu0
      %v581 = vpop.f32.mrb[0].mxu0
      %v582 = vadd.f32 0.0, %v581
      %v583 = vpop.f32.mrb[0].mxu0
      %584 = vdwg.mxu0
      %v585 = vadd.f32 %v438, %v547
      %v586 = vadd.f32 %v441, %v550
      %v587 = vadd.f32 %v446, %v555
      %v588 = vadd.f32 %v449, %v558
      %v589 = vadd.f32 %v454, %v563
      %v590 = vadd.f32 %v457, %v566
      %v591 = vadd.f32 %v462, %v571
      %v592 = vadd.f32 %v465, %v574
      %v593 = vadd.f32 %v470, %v579
      %v594 = vadd.f32 %v473, %v582
      %v595 = vld [vmem:[%s199 + $0x4] sm:$0xe]
      %v596 = vld [vmem:[%s199 + $0x8] sm:$0xf]
      %v597 = vld [vmem:[%s199 + $0xc] sm:$0xf]
      %v598 = vld [vmem:[%s199 + $0x10] sm:$0xf]
      %v599 = vld [vmem:[%s199 + $0x14] sm:$0xf]
      %v600 = vld [vmem:[%s199 + $0x18] sm:$0xf]
      %v601 = vld [vmem:[%s199 + $0x1c] sm:$0xf]
      %v602 = vld [vmem:[%s199 + $0x20] sm:$0xf]
      %v603 = vld [vmem:[%s199 + $0x24] sm:$0xf]
      %v604 = vld [vmem:[%s199 + $0x28] sm:$0xf]
      %v605 = vld [vmem:[%s199 + $0x2c] sm:$0x1]
      %s606 = scalar_lea.vmem %s2, 12
      %v607 = vld [vmem:[%s606] sm:$0xf]
      %v619 = vunpack.c.l.b16 %v595
      %v620 = vunpack.c.l.b16 %v596
      %v621 = vunpack.c.l.b16 %v597
      %v622 = vunpack.c.l.b16 %v598
      %v623 = vunpack.c.l.b16 %v599
      %v624 = vunpack.c.l.b16 %v600
      %v625 = vunpack.c.l.b16 %v601
      %v626 = vunpack.c.l.b16 %v602
      %v627 = vunpack.c.l.b16 %v603
      %v628 = vunpack.c.l.b16 %v604
      %v629 = vunpack.c.l.b16 %v605
      %v630 = vpack.c.b16 %v620, %v619
      %v631 = vpack.c.b16 %v622, %v621
      %v632 = vpack.c.b16 %v624, %v623
      %v633 = vpack.c.b16 %v626, %v625
      %v634 = vpack.c.b16 %v628, %v627
      %v635 = vpack.c.b16 %v629, %v629
      %v636 = vrot.slane %v630, 1
      %v637 = vrot.slane %v631, 1
      %v638 = vsel %vm482, %v636, %v637
      %v639 = vrot.slane %v632, 1
      %v640 = vsel %vm482, %v637, %v639
      %v641 = vrot.slane %v633, 1
      %v642 = vsel %vm482, %v639, %v641
      %v643 = vrot.slane %v634, 1
      %v644 = vsel %vm482, %v641, %v643
      %v645 = vrot.slane %v635, 1
      %v646 = vsel %vm482, %v643, %v645
      %v648 = vsel %vm297, %v638, 0
      %v651 = vsel %vm297, %v640, 0
      %v654 = vsel %vm297, %v642, 0
      %v657 = vsel %vm297, %v644, 0
      %v660 = vsel %vm297, %v646, 0
      %v663 = vsel %vm313, %v607, 0
      %665 = vmatprep.subr.bf16.mxu0 0
      %666 = vmatpush1.bf16.msra.mxu0 %v663
      %667 = vmatprep.subr.bf16.mxu0 0
      %668 = vmatpush1.bf16.msra.mxu0 0
      %669 = vmatprep.subr.bf16.mxu0 0
      %670 = vmatpush1.bf16.msra.mxu0 0
      %671 = vmatprep.subr.bf16.mxu0 0
      %672 = vmatpush1.bf16.msra.mxu0 0
      %673 = vmatprep.subr.bf16.mxu0 0
      %674 = vmatpush1.bf16.msra.mxu0 0
      %675 = vmatprep.subr.bf16.mxu0 0
      %676 = vmatpush1.bf16.msra.mxu0 0
      %677 = vmatprep.subr.bf16.mxu0 0
      %678 = vmatpush1.bf16.msra.mxu0 0
      %679 = vmatprep.subr.bf16.mxu0 0
      %680 = vmatpush1.bf16.msra.mxu0 0
      %681 = vmatprep.subr.bf16.mxu0 0
      %682 = vmatpush1.bf16.msra.mxu0 0
      %683 = vmatprep.subr.bf16.mxu0 0
      %684 = vmatpush1.bf16.msra.mxu0 0
      %685 = vmatprep.subr.bf16.mxu0 0
      %686 = vmatpush1.bf16.msra.mxu0 0
      %687 = vmatprep.subr.bf16.mxu0 0
      %688 = vmatpush1.bf16.msra.mxu0 0
      %689 = vmatprep.subr.bf16.mxu0 0
      %690 = vmatpush1.bf16.msra.mxu0 0
      %691 = vmatprep.subr.bf16.mxu0 0
      %692 = vmatpush1.bf16.msra.mxu0 0
      %693 = vmatprep.subr.bf16.mxu0 0
      %694 = vmatpush1.bf16.msra.mxu0 0
      %695 = vmatprep.subr.bf16.mxu0 0
      %696 = vmatpush1.bf16.msra.mxu0 0
      %697 = vmatprep.mubr.bf16.mxu0 0
      %698 = vmatmul.mubr.bf16.gmra.mrb[0].mxu0 %v648
      %v699 = vpop.f32.mrb[0].mxu0
      %v700 = vadd.f32 0.0, %v699
      %v701 = vpop.f32.mrb[0].mxu0
      %v702 = vpop.f32.mrb[0].mxu0
      %v703 = vadd.f32 0.0, %v702
      %v704 = vpop.f32.mrb[0].mxu0
      %705 = vmatprep.mubr.bf16.mxu0 0
      %706 = vmatmul.mubr.bf16.gmra.mrb[0].mxu0 %v651
      %v707 = vpop.f32.mrb[0].mxu0
      %v708 = vadd.f32 0.0, %v707
      %v709 = vpop.f32.mrb[0].mxu0
      %v710 = vpop.f32.mrb[0].mxu0
      %v711 = vadd.f32 0.0, %v710
      %v712 = vpop.f32.mrb[0].mxu0
      %713 = vmatprep.mubr.bf16.mxu0 0
      %714 = vmatmul.mubr.bf16.gmra.mrb[0].mxu0 %v654
      %v715 = vpop.f32.mrb[0].mxu0
      %v716 = vadd.f32 0.0, %v715
      %v717 = vpop.f32.mrb[0].mxu0
      %v718 = vpop.f32.mrb[0].mxu0
      %v719 = vadd.f32 0.0, %v718
      %v720 = vpop.f32.mrb[0].mxu0
      %721 = vmatprep.mubr.bf16.mxu0 0
      %722 = vmatmul.mubr.bf16.gmra.mrb[0].mxu0 %v657
      %v723 = vpop.f32.mrb[0].mxu0
      %v724 = vadd.f32 0.0, %v723
      %v725 = vpop.f32.mrb[0].mxu0
      %v726 = vpop.f32.mrb[0].mxu0
      %v727 = vadd.f32 0.0, %v726
      %v728 = vpop.f32.mrb[0].mxu0
      %729 = vmatprep.mubr.bf16.mxu0 0
      %730 = vmatmul.mubr.bf16.gmra.mrb[0].mxu0 %v660
      %v731 = vpop.f32.mrb[0].mxu0
      %v732 = vadd.f32 0.0, %v731
      %v733 = vpop.f32.mrb[0].mxu0
      %v734 = vpop.f32.mrb[0].mxu0
      %v735 = vadd.f32 0.0, %v734
      %v736 = vpop.f32.mrb[0].mxu0
      %737 = vdwg.mxu0
      %v738 = vadd.f32 %v585, %v700
      %v739 = vadd.f32 %v586, %v703
      %v740 = vadd.f32 %v587, %v708
      %v741 = vadd.f32 %v588, %v711
      %v742 = vadd.f32 %v589, %v716
      %v743 = vadd.f32 %v590, %v719
      %v744 = vadd.f32 %v591, %v724
      %v745 = vadd.f32 %v592, %v727
      %v746 = vadd.f32 %v593, %v732
      %v747 = vadd.f32 %v594, %v735
      %v748 = vld [vmem:[%s199 + $0x2c] sm:$0x3]
      %s749 = scalar_lea.vmem %s2, 16
      %v750 = vld [vmem:[%s749] sm:$0xf]
      %v752 = vunpack.c.l.b16 %v748
      %v753 = vpack.c.b16 %v752, %v752
      %vm754 = vsmask.f32 6400
      %v756 = vshrl.u32 %v630, 16
      %v758 = vrot.slane %v756, 1
      %v759 = vshll.u32 %v630, 16
      %v761 = vrot.slane %v759, 2
      %v762 = vor.u32 %v758, %v761
      %v764 = vshrl.u32 %v631, 16
      %v766 = vrot.slane %v764, 1
      %v767 = vshll.u32 %v631, 16
      %v769 = vrot.slane %v767, 2
      %v770 = vor.u32 %v766, %v769
      %v771 = vsel %vm754, %v762, %v770
      %v773 = vshrl.u32 %v632, 16
      %v775 = vrot.slane %v773, 1
      %v776 = vshll.u32 %v632, 16
      %v778 = vrot.slane %v776, 2
      %v779 = vor.u32 %v775, %v778
      %v780 = vsel %vm754, %v770, %v779
      %v782 = vshrl.u32 %v633, 16
      %v784 = vrot.slane %v782, 1
      %v785 = vshll.u32 %v633, 16
      %v787 = vrot.slane %v785, 2
      %v788 = vor.u32 %v784, %v787
      %v789 = vsel %vm754, %v779, %v788
      %v791 = vshrl.u32 %v634, 16
      %v793 = vrot.slane %v791, 1
      %v794 = vshll.u32 %v634, 16
      %v796 = vrot.slane %v794, 2
      %v797 = vor.u32 %v793, %v796
      %v798 = vsel %vm754, %v788, %v797
      %v800 = vshrl.u32 %v753, 16
      %v802 = vrot.slane %v800, 1
      %v803 = vshll.u32 %v753, 16
      %v805 = vrot.slane %v803, 2
      %v806 = vor.u32 %v802, %v805
      %v807 = vsel %vm754, %v797, %v806
      %v809 = vsel %vm297, %v771, 0
      %v812 = vsel %vm297, %v780, 0
      %v815 = vsel %vm297, %v789, 0
      %v818 = vsel %vm297, %v798, 0
      %v821 = vsel %vm297, %v807, 0
      %v824 = vsel %vm313, %v750, 0
      %826 = vmatprep.subr.bf16.mxu0 0
      %827 = vmatpush1.bf16.msra.mxu0 %v824
      %828 = vmatprep.subr.bf16.mxu0 0
      %829 = vmatpush1.bf16.msra.mxu0 0
      %830 = vmatprep.subr.bf16.mxu0 0
      %831 = vmatpush1.bf16.msra.mxu0 0
      %832 = vmatprep.subr.bf16.mxu0 0
      %833 = vmatpush1.bf16.msra.mxu0 0
      %834 = vmatprep.subr.bf16.mxu0 0
      %835 = vmatpush1.bf16.msra.mxu0 0
      %836 = vmatprep.subr.bf16.mxu0 0
      %837 = vmatpush1.bf16.msra.mxu0 0
      %838 = vmatprep.subr.bf16.mxu0 0
      %839 = vmatpush1.bf16.msra.mxu0 0
      %840 = vmatprep.subr.bf16.mxu0 0
      %841 = vmatpush1.bf16.msra.mxu0 0
      %842 = vmatprep.subr.bf16.mxu0 0
      %843 = vmatpush1.bf16.msra.mxu0 0
      %844 = vmatprep.subr.bf16.mxu0 0
      %845 = vmatpush1.bf16.msra.mxu0 0
      %846 = vmatprep.subr.bf16.mxu0 0
      %847 = vmatpush1.bf16.msra.mxu0 0
      %848 = vmatprep.subr.bf16.mxu0 0
      %849 = vmatpush1.bf16.msra.mxu0 0
      %850 = vmatprep.subr.bf16.mxu0 0
      %851 = vmatpush1.bf16.msra.mxu0 0
      %852 = vmatprep.subr.bf16.mxu0 0
      %853 = vmatpush1.bf16.msra.mxu0 0
      %854 = vmatprep.subr.bf16.mxu0 0
      %855 = vmatpush1.bf16.msra.mxu0 0
      %856 = vmatprep.subr.bf16.mxu0 0
      %857 = vmatpush1.bf16.msra.mxu0 0
      %858 = vmatprep.mubr.bf16.mxu0 0
      %859 = vmatmul.mubr.bf16.gmra.mrb[0].mxu0 %v809
      %v860 = vpop.f32.mrb[0].mxu0
      %v861 = vadd.f32 0.0, %v860
      %v862 = vpop.f32.mrb[0].mxu0
      %v863 = vpop.f32.mrb[0].mxu0
      %v864 = vadd.f32 0.0, %v863
      %v865 = vpop.f32.mrb[0].mxu0
      %866 = vmatprep.mubr.bf16.mxu0 0
      %867 = vmatmul.mubr.bf16.gmra.mrb[0].mxu0 %v812
      %v868 = vpop.f32.mrb[0].mxu0
      %v869 = vadd.f32 0.0, %v868
      %v870 = vpop.f32.mrb[0].mxu0
      %v871 = vpop.f32.mrb[0].mxu0
      %v872 = vadd.f32 0.0, %v871
      %v873 = vpop.f32.mrb[0].mxu0
      %874 = vmatprep.mubr.bf16.mxu0 0
      %875 = vmatmul.mubr.bf16.gmra.mrb[0].mxu0 %v815
      %v876 = vpop.f32.mrb[0].mxu0
      %v877 = vadd.f32 0.0, %v876
      %v878 = vpop.f32.mrb[0].mxu0
      %v879 = vpop.f32.mrb[0].mxu0
      %v880 = vadd.f32 0.0, %v879
      %v881 = vpop.f32.mrb[0].mxu0
      %882 = vmatprep.mubr.bf16.mxu0 0
      %883 = vmatmul.mubr.bf16.gmra.mrb[0].mxu0 %v818
      %v884 = vpop.f32.mrb[0].mxu0
      %v885 = vadd.f32 0.0, %v884
      %v886 = vpop.f32.mrb[0].mxu0
      %v887 = vpop.f32.mrb[0].mxu0
      %v888 = vadd.f32 0.0, %v887
      %v889 = vpop.f32.mrb[0].mxu0
      %890 = vmatprep.mubr.bf16.mxu0 0
      %891 = vmatmul.mubr.bf16.gmra.mrb[0].mxu0 %v821
      %v892 = vpop.f32.mrb[0].mxu0
      %v893 = vadd.f32 0.0, %v892
      %v894 = vpop.f32.mrb[0].mxu0
      %v895 = vpop.f32.mrb[0].mxu0
      %v896 = vadd.f32 0.0, %v895
      %v897 = vpop.f32.mrb[0].mxu0
      %898 = vdwg.mxu0
      %v899 = vadd.f32 %v738, %v861
      %v900 = vadd.f32 %v739, %v864
      %v901 = vadd.f32 %v740, %v869
      %v902 = vadd.f32 %v741, %v872
      %v903 = vadd.f32 %v742, %v877
      %v904 = vadd.f32 %v743, %v880
      %v905 = vadd.f32 %v744, %v885
      %v906 = vadd.f32 %v745, %v888
      %v907 = vadd.f32 %v746, %v893
      %v908 = vadd.f32 %v747, %v896
      %v909 = vld [vmem:[%s199 + $0x4] sm:$0xc]
      %s910 = scalar_lea.vmem %s2, 20
      %v911 = vld [vmem:[%s910] sm:$0xf]
      %v913 = vunpack.c.l.b16 %v909
      %v914 = vpack.c.b16 %v620, %v913
      %vm915 = vcmask 1045504
      %v916 = vrot.slane %v914, 2
      %v917 = vrot.slane %v631, 2
      %v918 = vsel %vm915, %v916, %v917
      %v919 = vrot.slane %v632, 2
      %v920 = vsel %vm915, %v917, %v919
      %v921 = vrot.slane %v633, 2
      %v922 = vsel %vm915, %v919, %v921
      %v923 = vrot.slane %v634, 2
      %v924 = vsel %vm915, %v921, %v923
      %v925 = vrot.slane %v753, 2
      %v926 = vsel %vm915, %v923, %v925
      %v928 = vsel %vm297, %v918, 0
      %v931 = vsel %vm297, %v920, 0
      %v934 = vsel %vm297, %v922, 0
      %v937 = vsel %vm297, %v924, 0
      %v940 = vsel %vm297, %v926, 0
      %v943 = vsel %vm313, %v911, 0
      %945 = vmatprep.subr.bf16.mxu0 0
      %946 = vmatpush1.bf16.msra.mxu0 %v943
      %947 = vmatprep.subr.bf16.mxu0 0
      %948 = vmatpush1.bf16.msra.mxu0 0
      %949 = vmatprep.subr.bf16.mxu0 0
      %950 = vmatpush1.bf16.msra.mxu0 0
      %951 = vmatprep.subr.bf16.mxu0 0
      %952 = vmatpush1.bf16.msra.mxu0 0
      %953 = vmatprep.subr.bf16.mxu0 0
      %954 = vmatpush1.bf16.msra.mxu0 0
      %955 = vmatprep.subr.bf16.mxu0 0
      %956 = vmatpush1.bf16.msra.mxu0 0
      %957 = vmatprep.subr.bf16.mxu0 0
      %958 = vmatpush1.bf16.msra.mxu0 0
      %959 = vmatprep.subr.bf16.mxu0 0
      %960 = vmatpush1.bf16.msra.mxu0 0
      %961 = vmatprep.subr.bf16.mxu0 0
      %962 = vmatpush1.bf16.msra.mxu0 0
      %963 = vmatprep.subr.bf16.mxu0 0
      %964 = vmatpush1.bf16.msra.mxu0 0
      %965 = vmatprep.subr.bf16.mxu0 0
      %966 = vmatpush1.bf16.msra.mxu0 0
      %967 = vmatprep.subr.bf16.mxu0 0
      %968 = vmatpush1.bf16.msra.mxu0 0
      %969 = vmatprep.subr.bf16.mxu0 0
      %970 = vmatpush1.bf16.msra.mxu0 0
      %971 = vmatprep.subr.bf16.mxu0 0
      %972 = vmatpush1.bf16.msra.mxu0 0
      %973 = vmatprep.subr.bf16.mxu0 0
      %974 = vmatpush1.bf16.msra.mxu0 0
      %975 = vmatprep.subr.bf16.mxu0 0
      %976 = vmatpush1.bf16.msra.mxu0 0
      %977 = vmatprep.mubr.bf16.mxu0 0
      %978 = vmatmul.mubr.bf16.gmra.mrb[0].mxu0 %v928
      %v979 = vpop.f32.mrb[0].mxu0
      %v980 = vadd.f32 0.0, %v979
      %v981 = vpop.f32.mrb[0].mxu0
      %v982 = vpop.f32.mrb[0].mxu0
      %v983 = vadd.f32 0.0, %v982
      %v984 = vpop.f32.mrb[0].mxu0
      %985 = vmatprep.mubr.bf16.mxu0 0
      %986 = vmatmul.mubr.bf16.gmra.mrb[0].mxu0 %v931
      %v987 = vpop.f32.mrb[0].mxu0
      %v988 = vadd.f32 0.0, %v987
      %v989 = vpop.f32.mrb[0].mxu0
      %v990 = vpop.f32.mrb[0].mxu0
      %v991 = vadd.f32 0.0, %v990
      %v992 = vpop.f32.mrb[0].mxu0
      %993 = vmatprep.mubr.bf16.mxu0 0
      %994 = vmatmul.mubr.bf16.gmra.mrb[0].mxu0 %v934
      %v995 = vpop.f32.mrb[0].mxu0
      %v996 = vadd.f32 0.0, %v995
      %v997 = vpop.f32.mrb[0].mxu0
      %v998 = vpop.f32.mrb[0].mxu0
      %v999 = vadd.f32 0.0, %v998
      %v1000 = vpop.f32.mrb[0].mxu0
      %1001 = vmatprep.mubr.bf16.mxu0 0
      %1002 = vmatmul.mubr.bf16.gmra.mrb[0].mxu0 %v937
      %v1003 = vpop.f32.mrb[0].mxu0
      %v1004 = vadd.f32 0.0, %v1003
      %v1005 = vpop.f32.mrb[0].mxu0
      %v1006 = vpop.f32.mrb[0].mxu0
      %v1007 = vadd.f32 0.0, %v1006
      %v1008 = vpop.f32.mrb[0].mxu0
      %1009 = vmatprep.mubr.bf16.mxu0 0
      %1010 = vmatmul.mubr.bf16.gmra.mrb[0].mxu0 %v940
      %v1011 = vpop.f32.mrb[0].mxu0
      %v1012 = vadd.f32 0.0, %v1011
      %v1013 = vpop.f32.mrb[0].mxu0
      %v1014 = vpop.f32.mrb[0].mxu0
      %v1015 = vadd.f32 0.0, %v1014
      %v1016 = vpop.f32.mrb[0].mxu0
      %1017 = vdwg.mxu0
      %v1018 = vadd.f32 %v899, %v980
      %v1019 = vadd.f32 %v900, %v983
      %v1020 = vadd.f32 %v901, %v988
      %v1021 = vadd.f32 %v902, %v991
      %v1022 = vadd.f32 %v903, %v996
      %v1023 = vadd.f32 %v904, %v999
      %v1024 = vadd.f32 %v905, %v1004
      %v1025 = vadd.f32 %v906, %v1007
      %v1026 = vadd.f32 %v907, %v1012
      %v1027 = vadd.f32 %v908, %v1015
      %v1028 = vld [vmem:[%s199 + $0x8] sm:$0xc]
      %v1029 = vld [vmem:[%s199 + $0xc] sm:$0xf]
      %v1030 = vld [vmem:[%s199 + $0x10] sm:$0xf]
      %v1031 = vld [vmem:[%s199 + $0x14] sm:$0xf]
      %v1032 = vld [vmem:[%s199 + $0x18] sm:$0xf]
      %v1033 = vld [vmem:[%s199 + $0x1c] sm:$0xf]
      %v1034 = vld [vmem:[%s199 + $0x20] sm:$0xf]
      %v1035 = vld [vmem:[%s199 + $0x24] sm:$0xf]
      %v1036 = vld [vmem:[%s199 + $0x28] sm:$0xf]
      %v1037 = vld [vmem:[%s199 + $0x2c] sm:$0xf]
      %v1038 = vld [vmem:[%s199 + $0x30] sm:$0x3]
      %s1039 = scalar_lea.vmem %s2, 24
      %v1040 = vld [vmem:[%s1039] sm:$0xf]
      %v1052 = vunpack.c.l.b16 %v1028
      %v1053 = vunpack.c.l.b16 %v1029
      %v1054 = vunpack.c.l.b16 %v1030
      %v1055 = vunpack.c.l.b16 %v1031
      %v1056 = vunpack.c.l.b16 %v1032
      %v1057 = vunpack.c.l.b16 %v1033
      %v1058 = vunpack.c.l.b16 %v1034
      %v1059 = vunpack.c.l.b16 %v1035
      %v1060 = vunpack.c.l.b16 %v1036
      %v1061 = vunpack.c.l.b16 %v1037
      %v1062 = vunpack.c.l.b16 %v1038
      %v1063 = vpack.c.b16 %v1053, %v1052
      %v1064 = vpack.c.b16 %v1055, %v1054
      %v1065 = vpack.c.b16 %v1057, %v1056
      %v1066 = vpack.c.b16 %v1059, %v1058
      %v1067 = vpack.c.b16 %v1061, %v1060
      %v1068 = vpack.c.b16 %v1062, %v1062
      %v1069 = vrot.slane %v1063, 2
      %v1070 = vrot.slane %v1064, 2
      %v1071 = vsel %vm915, %v1069, %v1070
      %v1072 = vrot.slane %v1065, 2
      %v1073 = vsel %vm915, %v1070, %v1072
      %v1074 = vrot.slane %v1066, 2
      %v1075 = vsel %vm915, %v1072, %v1074
      %v1076 = vrot.slane %v1067, 2
      %v1077 = vsel %vm915, %v1074, %v1076
      %v1078 = vrot.slane %v1068, 2
      %v1079 = vsel %vm915, %v1076, %v1078
      %v1081 = vsel %vm297, %v1071, 0
      %v1084 = vsel %vm297, %v1073, 0
      %v1087 = vsel %vm297, %v1075, 0
      %v1090 = vsel %vm297, %v1077, 0
      %v1093 = vsel %vm297, %v1079, 0
      %v1096 = vsel %vm313, %v1040, 0
      %1098 = vmatprep.subr.bf16.mxu0 0
      %1099 = vmatpush1.bf16.msra.mxu0 %v1096
      %1100 = vmatprep.subr.bf16.mxu0 0
      %1101 = vmatpush1.bf16.msra.mxu0 0
      %1102 = vmatprep.subr.bf16.mxu0 0
      %1103 = vmatpush1.bf16.msra.mxu0 0
      %1104 = vmatprep.subr.bf16.mxu0 0
      %1105 = vmatpush1.bf16.msra.mxu0 0
      %1106 = vmatprep.subr.bf16.mxu0 0
      %1107 = vmatpush1.bf16.msra.mxu0 0
      %1108 = vmatprep.subr.bf16.mxu0 0
      %1109 = vmatpush1.bf16.msra.mxu0 0
      %1110 = vmatprep.subr.bf16.mxu0 0
      %1111 = vmatpush1.bf16.msra.mxu0 0
      %1112 = vmatprep.subr.bf16.mxu0 0
      %1113 = vmatpush1.bf16.msra.mxu0 0
      %1114 = vmatprep.subr.bf16.mxu0 0
      %1115 = vmatpush1.bf16.msra.mxu0 0
      %1116 = vmatprep.subr.bf16.mxu0 0
      %1117 = vmatpush1.bf16.msra.mxu0 0
      %1118 = vmatprep.subr.bf16.mxu0 0
      %1119 = vmatpush1.bf16.msra.mxu0 0
      %1120 = vmatprep.subr.bf16.mxu0 0
      %1121 = vmatpush1.bf16.msra.mxu0 0
      %1122 = vmatprep.subr.bf16.mxu0 0
      %1123 = vmatpush1.bf16.msra.mxu0 0
      %1124 = vmatprep.subr.bf16.mxu0 0
      %1125 = vmatpush1.bf16.msra.mxu0 0
      %1126 = vmatprep.subr.bf16.mxu0 0
      %1127 = vmatpush1.bf16.msra.mxu0 0
      %1128 = vmatprep.subr.bf16.mxu0 0
      %1129 = vmatpush1.bf16.msra.mxu0 0
      %1130 = vmatprep.mubr.bf16.mxu0 0
      %1131 = vmatmul.mubr.bf16.gmra.mrb[0].mxu0 %v1081
      %v1132 = vpop.f32.mrb[0].mxu0
      %v1133 = vadd.f32 0.0, %v1132
      %v1134 = vpop.f32.mrb[0].mxu0
      %v1135 = vpop.f32.mrb[0].mxu0
      %v1136 = vadd.f32 0.0, %v1135
      %v1137 = vpop.f32.mrb[0].mxu0
      %1138 = vmatprep.mubr.bf16.mxu0 0
      %1139 = vmatmul.mubr.bf16.gmra.mrb[0].mxu0 %v1084
      %v1140 = vpop.f32.mrb[0].mxu0
      %v1141 = vadd.f32 0.0, %v1140
      %v1142 = vpop.f32.mrb[0].mxu0
      %v1143 = vpop.f32.mrb[0].mxu0
      %v1144 = vadd.f32 0.0, %v1143
      %v1145 = vpop.f32.mrb[0].mxu0
      %1146 = vmatprep.mubr.bf16.mxu0 0
      %1147 = vmatmul.mubr.bf16.gmra.mrb[0].mxu0 %v1087
      %v1148 = vpop.f32.mrb[0].mxu0
      %v1149 = vadd.f32 0.0, %v1148
      %v1150 = vpop.f32.mrb[0].mxu0
      %v1151 = vpop.f32.mrb[0].mxu0
      %v1152 = vadd.f32 0.0, %v1151
      %v1153 = vpop.f32.mrb[0].mxu0
      %1154 = vmatprep.mubr.bf16.mxu0 0
      %1155 = vmatmul.mubr.bf16.gmra.mrb[0].mxu0 %v1090
      %v1156 = vpop.f32.mrb[0].mxu0
      %v1157 = vadd.f32 0.0, %v1156
      %v1158 = vpop.f32.mrb[0].mxu0
      %v1159 = vpop.f32.mrb[0].mxu0
      %v1160 = vadd.f32 0.0, %v1159
      %v1161 = vpop.f32.mrb[0].mxu0
      %1162 = vmatprep.mubr.bf16.mxu0 0
      %1163 = vmatmul.mubr.bf16.gmra.mrb[0].mxu0 %v1093
      %v1164 = vpop.f32.mrb[0].mxu0
      %v1165 = vadd.f32 0.0, %v1164
      %v1166 = vpop.f32.mrb[0].mxu0
      %v1167 = vpop.f32.mrb[0].mxu0
      %v1168 = vadd.f32 0.0, %v1167
      %v1169 = vpop.f32.mrb[0].mxu0
      %1170 = vdwg.mxu0
      %v1171 = vadd.f32 %v1018, %v1133
      %v1172 = vadd.f32 %v1019, %v1136
      %v1173 = vadd.f32 %v1020, %v1141
      %v1174 = vadd.f32 %v1021, %v1144
      %v1175 = vadd.f32 %v1022, %v1149
      %v1176 = vadd.f32 %v1023, %v1152
      %v1177 = vadd.f32 %v1024, %v1157
      %v1178 = vadd.f32 %v1025, %v1160
      %v1179 = vadd.f32 %v1026, %v1165
      %v1180 = vadd.f32 %v1027, %v1168
      %v1181 = vld [vmem:[%s199 + $0x30] sm:$0x7]
      %s1182 = scalar_lea.vmem %s2, 28
      %v1183 = vld [vmem:[%s1182] sm:$0xf]
      %v1185 = vunpack.c.l.b16 %v1181
      %v1186 = vpack.c.b16 %v1185, %v1185
      %vm1187 = vsmask.f32 5376
      %v1189 = vshrl.u32 %v1063, 16
      %v1191 = vrot.slane %v1189, 2
      %v1192 = vshll.u32 %v1063, 16
      %v1194 = vrot.slane %v1192, 3
      %v1195 = vor.u32 %v1191, %v1194
      %v1197 = vshrl.u32 %v1064, 16
      %v1199 = vrot.slane %v1197, 2
      %v1200 = vshll.u32 %v1064, 16
      %v1202 = vrot.slane %v1200, 3
      %v1203 = vor.u32 %v1199, %v1202
      %v1204 = vsel %vm1187, %v1195, %v1203
      %v1206 = vshrl.u32 %v1065, 16
      %v1208 = vrot.slane %v1206, 2
      %v1209 = vshll.u32 %v1065, 16
      %v1211 = vrot.slane %v1209, 3
      %v1212 = vor.u32 %v1208, %v1211
      %v1213 = vsel %vm1187, %v1203, %v1212
      %v1215 = vshrl.u32 %v1066, 16
      %v1217 = vrot.slane %v1215, 2
      %v1218 = vshll.u32 %v1066, 16
      %v1220 = vrot.slane %v1218, 3
      %v1221 = vor.u32 %v1217, %v1220
      %v1222 = vsel %vm1187, %v1212, %v1221
      %v1224 = vshrl.u32 %v1067, 16
      %v1226 = vrot.slane %v1224, 2
      %v1227 = vshll.u32 %v1067, 16
      %v1229 = vrot.slane %v1227, 3
      %v1230 = vor.u32 %v1226, %v1229
      %v1231 = vsel %vm1187, %v1221, %v1230
      %v1233 = vshrl.u32 %v1186, 16
      %v1235 = vrot.slane %v1233, 2
      %v1236 = vshll.u32 %v1186, 16
      %v1238 = vrot.slane %v1236, 3
      %v1239 = vor.u32 %v1235, %v1238
      %v1240 = vsel %vm1187, %v1230, %v1239
      %v1242 = vsel %vm297, %v1204, 0
      %v1245 = vsel %vm297, %v1213, 0
      %v1248 = vsel %vm297, %v1222, 0
      %v1251 = vsel %vm297, %v1231, 0
      %v1254 = vsel %vm297, %v1240, 0
      %v1257 = vsel %vm313, %v1183, 0
      %1259 = vmatprep.subr.bf16.mxu0 0
      %1260 = vmatpush1.bf16.msra.mxu0 %v1257
      %1261 = vmatprep.subr.bf16.mxu0 0
      %1262 = vmatpush1.bf16.msra.mxu0 0
      %1263 = vmatprep.subr.bf16.mxu0 0
      %1264 = vmatpush1.bf16.msra.mxu0 0
      %1265 = vmatprep.subr.bf16.mxu0 0
      %1266 = vmatpush1.bf16.msra.mxu0 0
      %1267 = vmatprep.subr.bf16.mxu0 0
      %1268 = vmatpush1.bf16.msra.mxu0 0
      %1269 = vmatprep.subr.bf16.mxu0 0
      %1270 = vmatpush1.bf16.msra.mxu0 0
      %1271 = vmatprep.subr.bf16.mxu0 0
      %1272 = vmatpush1.bf16.msra.mxu0 0
      %1273 = vmatprep.subr.bf16.mxu0 0
      %1274 = vmatpush1.bf16.msra.mxu0 0
      %1275 = vmatprep.subr.bf16.mxu0 0
      %1276 = vmatpush1.bf16.msra.mxu0 0
      %1277 = vmatprep.subr.bf16.mxu0 0
      %1278 = vmatpush1.bf16.msra.mxu0 0
      %1279 = vmatprep.subr.bf16.mxu0 0
      %1280 = vmatpush1.bf16.msra.mxu0 0
      %1281 = vmatprep.subr.bf16.mxu0 0
      %1282 = vmatpush1.bf16.msra.mxu0 0
      %1283 = vmatprep.subr.bf16.mxu0 0
      %1284 = vmatpush1.bf16.msra.mxu0 0
      %1285 = vmatprep.subr.bf16.mxu0 0
      %1286 = vmatpush1.bf16.msra.mxu0 0
      %1287 = vmatprep.subr.bf16.mxu0 0
      %1288 = vmatpush1.bf16.msra.mxu0 0
      %1289 = vmatprep.subr.bf16.mxu0 0
      %1290 = vmatpush1.bf16.msra.mxu0 0
      %1291 = vmatprep.mubr.bf16.mxu0 0
      %1292 = vmatmul.mubr.bf16.gmra.mrb[0].mxu0 %v1242
      %v1293 = vpop.f32.mrb[0].mxu0
      %v1294 = vadd.f32 0.0, %v1293
      %v1295 = vpop.f32.mrb[0].mxu0
      %v1296 = vpop.f32.mrb[0].mxu0
      %v1297 = vadd.f32 0.0, %v1296
      %v1298 = vpop.f32.mrb[0].mxu0
      %1299 = vmatprep.mubr.bf16.mxu0 0
      %1300 = vmatmul.mubr.bf16.gmra.mrb[0].mxu0 %v1245
      %v1301 = vpop.f32.mrb[0].mxu0
      %v1302 = vadd.f32 0.0, %v1301
      %v1303 = vpop.f32.mrb[0].mxu0
      %v1304 = vpop.f32.mrb[0].mxu0
      %v1305 = vadd.f32 0.0, %v1304
      %v1306 = vpop.f32.mrb[0].mxu0
      %1307 = vmatprep.mubr.bf16.mxu0 0
      %1308 = vmatmul.mubr.bf16.gmra.mrb[0].mxu0 %v1248
      %v1309 = vpop.f32.mrb[0].mxu0
      %v1310 = vadd.f32 0.0, %v1309
      %v1311 = vpop.f32.mrb[0].mxu0
      %v1312 = vpop.f32.mrb[0].mxu0
      %v1313 = vadd.f32 0.0, %v1312
      %v1314 = vpop.f32.mrb[0].mxu0
      %1315 = vmatprep.mubr.bf16.mxu0 0
      %1316 = vmatmul.mubr.bf16.gmra.mrb[0].mxu0 %v1251
      %v1317 = vpop.f32.mrb[0].mxu0
      %v1318 = vadd.f32 0.0, %v1317
      %v1319 = vpop.f32.mrb[0].mxu0
      %v1320 = vpop.f32.mrb[0].mxu0
      %v1321 = vadd.f32 0.0, %v1320
      %v1322 = vpop.f32.mrb[0].mxu0
      %1323 = vmatprep.mubr.bf16.mxu0 0
      %1324 = vmatmul.mubr.bf16.gmra.mrb[0].mxu0 %v1254
      %v1325 = vpop.f32.mrb[0].mxu0
      %v1326 = vadd.f32 0.0, %v1325
      %v1327 = vpop.f32.mrb[0].mxu0
      %v1328 = vpop.f32.mrb[0].mxu0
      %v1329 = vadd.f32 0.0, %v1328
      %v1330 = vpop.f32.mrb[0].mxu0
      %1331 = vdwg.mxu0
      %v1332 = vadd.f32 %v1171, %v1294
      %v1333 = vadd.f32 %v1172, %v1297
      %v1334 = vadd.f32 %v1173, %v1302
      %v1335 = vadd.f32 %v1174, %v1305
      %v1336 = vadd.f32 %v1175, %v1310
      %v1337 = vadd.f32 %v1176, %v1313
      %v1338 = vadd.f32 %v1177, %v1318
      %v1339 = vadd.f32 %v1178, %v1321
      %v1340 = vadd.f32 %v1179, %v1326
      %v1341 = vadd.f32 %v1180, %v1329
      %v1342 = vld [vmem:[%s199 + $0x8] sm:$0x8]
      %s1343 = scalar_lea.vmem %s2, 32
      %v1344 = vld [vmem:[%s1343] sm:$0xf]
      %v1346 = vunpack.c.l.b16 %v1342
      %v1347 = vpack.c.b16 %v1053, %v1346
      %vm1348 = vcmask 1044480
      %v1349 = vrot.slane %v1347, 3
      %v1350 = vrot.slane %v1064, 3
      %v1351 = vsel %vm1348, %v1349, %v1350
      %v1352 = vrot.slane %v1065, 3
      %v1353 = vsel %vm1348, %v1350, %v1352
      %v1354 = vrot.slane %v1066, 3
      %v1355 = vsel %vm1348, %v1352, %v1354
      %v1356 = vrot.slane %v1067, 3
      %v1357 = vsel %vm1348, %v1354, %v1356
      %v1358 = vrot.slane %v1186, 3
      %v1359 = vsel %vm1348, %v1356, %v1358
      %v1361 = vsel %vm297, %v1351, 0
      %v1364 = vsel %vm297, %v1353, 0
      %v1367 = vsel %vm297, %v1355, 0
      %v1370 = vsel %vm297, %v1357, 0
      %v1373 = vsel %vm297, %v1359, 0
      %v1376 = vsel %vm313, %v1344, 0
      %1378 = vmatprep.subr.bf16.mxu0 0
      %1379 = vmatpush1.bf16.msra.mxu0 %v1376
      %1380 = vmatprep.subr.bf16.mxu0 0
      %1381 = vmatpush1.bf16.msra.mxu0 0
      %1382 = vmatprep.subr.bf16.mxu0 0
      %1383 = vmatpush1.bf16.msra.mxu0 0
      %1384 = vmatprep.subr.bf16.mxu0 0
      %1385 = vmatpush1.bf16.msra.mxu0 0
      %1386 = vmatprep.subr.bf16.mxu0 0
      %1387 = vmatpush1.bf16.msra.mxu0 0
      %1388 = vmatprep.subr.bf16.mxu0 0
      %1389 = vmatpush1.bf16.msra.mxu0 0
      %1390 = vmatprep.subr.bf16.mxu0 0
      %1391 = vmatpush1.bf16.msra.mxu0 0
      %1392 = vmatprep.subr.bf16.mxu0 0
      %1393 = vmatpush1.bf16.msra.mxu0 0
      %1394 = vmatprep.subr.bf16.mxu0 0
      %1395 = vmatpush1.bf16.msra.mxu0 0
      %1396 = vmatprep.subr.bf16.mxu0 0
      %1397 = vmatpush1.bf16.msra.mxu0 0
      %1398 = vmatprep.subr.bf16.mxu0 0
      %1399 = vmatpush1.bf16.msra.mxu0 0
      %1400 = vmatprep.subr.bf16.mxu0 0
      %1401 = vmatpush1.bf16.msra.mxu0 0
      %1402 = vmatprep.subr.bf16.mxu0 0
      %1403 = vmatpush1.bf16.msra.mxu0 0
      %1404 = vmatprep.subr.bf16.mxu0 0
      %1405 = vmatpush1.bf16.msra.mxu0 0
      %1406 = vmatprep.subr.bf16.mxu0 0
      %1407 = vmatpush1.bf16.msra.mxu0 0
      %1408 = vmatprep.subr.bf16.mxu0 0
      %1409 = vmatpush1.bf16.msra.mxu0 0
      %1410 = vmatprep.mubr.bf16.mxu0 0
      %1411 = vmatmul.mubr.bf16.gmra.mrb[0].mxu0 %v1361
      %v1412 = vpop.f32.mrb[0].mxu0
      %v1413 = vadd.f32 0.0, %v1412
      %v1414 = vpop.f32.mrb[0].mxu0
      %v1415 = vpop.f32.mrb[0].mxu0
      %v1416 = vadd.f32 0.0, %v1415
      %v1417 = vpop.f32.mrb[0].mxu0
      %1418 = vmatprep.mubr.bf16.mxu0 0
      %1419 = vmatmul.mubr.bf16.gmra.mrb[0].mxu0 %v1364
      %v1420 = vpop.f32.mrb[0].mxu0
      %v1421 = vadd.f32 0.0, %v1420
      %v1422 = vpop.f32.mrb[0].mxu0
      %v1423 = vpop.f32.mrb[0].mxu0
      %v1424 = vadd.f32 0.0, %v1423
      %v1425 = vpop.f32.mrb[0].mxu0
      %1426 = vmatprep.mubr.bf16.mxu0 0
      %1427 = vmatmul.mubr.bf16.gmra.mrb[0].mxu0 %v1367
      %v1428 = vpop.f32.mrb[0].mxu0
      %v1429 = vadd.f32 0.0, %v1428
      %v1430 = vpop.f32.mrb[0].mxu0
      %v1431 = vpop.f32.mrb[0].mxu0
      %v1432 = vadd.f32 0.0, %v1431
      %v1433 = vpop.f32.mrb[0].mxu0
      %1434 = vmatprep.mubr.bf16.mxu0 0
      %1435 = vmatmul.mubr.bf16.gmra.mrb[0].mxu0 %v1370
      %v1436 = vpop.f32.mrb[0].mxu0
      %v1437 = vadd.f32 0.0, %v1436
      %v1438 = vpop.f32.mrb[0].mxu0
      %v1439 = vpop.f32.mrb[0].mxu0
      %v1440 = vadd.f32 0.0, %v1439
      %v1441 = vpop.f32.mrb[0].mxu0
      %1442 = vmatprep.mubr.bf16.mxu0 0
      %1443 = vmatmul.mubr.bf16.gmra.mrb[0].mxu0 %v1373
      %v1444 = vpop.f32.mrb[0].mxu0
      %v1445 = vadd.f32 0.0, %v1444
      %v1446 = vpop.f32.mrb[0].mxu0
      %v1447 = vpop.f32.mrb[0].mxu0
      %v1448 = vadd.f32 0.0, %v1447
      %v1449 = vpop.f32.mrb[0].mxu0
      %1450 = vdwg.mxu0
      %v1451 = vadd.f32 %v1332, %v1413
      %v1452 = vadd.f32 %v1333, %v1416
      %v1453 = vadd.f32 %v1334, %v1421
      %v1454 = vadd.f32 %v1335, %v1424
      %v1455 = vadd.f32 %v1336, %v1429
      %v1456 = vadd.f32 %v1337, %v1432
      %v1457 = vadd.f32 %v1338, %v1437
      %v1458 = vadd.f32 %v1339, %v1440
      %v1459 = vadd.f32 %v1340, %v1445
      %v1460 = vadd.f32 %v1341, %v1448
      %v1461 = vpack.c.bf16 %v1452, %v1451
      %v1462 = vpack.c.bf16 %v1454, %v1453
      %v1463 = vpack.c.bf16 %v1456, %v1455
      %v1464 = vpack.c.bf16 %v1458, %v1457
      %v1465 = vpack.c.bf16 %v1460, %v1459
      %v1471 = vunpack.c.l.b16 %v1461
      %v1472 = vunpack.c.h.b16 %v1461
      %v1473 = vunpack.c.l.b16 %v1462
      %v1474 = vunpack.c.h.b16 %v1462
      %v1475 = vunpack.c.l.b16 %v1463
      %v1476 = vunpack.c.h.b16 %v1463
      %v1477 = vunpack.c.l.b16 %v1464
      %v1478 = vunpack.c.h.b16 %v1464
      %v1479 = vunpack.c.l.b16 %v1465
      %v1480 = vunpack.c.h.b16 %v1465
      %v1481 = vpack.c.b16 %v1471, %v1471
      %v1482 = vpack.c.b16 %v1472, %v1472
      %v1483 = vpack.c.b16 %v1473, %v1473
      %v1484 = vpack.c.b16 %v1474, %v1474
      %v1485 = vpack.c.b16 %v1475, %v1475
      %v1486 = vpack.c.b16 %v1476, %v1476
      %v1487 = vpack.c.b16 %v1477, %v1477
      %v1488 = vpack.c.b16 %v1478, %v1478
      %v1489 = vpack.c.b16 %v1479, %v1479
      %v1490 = vpack.c.b16 %v1480, %v1480
      %1501 = vst [vmem:[%s204] sm:$0xf] %v1481
      %1502 = vst [vmem:[%s204 + $0x4] sm:$0xf] %v1482
      %1503 = vst [vmem:[%s204 + $0x8] sm:$0xf] %v1483
      %1504 = vst [vmem:[%s204 + $0xc] sm:$0xf] %v1484
      %1505 = vst [vmem:[%s204 + $0x10] sm:$0xf] %v1485
      %1506 = vst [vmem:[%s204 + $0x14] sm:$0xf] %v1486
      %1507 = vst [vmem:[%s204 + $0x18] sm:$0xf] %v1487
      %1508 = vst [vmem:[%s204 + $0x1c] sm:$0xf] %v1488
      %1509 = vst [vmem:[%s204 + $0x20] sm:$0xf] %v1489
      %1510 = vst [vmem:[%s204 + $0x24] sm:$0xf] %v1490
      %v1511 = vld [vmem:[%s1] sm:$0xff]
      %v1512 = vld [vmem:[%s1 + $0x8] sm:$0xff]
      %v1513 = vld [vmem:[%s1 + $0x10] sm:$0xff]
      %v1514 = vld [vmem:[%s1 + $0x18] sm:$0xff]
      %v1515 = vld [vmem:[%s1 + $0x20] sm:$0xff]
      %v1516 = vld [vmem:[%s1 + $0x28] sm:$0xff]
      %v1517 = vld [vmem:[%s1 + $0x30] sm:$0xff]
      %v1518 = vld [vmem:[%s1 + $0x38] sm:$0xff]
      %v1519 = vld [vmem:[%s1 + $0x40] sm:$0xff]
      %v1520 = vld [vmem:[%s1 + $0x48] sm:$0xff]
      %1522 = vset.pattern.permute.xlu0 0
      %1523 = vperm.xlu0 %1522, %v1511
      %v1524 = vpop.permute.xlu0 %1523
      %1527 = vset.pattern.permute.xlu0 0
      %1528 = vperm.xlu0 %1527, %v1512
      %v1529 = vpop.permute.xlu0 %1528
      %1532 = vset.pattern.permute.xlu0 0
      %1533 = vperm.xlu0 %1532, %v1513
      %v1534 = vpop.permute.xlu0 %1533
      %1537 = vset.pattern.permute.xlu0 0
      %1538 = vperm.xlu0 %1537, %v1514
      %v1539 = vpop.permute.xlu0 %1538
      %1542 = vset.pattern.permute.xlu0 0
      %1543 = vperm.xlu0 %1542, %v1515
      %v1544 = vpop.permute.xlu0 %1543
      %1547 = vset.pattern.permute.xlu0 0
      %1548 = vperm.xlu0 %1547, %v1516
      %v1549 = vpop.permute.xlu0 %1548
      %1552 = vset.pattern.permute.xlu0 0
      %1553 = vperm.xlu0 %1552, %v1517
      %v1554 = vpop.permute.xlu0 %1553
      %1557 = vset.pattern.permute.xlu0 0
      %1558 = vperm.xlu0 %1557, %v1518
      %v1559 = vpop.permute.xlu0 %1558
      %1562 = vset.pattern.permute.xlu0 0
      %1563 = vperm.xlu0 %1562, %v1519
      %v1564 = vpop.permute.xlu0 %1563
      %1567 = vset.pattern.permute.xlu0 0
      %1568 = vperm.xlu0 %1567, %v1520
      %v1569 = vpop.permute.xlu0 %1568
      %v1571 = vmul.f32 %v1451, %v1524
      %v1572 = vmul.f32 %v1452, %v1529
      %v1573 = vmul.f32 %v1453, %v1534
      %v1574 = vmul.f32 %v1454, %v1539
      %v1575 = vmul.f32 %v1455, %v1544
      %v1576 = vmul.f32 %v1456, %v1549
      %v1577 = vmul.f32 %v1457, %v1554
      %v1578 = vmul.f32 %v1458, %v1559
      %v1579 = vmul.f32 %v1459, %v1564
      %v1580 = vmul.f32 %v1460, %v1569
      %v1581 = vadd.f32 %v1571, %v1572
      %v1582 = vadd.f32 %v1581, %v1573
      %v1583 = vadd.f32 %v1582, %v1574
      %v1584 = vadd.f32 %v1583, %v1575
      %v1585 = vadd.f32 %v1584, %v1576
      %v1586 = vadd.f32 %v1585, %v1577
      %v1587 = vadd.f32 %v1586, %v1578
      %v1588 = vadd.f32 %v1587, %v1579
      %v1589 = vadd.f32 %v1588, %v1580
      %v1590 = vrot.slane %v1589, 4
      %v1591 = vadd.f32 %v1589, %v1590
      %v1592 = vrot.slane %v1591, 2
      %v1593 = vadd.f32 %v1591, %v1592
      %v1594 = vrot.slane %v1593, 1
      %v1595 = vadd.f32 %v1593, %v1594
      %1596 = vst [vmem:[%s208] sm:$0x1] %v1595
      %v1597 = vmul.f32 %v1451, %v1451
      %v1598 = vmul.f32 %v1452, %v1452
      %v1599 = vmul.f32 %v1453, %v1453
      %v1600 = vmul.f32 %v1454, %v1454
      %v1601 = vmul.f32 %v1455, %v1455
      %v1602 = vmul.f32 %v1456, %v1456
      %v1603 = vmul.f32 %v1457, %v1457
      %v1604 = vmul.f32 %v1458, %v1458
      %v1605 = vmul.f32 %v1459, %v1459
      %v1606 = vmul.f32 %v1460, %v1460
      %v1607 = vmul.f32 %v1597, %v1524
      %v1608 = vmul.f32 %v1598, %v1529
      %v1609 = vmul.f32 %v1599, %v1534
      %v1610 = vmul.f32 %v1600, %v1539
      %v1611 = vmul.f32 %v1601, %v1544
      %v1612 = vmul.f32 %v1602, %v1549
      %v1613 = vmul.f32 %v1603, %v1554
      %v1614 = vmul.f32 %v1604, %v1559
      %v1615 = vmul.f32 %v1605, %v1564
      %v1616 = vmul.f32 %v1606, %v1569
      %v1617 = vadd.f32 %v1607, %v1608
      %v1618 = vadd.f32 %v1617, %v1609
      %v1619 = vadd.f32 %v1618, %v1610
      %v1620 = vadd.f32 %v1619, %v1611
      %v1621 = vadd.f32 %v1620, %v1612
      %v1622 = vadd.f32 %v1621, %v1613
      %v1623 = vadd.f32 %v1622, %v1614
      %v1624 = vadd.f32 %v1623, %v1615
      %v1625 = vadd.f32 %v1624, %v1616
      %v1626 = vrot.slane %v1625, 4
      %v1627 = vadd.f32 %v1625, %v1626
      %v1628 = vrot.slane %v1627, 2
      %v1629 = vadd.f32 %v1627, %v1628
      %v1630 = vrot.slane %v1629, 1
      %v1631 = vadd.f32 %v1629, %v1630
      %1632 = vst [vmem:[%s208 + $0x1] sm:$0x1] %v1631
      %p1633 = scmp.lt.s32.totalorder %s16, 1
      %s1634 = scalar_select %p1633, %s16, 1
      %s1635 = smul.addr %s1634, 10
      %s1636 = smul.addr %s1635, 4
      %s1637 = scalar_lea.vmem %s3, %s1636
      %p1638 = scmp.lt.s32.totalorder %s16, 1
      %s1639 = scalar_select %p1638, %s16, 1
      %s1640 = smul.addr %s1639, 2
      %s1641 = scalar_lea.vmem %s4, %s1640
      // Predicated region
      $region33: #{yolop_head_forward.7} parent=31 // pred_check
        %p1642 = pneg %p102
      $region34: #{yolop_head_forward.7} parent=31 // pred_check_branch
        %1644 = sbr.rel (%p1642) target = $region36
      $region35: #{yolop_head_forward.7} parent=31 // pred_region
        _
      $region36: #{yolop_head_forward.7} parent=31 // pred_fallthru
        _
      // Predicated region
      $region37: #{yolop_head_forward.7} parent=31 // pred_check
        %p1645 = pneg %p128
      $region38: #{yolop_head_forward.7} parent=31 // pred_check_branch
        %1647 = sbr.rel (%p1645) target = $region40
      $region39: #{yolop_head_forward.7} parent=31 // pred_region
        _
      $region40: #{yolop_head_forward.7} parent=31 // pred_fallthru
        _
    $region32: #{yolop_head_forward.7} parent=5 // pred_fallthru
      _
    %p1648 = scmp.le.s32.totalorder 2, %s11
    // Predicated region
    $region41: #{yolop_head_forward.7} parent=5 // pred_check
      %p1649 = pneg %p1648
    $region42: #{yolop_head_forward.7} parent=5 // pred_check_branch
      %1651 = sbr.rel (%p1649) target = $region44
    $region43: #{yolop_head_forward.7} parent=5 // pred_region
      %s1652 = ssub.s32 %s11, 2
      // Predicated region
      $region45: #{yolop_head_forward.7} parent=43 // pred_check
        %p1653 = pneg %p108
      $region46: #{yolop_head_forward.7} parent=43 // pred_check_branch
        %1655 = sbr.rel (%p1653) target = $region48
      $region47: #{yolop_head_forward.7} parent=43 // pred_region
        %p1656 = scmp.lt.s32.totalorder %s17, 1
        %s1657 = scalar_select %p1656, %s17, 1
        %s1658 = smul.addr %s1657, 10
        %s1659 = smul.addr %s1658, 4
        %s1660 = scalar_lea.vmem %s3, %s1659
      $region48: #{yolop_head_forward.7} parent=43 // pred_fallthru
        _
      // Predicated region
      $region49: #{yolop_head_forward.7} parent=43 // pred_check
        %p1661 = pneg %p134
      $region50: #{yolop_head_forward.7} parent=43 // pred_check_branch
        %1663 = sbr.rel (%p1661) target = $region52
      $region51: #{yolop_head_forward.7} parent=43 // pred_region
        %p1664 = scmp.lt.s32.totalorder %s17, 1
        %s1665 = scalar_select %p1664, %s17, 1
        %s1666 = smul.addr %s1665, 2
        %s1667 = scalar_lea.vmem %s4, %s1666
      $region52: #{yolop_head_forward.7} parent=43 // pred_fallthru
        _
    $region44: #{yolop_head_forward.7} parent=5 // pred_fallthru
      _
  $region6: #{yolop_head_forward.7} parent=0 // loop_footer
    %s15 = sadd.s32 1, %s11
  $region7: #{yolop_head_forward.7} parent=0 // loop_footer_branch
    %10 = sbr.rel target = $region3
  $region8: #{yolop_head_forward.7} parent=0 // loop_exit
    _

// kernel: yolop_head_forward.9
$region0: #{yolop_head_forward.9}
  #allocation0 [shape = 'u32[]', space=smem, size = 0x4, offset = 0x4, fixed_abs, tag = 'smem constant byte address 0x4 - core index']
  #allocation1 [shape = 'u32[144,128]{1,0:T(1,128)}', space=vmem, size = 0x12000, scoped, tag = 'internal scratch']
  %s0 = inlined_call_operand.vmem [shape: bf16[512,2], index: 0, kind: input, shape index: {}]
  %s1 = inlined_call_operand.vmem [shape: bf16[512,128], index: 1, kind: input, shape index: {}]
  %s2 = inlined_call_operand.vmem [shape: bf16[2,128], index: 2, kind: input, shape index: {}]
  %s3 = inlined_call_operand.vmem [shape: f32[1,128], index: 3, kind: input, shape index: {}]
  %s4 = inlined_call_operand.hbm [shape: f32[512,128], index: 4, kind: output, shape index: {}]
  %s5 = sld [smem:[#allocation0]]
  $region26: #{yolop_head_forward.9} parent=0
    _
  %s7 = ssub.s32 1, %s5
  %s8 = scalar_select 0, %s7, %s5
  $region1: #{yolop_head_forward.9} parent=0
    #allocation2 [shape = 'u8[262144]{0}', space=vmem, size = 0x40000, scoped, tag = 'output window, operand 0, single buffered']
    #allocation3 [shape = 's32[1]{0}', space=sflag, size = 0x4, scoped, tag = 'scoped memory for yolop_head_forward.9']
    %9 = vsyncpa [#allocation3], 0
    // Predicated region
    $region2: #{yolop_head_forward.9} parent=1 // pred_check
      _
    $region3: #{yolop_head_forward.9} parent=1 // pred_check_branch
      %11 = sbr.rel (0) target = $region5
    $region4: #{yolop_head_forward.9} parent=1 // pred_region
      _
    $region5: #{yolop_head_forward.9} parent=1 // pred_fallthru
      _
    // Predicated region
    $region6: #{yolop_head_forward.9} parent=1 // pred_check
      _
    $region7: #{yolop_head_forward.9} parent=1 // pred_check_branch
      %13 = sbr.rel (0) target = $region9
    $region8: #{yolop_head_forward.9} parent=1 // pred_region
      _
    $region9: #{yolop_head_forward.9} parent=1 // pred_fallthru
      _
    // Predicated region
    $region10: #{yolop_head_forward.9} parent=1 // pred_check
      _
    $region11: #{yolop_head_forward.9} parent=1 // pred_check_branch
      %15 = sbr.rel (0) target = $region13
    $region12: #{yolop_head_forward.9} parent=1 // pred_region
      _
    $region13: #{yolop_head_forward.9} parent=1 // pred_fallthru
      _
    // Predicated region
    $region14: #{yolop_head_forward.9} parent=1 // pred_check
      _
    $region15: #{yolop_head_forward.9} parent=1 // pred_check_branch
      %17 = sbr.rel (0) target = $region17
    $region16: #{yolop_head_forward.9} parent=1 // pred_region
      _
    $region17: #{yolop_head_forward.9} parent=1 // pred_fallthru
      _
    %v19 = vld [vmem:[%s0] sm:$0xf]
    %v20 = vld [vmem:[%s0 + $0x4] sm:$0xf]
    %v21 = vld [vmem:[%s0 + $0x8] sm:$0xf]
    %v22 = vld [vmem:[%s0 + $0xc] sm:$0xf]
    %v23 = vld [vmem:[%s0 + $0x10] sm:$0xf]
    %v24 = vld [vmem:[%s0 + $0x14] sm:$0xf]
    %v25 = vld [vmem:[%s0 + $0x18] sm:$0xf]
    %v26 = vld [vmem:[%s0 + $0x1c] sm:$0xf]
    %v27 = vld [vmem:[%s0 + $0x20] sm:$0xf]
    %v28 = vld [vmem:[%s0 + $0x24] sm:$0xf]
    %v29 = vld [vmem:[%s0 + $0x28] sm:$0xf]
    %v30 = vld [vmem:[%s0 + $0x2c] sm:$0xf]
    %v31 = vld [vmem:[%s0 + $0x30] sm:$0xf]
    %v32 = vld [vmem:[%s0 + $0x34] sm:$0xf]
    %v33 = vld [vmem:[%s0 + $0x38] sm:$0xf]
    %v34 = vld [vmem:[%s0 + $0x3c] sm:$0xf]
    %v35 = vld [vmem:[%s0 + $0x40] sm:$0xf]
    %v36 = vld [vmem:[%s0 + $0x44] sm:$0xf]
    %v37 = vld [vmem:[%s0 + $0x48] sm:$0xf]
    %v38 = vld [vmem:[%s0 + $0x4c] sm:$0xf]
    %v39 = vld [vmem:[%s0 + $0x50] sm:$0xf]
    %v40 = vld [vmem:[%s0 + $0x54] sm:$0xf]
    %v41 = vld [vmem:[%s0 + $0x58] sm:$0xf]
    %v42 = vld [vmem:[%s0 + $0x5c] sm:$0xf]
    %v43 = vld [vmem:[%s0 + $0x60] sm:$0xf]
    %v44 = vld [vmem:[%s0 + $0x64] sm:$0xf]
    %v45 = vld [vmem:[%s0 + $0x68] sm:$0xf]
    %v46 = vld [vmem:[%s0 + $0x6c] sm:$0xf]
    %v47 = vld [vmem:[%s0 + $0x70] sm:$0xf]
    %v48 = vld [vmem:[%s0 + $0x74] sm:$0xf]
    %v49 = vld [vmem:[%s0 + $0x78] sm:$0xf]
    %v50 = vld [vmem:[%s0 + $0x7c] sm:$0xf]
    %v51 = vld [vmem:[%s0 + $0x80] sm:$0xf]
    %v52 = vld [vmem:[%s0 + $0x84] sm:$0xf]
    %v53 = vld [vmem:[%s0 + $0x88] sm:$0xf]
    %v54 = vld [vmem:[%s0 + $0x8c] sm:$0xf]
    %v55 = vld [vmem:[%s0 + $0x90] sm:$0xf]
    %v56 = vld [vmem:[%s0 + $0x94] sm:$0xf]
    %v57 = vld [vmem:[%s0 + $0x98] sm:$0xf]
    %v58 = vld [vmem:[%s0 + $0x9c] sm:$0xf]
    %v59 = vld [vmem:[%s0 + $0xa0] sm:$0xf]
    %v60 = vld [vmem:[%s0 + $0xa4] sm:$0xf]
    %v61 = vld [vmem:[%s0 + $0xa8] sm:$0xf]
    %v62 = vld [vmem:[%s0 + $0xac] sm:$0xf]
    %v63 = vld [vmem:[%s0 + $0xb0] sm:$0xf]
    %v64 = vld [vmem:[%s0 + $0xb4] sm:$0xf]
    %v65 = vld [vmem:[%s0 + $0xb8] sm:$0xf]
    %v66 = vld [vmem:[%s0 + $0xbc] sm:$0xf]
    %v67 = vld [vmem:[%s0 + $0xc0] sm:$0xf]
    %v68 = vld [vmem:[%s0 + $0xc4] sm:$0xf]
    %v69 = vld [vmem:[%s0 + $0xc8] sm:$0xf]
    %v70 = vld [vmem:[%s0 + $0xcc] sm:$0xf]
    %v71 = vld [vmem:[%s0 + $0xd0] sm:$0xf]
    %v72 = vld [vmem:[%s0 + $0xd4] sm:$0xf]
    %v73 = vld [vmem:[%s0 + $0xd8] sm:$0xf]
    %v74 = vld [vmem:[%s0 + $0xdc] sm:$0xf]
    %v75 = vld [vmem:[%s0 + $0xe0] sm:$0xf]
    %v76 = vld [vmem:[%s0 + $0xe4] sm:$0xf]
    %v77 = vld [vmem:[%s0 + $0xe8] sm:$0xf]
    %v78 = vld [vmem:[%s0 + $0xec] sm:$0xf]
    %v79 = vld [vmem:[%s0 + $0xf0] sm:$0xf]
    %v80 = vld [vmem:[%s0 + $0xf4] sm:$0xf]
    %v81 = vld [vmem:[%s0 + $0xf8] sm:$0xf]
    %v82 = vld [vmem:[%s0 + $0xfc] sm:$0xf]
    %v83 = vld [vmem:[%s2] sm:$0x1]
    %v84 = vld [vmem:[%s3] sm:$0x1]
    %v86 = vlaneseq
    %v87 = vshrl.u32 %v86, 7
    %v88 = vsub.s32 0, %v87
    %v89 = vrot.slane %v84, %v88
    %v155 = vunpack.c.l.b16 %v19
    %v156 = vunpack.c.l.b16 %v20
    %v157 = vunpack.c.l.b16 %v21
    %v158 = vunpack.c.l.b16 %v22
    %v159 = vunpack.c.l.b16 %v23
    %v160 = vunpack.c.l.b16 %v24
    %v161 = vunpack.c.l.b16 %v25
    %v162 = vunpack.c.l.b16 %v26
    %v163 = vunpack.c.l.b16 %v27
    %v164 = vunpack.c.l.b16 %v28
    %v165 = vunpack.c.l.b16 %v29
    %v166 = vunpack.c.l.b16 %v30
    %v167 = vunpack.c.l.b16 %v31
    %v168 = vunpack.c.l.b16 %v32
    %v169 = vunpack.c.l.b16 %v33
    %v170 = vunpack.c.l.b16 %v34
    %v171 = vunpack.c.l.b16 %v35
    %v172 = vunpack.c.l.b16 %v36
    %v173 = vunpack.c.l.b16 %v37
    %v174 = vunpack.c.l.b16 %v38
    %v175 = vunpack.c.l.b16 %v39
    %v176 = vunpack.c.l.b16 %v40
    %v177 = vunpack.c.l.b16 %v41
    %v178 = vunpack.c.l.b16 %v42
    %v179 = vunpack.c.l.b16 %v43
    %v180 = vunpack.c.l.b16 %v44
    %v181 = vunpack.c.l.b16 %v45
    %v182 = vunpack.c.l.b16 %v46
    %v183 = vunpack.c.l.b16 %v47
    %v184 = vunpack.c.l.b16 %v48
    %v185 = vunpack.c.l.b16 %v49
    %v186 = vunpack.c.l.b16 %v50
    %v187 = vunpack.c.l.b16 %v51
    %v188 = vunpack.c.l.b16 %v52
    %v189 = vunpack.c.l.b16 %v53
    %v190 = vunpack.c.l.b16 %v54
    %v191 = vunpack.c.l.b16 %v55
    %v192 = vunpack.c.l.b16 %v56
    %v193 = vunpack.c.l.b16 %v57
    %v194 = vunpack.c.l.b16 %v58
    %v195 = vunpack.c.l.b16 %v59
    %v196 = vunpack.c.l.b16 %v60
    %v197 = vunpack.c.l.b16 %v61
    %v198 = vunpack.c.l.b16 %v62
    %v199 = vunpack.c.l.b16 %v63
    %v200 = vunpack.c.l.b16 %v64
    %v201 = vunpack.c.l.b16 %v65
    %v202 = vunpack.c.l.b16 %v66
    %v203 = vunpack.c.l.b16 %v67
    %v204 = vunpack.c.l.b16 %v68
    %v205 = vunpack.c.l.b16 %v69
    %v206 = vunpack.c.l.b16 %v70
    %v207 = vunpack.c.l.b16 %v71
    %v208 = vunpack.c.l.b16 %v72
    %v209 = vunpack.c.l.b16 %v73
    %v210 = vunpack.c.l.b16 %v74
    %v211 = vunpack.c.l.b16 %v75
    %v212 = vunpack.c.l.b16 %v76
    %v213 = vunpack.c.l.b16 %v77
    %v214 = vunpack.c.l.b16 %v78
    %v215 = vunpack.c.l.b16 %v79
    %v216 = vunpack.c.l.b16 %v80
    %v217 = vunpack.c.l.b16 %v81
    %v218 = vunpack.c.l.b16 %v82
    %v219 = vpack.c.b16 %v156, %v155
    %v220 = vpack.c.b16 %v158, %v157
    %v221 = vpack.c.b16 %v160, %v159
    %v222 = vpack.c.b16 %v162, %v161
    %v223 = vpack.c.b16 %v164, %v163
    %v224 = vpack.c.b16 %v166, %v165
    %v225 = vpack.c.b16 %v168, %v167
    %v226 = vpack.c.b16 %v170, %v169
    %v227 = vpack.c.b16 %v172, %v171
    %v228 = vpack.c.b16 %v174, %v173
    %v229 = vpack.c.b16 %v176, %v175
    %v230 = vpack.c.b16 %v178, %v177
    %v231 = vpack.c.b16 %v180, %v179
    %v232 = vpack.c.b16 %v182, %v181
    %v233 = vpack.c.b16 %v184, %v183
    %v234 = vpack.c.b16 %v186, %v185
    %v235 = vpack.c.b16 %v188, %v187
    %v236 = vpack.c.b16 %v190, %v189
    %v237 = vpack.c.b16 %v192, %v191
    %v238 = vpack.c.b16 %v194, %v193
    %v239 = vpack.c.b16 %v196, %v195
    %v240 = vpack.c.b16 %v198, %v197
    %v241 = vpack.c.b16 %v200, %v199
    %v242 = vpack.c.b16 %v202, %v201
    %v243 = vpack.c.b16 %v204, %v203
    %v244 = vpack.c.b16 %v206, %v205
    %v245 = vpack.c.b16 %v208, %v207
    %v246 = vpack.c.b16 %v210, %v209
    %v247 = vpack.c.b16 %v212, %v211
    %v248 = vpack.c.b16 %v214, %v213
    %v249 = vpack.c.b16 %v216, %v215
    %v250 = vpack.c.b16 %v218, %v217
    %vm251 = vcmask 15360
    %v253 = vsel %vm251, %v219, 0
    %v256 = vsel %vm251, %v220, 0
    %v259 = vsel %vm251, %v221, 0
    %v262 = vsel %vm251, %v222, 0
    %v265 = vsel %vm251, %v223, 0
    %v268 = vsel %vm251, %v224, 0
    %v271 = vsel %vm251, %v225, 0
    %v274 = vsel %vm251, %v226, 0
    %v277 = vsel %vm251, %v227, 0
    %v280 = vsel %vm251, %v228, 0
    %v283 = vsel %vm251, %v229, 0
    %v286 = vsel %vm251, %v230, 0
    %v289 = vsel %vm251, %v231, 0
    %v292 = vsel %vm251, %v232, 0
    %v295 = vsel %vm251, %v233, 0
    %v298 = vsel %vm251, %v234, 0
    %v301 = vsel %vm251, %v235, 0
    %v304 = vsel %vm251, %v236, 0
    %v307 = vsel %vm251, %v237, 0
    %v310 = vsel %vm251, %v238, 0
    %v313 = vsel %vm251, %v239, 0
    %v316 = vsel %vm251, %v240, 0
    %v319 = vsel %vm251, %v241, 0
    %v322 = vsel %vm251, %v242, 0
    %v325 = vsel %vm251, %v243, 0
    %v328 = vsel %vm251, %v244, 0
    %v331 = vsel %vm251, %v245, 0
    %v334 = vsel %vm251, %v246, 0
    %v337 = vsel %vm251, %v247, 0
    %v340 = vsel %vm251, %v248, 0
    %v343 = vsel %vm251, %v249, 0
    %v346 = vsel %vm251, %v250, 0
    %vm348 = vcmask 1040384
    %v350 = vsel %vm348, %v83, 0
    %352 = vmatprep.subr.bf16.mxu0 0
    %353 = vmatpush1.bf16.msra.mxu0 %v350
    %354 = vmatprep.subr.bf16.mxu0 0
    %355 = vmatpush1.bf16.msra.mxu0 0
    %356 = vmatprep.subr.bf16.mxu0 0
    %357 = vmatpush1.bf16.msra.mxu0 0
    %358 = vmatprep.subr.bf16.mxu0 0
    %359 = vmatpush1.bf16.msra.mxu0 0
    %360 = vmatprep.subr.bf16.mxu0 0
    %361 = vmatpush1.bf16.msra.mxu0 0
    %362 = vmatprep.subr.bf16.mxu0 0
    %363 = vmatpush1.bf16.msra.mxu0 0
    %364 = vmatprep.subr.bf16.mxu0 0
    %365 = vmatpush1.bf16.msra.mxu0 0
    %366 = vmatprep.subr.bf16.mxu0 0
    %367 = vmatpush1.bf16.msra.mxu0 0
    %368 = vmatprep.subr.bf16.mxu0 0
    %369 = vmatpush1.bf16.msra.mxu0 0
    %370 = vmatprep.subr.bf16.mxu0 0
    %371 = vmatpush1.bf16.msra.mxu0 0
    %372 = vmatprep.subr.bf16.mxu0 0
    %373 = vmatpush1.bf16.msra.mxu0 0
    %374 = vmatprep.subr.bf16.mxu0 0
    %375 = vmatpush1.bf16.msra.mxu0 0
    %376 = vmatprep.subr.bf16.mxu0 0
    %377 = vmatpush1.bf16.msra.mxu0 0
    %378 = vmatprep.subr.bf16.mxu0 0
    %379 = vmatpush1.bf16.msra.mxu0 0
    %380 = vmatprep.subr.bf16.mxu0 0
    %381 = vmatpush1.bf16.msra.mxu0 0
    %382 = vmatprep.subr.bf16.mxu0 0
    %383 = vmatpush1.bf16.msra.mxu0 0
    %384 = vmatprep.mubr.bf16.mxu0 0
    %385 = vmatmul.mubr.bf16.gmra.mrb[0].mxu0 %v253
    %v386 = vpop.f32.mrb[0].mxu0
    %v387 = vadd.f32 %v89, %v386
    %v388 = vpop.f32.mrb[0].mxu0
    %v389 = vpop.f32.mrb[0].mxu0
    %v390 = vadd.f32 %v89, %v389
    %v391 = vpop.f32.mrb[0].mxu0
    %392 = vmatprep.mubr.bf16.mxu0 0
    %393 = vmatmul.mubr.bf16.gmra.mrb[0].mxu0 %v256
    %v394 = vpop.f32.mrb[0].mxu0
    %v395 = vadd.f32 %v89, %v394
    %v396 = vpop.f32.mrb[0].mxu0
    %v397 = vpop.f32.mrb[0].mxu0
    %v398 = vadd.f32 %v89, %v397
    %v399 = vpop.f32.mrb[0].mxu0
    %400 = vmatprep.mubr.bf16.mxu0 0
    %401 = vmatmul.mubr.bf16.gmra.mrb[0].mxu0 %v259
    %v402 = vpop.f32.mrb[0].mxu0
    %v403 = vadd.f32 %v89, %v402
    %v404 = vpop.f32.mrb[0].mxu0
    %v405 = vpop.f32.mrb[0].mxu0
    %v406 = vadd.f32 %v89, %v405
    %v407 = vpop.f32.mrb[0].mxu0
    %408 = vmatprep.mubr.bf16.mxu0 0
    %409 = vmatmul.mubr.bf16.gmra.mrb[0].mxu0 %v262
    %v410 = vpop.f32.mrb[0].mxu0
    %v411 = vadd.f32 %v89, %v410
    %v412 = vpop.f32.mrb[0].mxu0
    %v413 = vpop.f32.mrb[0].mxu0
    %v414 = vadd.f32 %v89, %v413
    %v415 = vpop.f32.mrb[0].mxu0
    %416 = vmatprep.mubr.bf16.mxu0 0
    %417 = vmatmul.mubr.bf16.gmra.mrb[0].mxu0 %v265
    %v418 = vpop.f32.mrb[0].mxu0
    %v419 = vadd.f32 %v89, %v418
    %v420 = vpop.f32.mrb[0].mxu0
    %v421 = vpop.f32.mrb[0].mxu0
    %v422 = vadd.f32 %v89, %v421
    %v423 = vpop.f32.mrb[0].mxu0
    %424 = vmatprep.mubr.bf16.mxu0 0
    %425 = vmatmul.mubr.bf16.gmra.mrb[0].mxu0 %v268
    %v426 = vpop.f32.mrb[0].mxu0
    %v427 = vadd.f32 %v89, %v426
    %v428 = vpop.f32.mrb[0].mxu0
    %v429 = vpop.f32.mrb[0].mxu0
    %v430 = vadd.f32 %v89, %v429
    %v431 = vpop.f32.mrb[0].mxu0
    %432 = vmatprep.mubr.bf16.mxu0 0
    %433 = vmatmul.mubr.bf16.gmra.mrb[0].mxu0 %v271
    %v434 = vpop.f32.mrb[0].mxu0
    %v435 = vadd.f32 %v89, %v434
    %v436 = vpop.f32.mrb[0].mxu0
    %v437 = vpop.f32.mrb[0].mxu0
    %v438 = vadd.f32 %v89, %v437
    %v439 = vpop.f32.mrb[0].mxu0
    %440 = vmatprep.mubr.bf16.mxu0 0
    %441 = vmatmul.mubr.bf16.gmra.mrb[0].mxu0 %v274
    %v442 = vpop.f32.mrb[0].mxu0
    %v443 = vadd.f32 %v89, %v442
    %v444 = vpop.f32.mrb[0].mxu0
    %v445 = vpop.f32.mrb[0].mxu0
    %v446 = vadd.f32 %v89, %v445
    %v447 = vpop.f32.mrb[0].mxu0
    %448 = vmatprep.mubr.bf16.mxu0 0
    %449 = vmatmul.mubr.bf16.gmra.mrb[0].mxu0 %v277
    %v450 = vpop.f32.mrb[0].mxu0
    %v451 = vadd.f32 %v89, %v450
    %v452 = vpop.f32.mrb[0].mxu0
    %v453 = vpop.f32.mrb[0].mxu0
    %v454 = vadd.f32 %v89, %v453
    %v455 = vpop.f32.mrb[0].mxu0
    %456 = vmatprep.mubr.bf16.mxu0 0
    %457 = vmatmul.mubr.bf16.gmra.mrb[0].mxu0 %v280
    %v458 = vpop.f32.mrb[0].mxu0
    %v459 = vadd.f32 %v89, %v458
    %v460 = vpop.f32.mrb[0].mxu0
    %v461 = vpop.f32.mrb[0].mxu0
    %v462 = vadd.f32 %v89, %v461
    %v463 = vpop.f32.mrb[0].mxu0
    %464 = vmatprep.mubr.bf16.mxu0 0
    %465 = vmatmul.mubr.bf16.gmra.mrb[0].mxu0 %v283
    %v466 = vpop.f32.mrb[0].mxu0
    %v467 = vadd.f32 %v89, %v466
    %v468 = vpop.f32.mrb[0].mxu0
    %v469 = vpop.f32.mrb[0].mxu0
    %v470 = vadd.f32 %v89, %v469
    %v471 = vpop.f32.mrb[0].mxu0
    %472 = vmatprep.mubr.bf16.mxu0 0
    %473 = vmatmul.mubr.bf16.gmra.mrb[0].mxu0 %v286
    %v474 = vpop.f32.mrb[0].mxu0
    %v475 = vadd.f32 %v89, %v474
    %v476 = vpop.f32.mrb[0].mxu0
    %v477 = vpop.f32.mrb[0].mxu0
    %v478 = vadd.f32 %v89, %v477
    %v479 = vpop.f32.mrb[0].mxu0
    %480 = vmatprep.mubr.bf16.mxu0 0
    %481 = vmatmul.mubr.bf16.gmra.mrb[0].mxu0 %v289
    %v482 = vpop.f32.mrb[0].mxu0
    %v483 = vadd.f32 %v89, %v482
    %v484 = vpop.f32.mrb[0].mxu0
    %v485 = vpop.f32.mrb[0].mxu0
    %v486 = vadd.f32 %v89, %v485
    %v487 = vpop.f32.mrb[0].mxu0
    %488 = vmatprep.mubr.bf16.mxu0 0
    %489 = vmatmul.mubr.bf16.gmra.mrb[0].mxu0 %v292
    %v490 = vpop.f32.mrb[0].mxu0
    %v491 = vadd.f32 %v89, %v490
    %v492 = vpop.f32.mrb[0].mxu0
    %v493 = vpop.f32.mrb[0].mxu0
    %v494 = vadd.f32 %v89, %v493
    %v495 = vpop.f32.mrb[0].mxu0
    %496 = vmatprep.mubr.bf16.mxu0 0
    %497 = vmatmul.mubr.bf16.gmra.mrb[0].mxu0 %v295
    %v498 = vpop.f32.mrb[0].mxu0
    %v499 = vadd.f32 %v89, %v498
    %v500 = vpop.f32.mrb[0].mxu0
    %v501 = vpop.f32.mrb[0].mxu0
    %v502 = vadd.f32 %v89, %v501
    %v503 = vpop.f32.mrb[0].mxu0
    %504 = vmatprep.mubr.bf16.mxu0 0
    %505 = vmatmul.mubr.bf16.gmra.mrb[0].mxu0 %v298
    %v506 = vpop.f32.mrb[0].mxu0
    %v507 = vadd.f32 %v89, %v506
    %v508 = vpop.f32.mrb[0].mxu0
    %v509 = vpop.f32.mrb[0].mxu0
    %v510 = vadd.f32 %v89, %v509
    %v511 = vpop.f32.mrb[0].mxu0
    %512 = vmatprep.mubr.bf16.mxu0 0
    %513 = vmatmul.mubr.bf16.gmra.mrb[0].mxu0 %v301
    %v514 = vpop.f32.mrb[0].mxu0
    %v515 = vadd.f32 %v89, %v514
    %v516 = vpop.f32.mrb[0].mxu0
    %v517 = vpop.f32.mrb[0].mxu0
    %v518 = vadd.f32 %v89, %v517
    %v519 = vpop.f32.mrb[0].mxu0
    %520 = vmatprep.mubr.bf16.mxu0 0
    %521 = vmatmul.mubr.bf16.gmra.mrb[0].mxu0 %v304
    %v522 = vpop.f32.mrb[0].mxu0
    %v523 = vadd.f32 %v89, %v522
    %v524 = vpop.f32.mrb[0].mxu0
    %v525 = vpop.f32.mrb[0].mxu0
    %v526 = vadd.f32 %v89, %v525
    %v527 = vpop.f32.mrb[0].mxu0
    %528 = vmatprep.mubr.bf16.mxu0 0
    %529 = vmatmul.mubr.bf16.gmra.mrb[0].mxu0 %v307
    %v530 = vpop.f32.mrb[0].mxu0
    %v531 = vadd.f32 %v89, %v530
    %v532 = vpop.f32.mrb[0].mxu0
    %v533 = vpop.f32.mrb[0].mxu0
    %v534 = vadd.f32 %v89, %v533
    %v535 = vpop.f32.mrb[0].mxu0
    %536 = vmatprep.mubr.bf16.mxu0 0
    %537 = vmatmul.mubr.bf16.gmra.mrb[0].mxu0 %v310
    %v538 = vpop.f32.mrb[0].mxu0
    %v539 = vadd.f32 %v89, %v538
    %v540 = vpop.f32.mrb[0].mxu0
    %v541 = vpop.f32.mrb[0].mxu0
    %v542 = vadd.f32 %v89, %v541
    %v543 = vpop.f32.mrb[0].mxu0
    %544 = vmatprep.mubr.bf16.mxu0 0
    %545 = vmatmul.mubr.bf16.gmra.mrb[0].mxu0 %v313
    %v546 = vpop.f32.mrb[0].mxu0
    %v547 = vadd.f32 %v89, %v546
    %v548 = vpop.f32.mrb[0].mxu0
    %v549 = vpop.f32.mrb[0].mxu0
    %v550 = vadd.f32 %v89, %v549
    %v551 = vpop.f32.mrb[0].mxu0
    %552 = vmatprep.mubr.bf16.mxu0 0
    %553 = vmatmul.mubr.bf16.gmra.mrb[0].mxu0 %v316
    %v554 = vpop.f32.mrb[0].mxu0
    %v555 = vadd.f32 %v89, %v554
    %v556 = vpop.f32.mrb[0].mxu0
    %v557 = vpop.f32.mrb[0].mxu0
    %v558 = vadd.f32 %v89, %v557
    %v559 = vpop.f32.mrb[0].mxu0
    %560 = vmatprep.mubr.bf16.mxu0 0
    %561 = vmatmul.mubr.bf16.gmra.mrb[0].mxu0 %v319
    %v562 = vpop.f32.mrb[0].mxu0
    %v563 = vadd.f32 %v89, %v562
    %v564 = vpop.f32.mrb[0].mxu0
    %v565 = vpop.f32.mrb[0].mxu0
    %v566 = vadd.f32 %v89, %v565
    %v567 = vpop.f32.mrb[0].mxu0
    %568 = vmatprep.mubr.bf16.mxu0 0
    %569 = vmatmul.mubr.bf16.gmra.mrb[0].mxu0 %v322
    %v570 = vpop.f32.mrb[0].mxu0
    %v571 = vadd.f32 %v89, %v570
    %v572 = vpop.f32.mrb[0].mxu0
    %v573 = vpop.f32.mrb[0].mxu0
    %v574 = vadd.f32 %v89, %v573
    %v575 = vpop.f32.mrb[0].mxu0
    %576 = vmatprep.mubr.bf16.mxu0 0
    %577 = vmatmul.mubr.bf16.gmra.mrb[0].mxu0 %v325
    %v578 = vpop.f32.mrb[0].mxu0
    %v579 = vadd.f32 %v89, %v578
    %v580 = vpop.f32.mrb[0].mxu0
    %v581 = vpop.f32.mrb[0].mxu0
    %v582 = vadd.f32 %v89, %v581
    %v583 = vpop.f32.mrb[0].mxu0
    %584 = vmatprep.mubr.bf16.mxu0 0
    %585 = vmatmul.mubr.bf16.gmra.mrb[0].mxu0 %v328
    %v586 = vpop.f32.mrb[0].mxu0
    %v587 = vadd.f32 %v89, %v586
    %v588 = vpop.f32.mrb[0].mxu0
    %v589 = vpop.f32.mrb[0].mxu0
    %v590 = vadd.f32 %v89, %v589
    %v591 = vpop.f32.mrb[0].mxu0
    %592 = vmatprep.mubr.bf16.mxu0 0
    %593 = vmatmul.mubr.bf16.gmra.mrb[0].mxu0 %v331
    %v594 = vpop.f32.mrb[0].mxu0
    %v595 = vadd.f32 %v89, %v594
    %v596 = vpop.f32.mrb[0].mxu0
    %v597 = vpop.f32.mrb[0].mxu0
    %v598 = vadd.f32 %v89, %v597
    %v599 = vpop.f32.mrb[0].mxu0
    %600 = vmatprep.mubr.bf16.mxu0 0
    %601 = vmatmul.mubr.bf16.gmra.mrb[0].mxu0 %v334
    %v602 = vpop.f32.mrb[0].mxu0
    %v603 = vadd.f32 %v89, %v602
    %v604 = vpop.f32.mrb[0].mxu0
    %v605 = vpop.f32.mrb[0].mxu0
    %v606 = vadd.f32 %v89, %v605
    %v607 = vpop.f32.mrb[0].mxu0
    %608 = vmatprep.mubr.bf16.mxu0 0
    %609 = vmatmul.mubr.bf16.gmra.mrb[0].mxu0 %v337
    %v610 = vpop.f32.mrb[0].mxu0
    %v611 = vadd.f32 %v89, %v610
    %v612 = vpop.f32.mrb[0].mxu0
    %v613 = vpop.f32.mrb[0].mxu0
    %v614 = vadd.f32 %v89, %v613
    %v615 = vpop.f32.mrb[0].mxu0
    %616 = vmatprep.mubr.bf16.mxu0 0
    %617 = vmatmul.mubr.bf16.gmra.mrb[0].mxu0 %v340
    %v618 = vpop.f32.mrb[0].mxu0
    %v619 = vadd.f32 %v89, %v618
    %v620 = vpop.f32.mrb[0].mxu0
    %v621 = vpop.f32.mrb[0].mxu0
    %v622 = vadd.f32 %v89, %v621
    %v623 = vpop.f32.mrb[0].mxu0
    %624 = vmatprep.mubr.bf16.mxu0 0
    %625 = vmatmul.mubr.bf16.gmra.mrb[0].mxu0 %v343
    %v626 = vpop.f32.mrb[0].mxu0
    %v627 = vadd.f32 %v89, %v626
    %v628 = vpop.f32.mrb[0].mxu0
    %v629 = vpop.f32.mrb[0].mxu0
    %v630 = vadd.f32 %v89, %v629
    %v631 = vpop.f32.mrb[0].mxu0
    %632 = vmatprep.mubr.bf16.mxu0 0
    %633 = vmatmul.mubr.bf16.gmra.mrb[0].mxu0 %v346
    %v634 = vpop.f32.mrb[0].mxu0
    %v635 = vadd.f32 %v89, %v634
    %v636 = vpop.f32.mrb[0].mxu0
    %v637 = vpop.f32.mrb[0].mxu0
    %v638 = vadd.f32 %v89, %v637
    %v639 = vpop.f32.mrb[0].mxu0
    %640 = vdwg.mxu0
    %v641 = vld [vmem:[%s1] sm:$0xf]
    %v642 = vld [vmem:[%s1 + $0x4] sm:$0xf]
    %v643 = vld [vmem:[%s1 + $0x8] sm:$0xf]
    %v644 = vld [vmem:[%s1 + $0xc] sm:$0xf]
    %v645 = vld [vmem:[%s1 + $0x10] sm:$0xf]
    %v646 = vld [vmem:[%s1 + $0x14] sm:$0xf]
    %v647 = vld [vmem:[%s1 + $0x18] sm:$0xf]
    %v648 = vld [vmem:[%s1 + $0x1c] sm:$0xf]
    %v649 = vld [vmem:[%s1 + $0x20] sm:$0xf]
    %v650 = vld [vmem:[%s1 + $0x24] sm:$0xf]
    %v651 = vld [vmem:[%s1 + $0x28] sm:$0xf]
    %v652 = vld [vmem:[%s1 + $0x2c] sm:$0xf]
    %v653 = vld [vmem:[%s1 + $0x30] sm:$0xf]
    %v654 = vld [vmem:[%s1 + $0x34] sm:$0xf]
    %v655 = vld [vmem:[%s1 + $0x38] sm:$0xf]
    %v656 = vld [vmem:[%s1 + $0x3c] sm:$0xf]
    %v657 = vld [vmem:[%s1 + $0x40] sm:$0xf]
    %v658 = vld [vmem:[%s1 + $0x44] sm:$0xf]
    %v659 = vld [vmem:[%s1 + $0x48] sm:$0xf]
    %v660 = vld [vmem:[%s1 + $0x4c] sm:$0xf]
    %v661 = vld [vmem:[%s1 + $0x50] sm:$0xf]
    %v662 = vld [vmem:[%s1 + $0x54] sm:$0xf]
    %v663 = vld [vmem:[%s1 + $0x58] sm:$0xf]
    %v664 = vld [vmem:[%s1 + $0x5c] sm:$0xf]
    %v665 = vld [vmem:[%s1 + $0x60] sm:$0xf]
    %v666 = vld [vmem:[%s1 + $0x64] sm:$0xf]
    %v667 = vld [vmem:[%s1 + $0x68] sm:$0xf]
    %v668 = vld [vmem:[%s1 + $0x6c] sm:$0xf]
    %v669 = vld [vmem:[%s1 + $0x70] sm:$0xf]
    %v670 = vld [vmem:[%s1 + $0x74] sm:$0xf]
    %v671 = vld [vmem:[%s1 + $0x78] sm:$0xf]
    %v672 = vld [vmem:[%s1 + $0x7c] sm:$0xf]
    %v673 = vld [vmem:[%s1 + $0x80] sm:$0xf]
    %v674 = vld [vmem:[%s1 + $0x84] sm:$0xf]
    %v675 = vld [vmem:[%s1 + $0x88] sm:$0xf]
    %v676 = vld [vmem:[%s1 + $0x8c] sm:$0xf]
    %v677 = vld [vmem:[%s1 + $0x90] sm:$0xf]
    %v678 = vld [vmem:[%s1 + $0x94] sm:$0xf]
    %v679 = vld [vmem:[%s1 + $0x98] sm:$0xf]
    %v680 = vld [vmem:[%s1 + $0x9c] sm:$0xf]
    %v681 = vld [vmem:[%s1 + $0xa0] sm:$0xf]
    %v682 = vld [vmem:[%s1 + $0xa4] sm:$0xf]
    %v683 = vld [vmem:[%s1 + $0xa8] sm:$0xf]
    %v684 = vld [vmem:[%s1 + $0xac] sm:$0xf]
    %v685 = vld [vmem:[%s1 + $0xb0] sm:$0xf]
    %v686 = vld [vmem:[%s1 + $0xb4] sm:$0xf]
    %v687 = vld [vmem:[%s1 + $0xb8] sm:$0xf]
    %v688 = vld [vmem:[%s1 + $0xbc] sm:$0xf]
    %v689 = vld [vmem:[%s1 + $0xc0] sm:$0xf]
    %v690 = vld [vmem:[%s1 + $0xc4] sm:$0xf]
    %v691 = vld [vmem:[%s1 + $0xc8] sm:$0xf]
    %v692 = vld [vmem:[%s1 + $0xcc] sm:$0xf]
    %v693 = vld [vmem:[%s1 + $0xd0] sm:$0xf]
    %v694 = vld [vmem:[%s1 + $0xd4] sm:$0xf]
    %v695 = vld [vmem:[%s1 + $0xd8] sm:$0xf]
    %v696 = vld [vmem:[%s1 + $0xdc] sm:$0xf]
    %v697 = vld [vmem:[%s1 + $0xe0] sm:$0xf]
    %v698 = vld [vmem:[%s1 + $0xe4] sm:$0xf]
    %v699 = vld [vmem:[%s1 + $0xe8] sm:$0xf]
    %v700 = vld [vmem:[%s1 + $0xec] sm:$0xf]
    %v701 = vld [vmem:[%s1 + $0xf0] sm:$0xf]
    %v702 = vld [vmem:[%s1 + $0xf4] sm:$0xf]
    %v703 = vld [vmem:[%s1 + $0xf8] sm:$0xf]
    %v704 = vld [vmem:[%s1 + $0xfc] sm:$0xf]
    %v705 = vunpack.c.l.bf16 %v641
    %v706 = vunpack.c.l.bf16 %v642
    %v707 = vunpack.c.l.bf16 %v643
    %v708 = vunpack.c.l.bf16 %v644
    %v709 = vunpack.c.l.bf16 %v645
    %v710 = vunpack.c.l.bf16 %v646
    %v711 = vunpack.c.l.bf16 %v647
    %v712 = vunpack.c.l.bf16 %v648
    %v713 = vunpack.c.l.bf16 %v649
    %v714 = vunpack.c.l.bf16 %v650
    %v715 = vunpack.c.l.bf16 %v651
    %v716 = vunpack.c.l.bf16 %v652
    %v717 = vunpack.c.l.bf16 %v653
    %v718 = vunpack.c.l.bf16 %v654
    %v719 = vunpack.c.l.bf16 %v655
    %v720 = vunpack.c.l.bf16 %v656
    %v721 = vunpack.c.l.bf16 %v657
    %v722 = vunpack.c.l.bf16 %v658
    %v723 = vunpack.c.l.bf16 %v659
    %v724 = vunpack.c.l.bf16 %v660
    %v725 = vunpack.c.l.bf16 %v661
    %v726 = vunpack.c.l.bf16 %v662
    %v727 = vunpack.c.l.bf16 %v663
    %v728 = vunpack.c.l.bf16 %v664
    %v729 = vunpack.c.l.bf16 %v665
    %v730 = vunpack.c.l.bf16 %v666
    %v731 = vunpack.c.l.bf16 %v667
    %v732 = vunpack.c.l.bf16 %v668
    %v733 = vunpack.c.l.bf16 %v669
    %v734 = vunpack.c.l.bf16 %v670
    %v735 = vunpack.c.l.bf16 %v671
    %v736 = vunpack.c.l.bf16 %v672
    %v737 = vunpack.c.l.bf16 %v673
    %v738 = vunpack.c.l.bf16 %v674
    %v739 = vunpack.c.l.bf16 %v675
    %v740 = vunpack.c.l.bf16 %v676
    %v741 = vunpack.c.l.bf16 %v677
    %v742 = vunpack.c.l.bf16 %v678
    %v743 = vunpack.c.l.bf16 %v679
    %v744 = vunpack.c.l.bf16 %v680
    %v745 = vunpack.c.l.bf16 %v681
    %v746 = vunpack.c.l.bf16 %v682
    %v747 = vunpack.c.l.bf16 %v683
    %v748 = vunpack.c.l.bf16 %v684
    %v749 = vunpack.c.l.bf16 %v685
    %v750 = vunpack.c.l.bf16 %v686
    %v751 = vunpack.c.l.bf16 %v687
    %v752 = vunpack.c.l.bf16 %v688
    %v753 = vunpack.c.l.bf16 %v689
    %v754 = vunpack.c.l.bf16 %v690
    %v755 = vunpack.c.l.bf16 %v691
    %v756 = vunpack.c.l.bf16 %v692
    %v757 = vunpack.c.l.bf16 %v693
    %v758 = vunpack.c.l.bf16 %v694
    %v759 = vunpack.c.l.bf16 %v695
    %v760 = vunpack.c.l.bf16 %v696
    %v761 = vunpack.c.l.bf16 %v697
    %v762 = vunpack.c.l.bf16 %v698
    %v763 = vunpack.c.l.bf16 %v699
    %v764 = vunpack.c.l.bf16 %v700
    %v765 = vunpack.c.l.bf16 %v701
    %v766 = vunpack.c.l.bf16 %v702
    %v767 = vunpack.c.l.bf16 %v703
    %v768 = vunpack.c.l.bf16 %v704
    %v769 = vadd.f32 %v387, %v705
    %v770 = vadd.f32 %v390, %v706
    %v771 = vadd.f32 %v395, %v707
    %v772 = vadd.f32 %v398, %v708
    %v773 = vadd.f32 %v403, %v709
    %v774 = vadd.f32 %v406, %v710
    %v775 = vadd.f32 %v411, %v711
    %v776 = vadd.f32 %v414, %v712
    %v777 = vadd.f32 %v419, %v713
    %v778 = vadd.f32 %v422, %v714
    %v779 = vadd.f32 %v427, %v715
    %v780 = vadd.f32 %v430, %v716
    %v781 = vadd.f32 %v435, %v717
    %v782 = vadd.f32 %v438, %v718
    %v783 = vadd.f32 %v443, %v719
    %v784 = vadd.f32 %v446, %v720
    %v785 = vadd.f32 %v451, %v721
    %v786 = vadd.f32 %v454, %v722
    %v787 = vadd.f32 %v459, %v723
    %v788 = vadd.f32 %v462, %v724
    %v789 = vadd.f32 %v467, %v725
    %v790 = vadd.f32 %v470, %v726
    %v791 = vadd.f32 %v475, %v727
    %v792 = vadd.f32 %v478, %v728
    %v793 = vadd.f32 %v483, %v729
    %v794 = vadd.f32 %v486, %v730
    %v795 = vadd.f32 %v491, %v731
    %v796 = vadd.f32 %v494, %v732
    %v797 = vadd.f32 %v499, %v733
    %v798 = vadd.f32 %v502, %v734
    %v799 = vadd.f32 %v507, %v735
    %v800 = vadd.f32 %v510, %v736
    %v801 = vadd.f32 %v515, %v737
    %v802 = vadd.f32 %v518, %v738
    %v803 = vadd.f32 %v523, %v739
    %v804 = vadd.f32 %v526, %v740
    %v805 = vadd.f32 %v531, %v741
    %v806 = vadd.f32 %v534, %v742
    %v807 = vadd.f32 %v539, %v743
    %v808 = vadd.f32 %v542, %v744
    %v809 = vadd.f32 %v547, %v745
    %v810 = vadd.f32 %v550, %v746
    %v811 = vadd.f32 %v555, %v747
    %v812 = vadd.f32 %v558, %v748
    %v813 = vadd.f32 %v563, %v749
    %v814 = vadd.f32 %v566, %v750
    %v815 = vadd.f32 %v571, %v751
    %v816 = vadd.f32 %v574, %v752
    %v817 = vadd.f32 %v579, %v753
    %v818 = vadd.f32 %v582, %v754
    %v819 = vadd.f32 %v587, %v755
    %v820 = vadd.f32 %v590, %v756
    %v821 = vadd.f32 %v595, %v757
    %v822 = vadd.f32 %v598, %v758
    %v823 = vadd.f32 %v603, %v759
    %v824 = vadd.f32 %v606, %v760
    %v825 = vadd.f32 %v611, %v761
    %v826 = vadd.f32 %v614, %v762
    %v827 = vadd.f32 %v619, %v763
    %v828 = vadd.f32 %v622, %v764
    %v829 = vadd.f32 %v627, %v765
    %v830 = vadd.f32 %v630, %v766
    %v831 = vadd.f32 %v635, %v767
    %v832 = vadd.f32 %v638, %v768
    %833 = vst [vmem:[#allocation2] sm:$0xff] %v769
    %834 = vst [vmem:[#allocation2 + $0x8] sm:$0xff] %v770
    %835 = vst [vmem:[#allocation2 + $0x10] sm:$0xff] %v771
    %836 = vst [vmem:[#allocation2 + $0x18] sm:$0xff] %v772
    %837 = vst [vmem:[#allocation2 + $0x20] sm:$0xff] %v773
    %838 = vst [vmem:[#allocation2 + $0x28] sm:$0xff] %v774
    %839 = vst [vmem:[#allocation2 + $0x30] sm:$0xff] %v775
    %840 = vst [vmem:[#allocation2 + $0x38] sm:$0xff] %v776
    %841 = vst [vmem:[#allocation2 + $0x40] sm:$0xff] %v777
    %842 = vst [vmem:[#allocation2 + $0x48] sm:$0xff] %v778
    %843 = vst [vmem:[#allocation2 + $0x50] sm:$0xff] %v779
    %844 = vst [vmem:[#allocation2 + $0x58] sm:$0xff] %v780
    %845 = vst [vmem:[#allocation2 + $0x60] sm:$0xff] %v781
    %846 = vst [vmem:[#allocation2 + $0x68] sm:$0xff] %v782
    %847 = vst [vmem:[#allocation2 + $0x70] sm:$0xff] %v783
    %848 = vst [vmem:[#allocation2 + $0x78] sm:$0xff] %v784
    %849 = vst [vmem:[#allocation2 + $0x80] sm:$0xff] %v785
    %850 = vst [vmem:[#allocation2 + $0x88] sm:$0xff] %v786
    %851 = vst [vmem:[#allocation2 + $0x90] sm:$0xff] %v787
    %852 = vst [vmem:[#allocation2 + $0x98] sm:$0xff] %v788
    %853 = vst [vmem:[#allocation2 + $0xa0] sm:$0xff] %v789
    %854 = vst [vmem:[#allocation2 + $0xa8] sm:$0xff] %v790
    %855 = vst [vmem:[#allocation2 + $0xb0] sm:$0xff] %v791
    %856 = vst [vmem:[#allocation2 + $0xb8] sm:$0xff] %v792
    %857 = vst [vmem:[#allocation2 + $0xc0] sm:$0xff] %v793
    %858 = vst [vmem:[#allocation2 + $0xc8] sm:$0xff] %v794
    %859 = vst [vmem:[#allocation2 + $0xd0] sm:$0xff] %v795
    %860 = vst [vmem:[#allocation2 + $0xd8] sm:$0xff] %v796
    %861 = vst [vmem:[#allocation2 + $0xe0] sm:$0xff] %v797
    %862 = vst [vmem:[#allocation2 + $0xe8] sm:$0xff] %v798
    %863 = vst [vmem:[#allocation2 + $0xf0] sm:$0xff] %v799
    %864 = vst [vmem:[#allocation2 + $0xf8] sm:$0xff] %v800
    %865 = vst [vmem:[#allocation2 + $0x100] sm:$0xff] %v801
    %866 = vst [vmem:[#allocation2 + $0x108] sm:$0xff] %v802
    %867 = vst [vmem:[#allocation2 + $0x110] sm:$0xff] %v803
    %868 = vst [vmem:[#allocation2 + $0x118] sm:$0xff] %v804
    %869 = vst [vmem:[#allocation2 + $0x120] sm:$0xff] %v805
    %870 = vst [vmem:[#allocation2 + $0x128] sm:$0xff] %v806
    %871 = vst [vmem:[#allocation2 + $0x130] sm:$0xff] %v807
    %872 = vst [vmem:[#allocation2 + $0x138] sm:$0xff] %v808
    %873 = vst [vmem:[#allocation2 + $0x140] sm:$0xff] %v809
    %874 = vst [vmem:[#allocation2 + $0x148] sm:$0xff] %v810
    %875 = vst [vmem:[#allocation2 + $0x150] sm:$0xff] %v811
    %876 = vst [vmem:[#allocation2 + $0x158] sm:$0xff] %v812
    %877 = vst [vmem:[#allocation2 + $0x160] sm:$0xff] %v813
    %878 = vst [vmem:[#allocation2 + $0x168] sm:$0xff] %v814
    %879 = vst [vmem:[#allocation2 + $0x170] sm:$0xff] %v815
    %880 = vst [vmem:[#allocation2 + $0x178] sm:$0xff] %v816
    %881 = vst [vmem:[#allocation2 + $0x180] sm:$0xff] %v817
    %882 = vst [vmem:[#allocation2 + $0x188] sm:$0xff] %v818
    %883 = vst [vmem:[#allocation2 + $0x190] sm:$0xff] %v819
    %884 = vst [vmem:[#allocation2 + $0x198] sm:$0xff] %v820
    %885 = vst [vmem:[#allocation2 + $0x1a0] sm:$0xff] %v821
    %886 = vst [vmem:[#allocation2 + $0x1a8] sm:$0xff] %v822
    %887 = vst [vmem:[#allocation2 + $0x1b0] sm:$0xff] %v823
    %888 = vst [vmem:[#allocation2 + $0x1b8] sm:$0xff] %v824
    %889 = vst [vmem:[#allocation2 + $0x1c0] sm:$0xff] %v825
    %890 = vst [vmem:[#allocation2 + $0x1c8] sm:$0xff] %v826
    %891 = vst [vmem:[#allocation2 + $0x1d0] sm:$0xff] %v827
    %892 = vst [vmem:[#allocation2 + $0x1d8] sm:$0xff] %v828
    %893 = vst [vmem:[#allocation2 + $0x1e0] sm:$0xff] %v829
    %894 = vst [vmem:[#allocation2 + $0x1e8] sm:$0xff] %v830
    %895 = vst [vmem:[#allocation2 + $0x1f0] sm:$0xff] %v831
    %896 = vst [vmem:[#allocation2 + $0x1f8] sm:$0xff] %v832
    // Predicated region
    $region18: #{yolop_head_forward.9} parent=1 // pred_check
      _
    $region19: #{yolop_head_forward.9} parent=1 // pred_check_branch
      %898 = sbr.rel (0) target = $region21
    $region20: #{yolop_head_forward.9} parent=1 // pred_region
      %s900 = ssub.s32 8192, 8192
      %901 = vsyncadd [#allocation3], %s900
      %s902 = sshll.u32 [#allocation2], 4
      %s903 = int_to_ptr.vmem [resolvable:$true] %s902
      %908 = dma.vmem_to_hbm [thread:$0]  %s903, 8192, %s4, [#allocation3], 128, 128, 8
    $region21: #{yolop_head_forward.9} parent=1 // pred_fallthru
      _
    // Predicated region
    $region22: #{yolop_head_forward.9} parent=1 // pred_check
      _
    $region23: #{yolop_head_forward.9} parent=1 // pred_check_branch
      %910 = sbr.rel (0) target = $region25
    $region24: #{yolop_head_forward.9} parent=1 // pred_region
      %911 = dma.done [#allocation3], 8192
    $region25: #{yolop_head_forward.9} parent=1 // pred_fallthru
      _
    %912 = vsyncpa [#allocation3], 1

// kernel: yolop_head_forward.6
$region0: #{yolop_head_forward.6}
  #allocation0 [shape = 'u32[]', space=smem, size = 0x4, offset = 0x4, fixed_abs, tag = 'smem constant byte address 0x4 - core index']
  #allocation1 [shape = 'u32[144,128]{1,0:T(1,128)}', space=vmem, size = 0x12000, scoped, tag = 'internal scratch']
  %s0 = inlined_call_operand.vmem [shape: bf16[32,128], index: 0, kind: input, shape index: {}]
  %s1 = inlined_call_operand.vmem [shape: f32[1,128], index: 1, kind: input, shape index: {}]
  %s2 = inlined_call_operand.vmem [shape: f32[1,128], index: 2, kind: input, shape index: {}]
  %s3 = inlined_call_operand.vmem [shape: bf16[128,128], index: 3, kind: input, shape index: {}]
  %s4 = inlined_call_operand.vmem [shape: f32[1,128], index: 4, kind: input, shape index: {}]
  %s5 = inlined_call_operand.vmem [shape: f32[32,128], index: 5, kind: output, shape index: {}]
  %s6 = sld [smem:[#allocation0]]
  $region30: #{yolop_head_forward.6} parent=0
    _
  %s8 = ssub.s32 1, %s6
  %s9 = scalar_select 0, %s8, %s6
  // Predicated region
  $region2: #{yolop_head_forward.6} parent=0 // pred_check
    _
  $region3: #{yolop_head_forward.6} parent=0 // pred_check_branch
    %11 = sbr.rel (0) target = $region5
  $region4: #{yolop_head_forward.6} parent=0 // pred_region
    _
  $region5: #{yolop_head_forward.6} parent=0 // pred_fallthru
    _
  // Predicated region
  $region6: #{yolop_head_forward.6} parent=0 // pred_check
    _
  $region7: #{yolop_head_forward.6} parent=0 // pred_check_branch
    %13 = sbr.rel (0) target = $region9
  $region8: #{yolop_head_forward.6} parent=0 // pred_region
    _
  $region9: #{yolop_head_forward.6} parent=0 // pred_fallthru
    _
  // Predicated region
  $region10: #{yolop_head_forward.6} parent=0 // pred_check
    _
  $region11: #{yolop_head_forward.6} parent=0 // pred_check_branch
    %15 = sbr.rel (0) target = $region13
  $region12: #{yolop_head_forward.6} parent=0 // pred_region
    _
  $region13: #{yolop_head_forward.6} parent=0 // pred_fallthru
    _
  // Predicated region
  $region14: #{yolop_head_forward.6} parent=0 // pred_check
    _
  $region15: #{yolop_head_forward.6} parent=0 // pred_check_branch
    %17 = sbr.rel (0) target = $region17
  $region16: #{yolop_head_forward.6} parent=0 // pred_region
    _
  $region17: #{yolop_head_forward.6} parent=0 // pred_fallthru
    _
  // Predicated region
  $region18: #{yolop_head_forward.6} parent=0 // pred_check
    _
  $region19: #{yolop_head_forward.6} parent=0 // pred_check_branch
    %19 = sbr.rel (0) target = $region21
  $region20: #{yolop_head_forward.6} parent=0 // pred_region
    _
  $region21: #{yolop_head_forward.6} parent=0 // pred_fallthru
    _
  %v21 = vld [vmem:[%s0] sm:$0xf]
  %v22 = vld [vmem:[%s0 + $0x4] sm:$0xf]
  %v23 = vld [vmem:[%s0 + $0x8] sm:$0xf]
  %v24 = vld [vmem:[%s0 + $0xc] sm:$0xf]
  %v25 = vunpack.c.l.bf16 %v21
  %v26 = vunpack.c.l.bf16 %v22
  %v27 = vunpack.c.l.bf16 %v23
  %v28 = vunpack.c.l.bf16 %v24
  %v29 = vld [vmem:[%s1] sm:$0x1]
  %v31 = vlaneseq
  %v32 = vshrl.u32 %v31, 7
  %v33 = vsub.s32 0, %v32
  %v34 = vrot.slane %v29, %v33
  %v36 = vmul.f32 %v25, %v34
  %v37 = vmul.f32 %v26, %v34
  %v38 = vmul.f32 %v27, %v34
  %v39 = vmul.f32 %v28, %v34
  %v40 = vld [vmem:[%s2] sm:$0x1]
  %v42 = vlaneseq
  %v43 = vshrl.u32 %v42, 7
  %v44 = vsub.s32 0, %v43
  %v45 = vrot.slane %v40, %v44
  %v47 = vadd.f32 %v36, %v45
  %v48 = vadd.f32 %v37, %v45
  %v49 = vadd.f32 %v38, %v45
  %v50 = vadd.f32 %v39, %v45
  %vm51 = vcmp.gt.f32.partialorder %v47, 0.0
  %vm52 = vcmp.gt.f32.partialorder %v48, 0.0
  %vm53 = vcmp.gt.f32.partialorder %v49, 0.0
  %vm54 = vcmp.gt.f32.partialorder %v50, 0.0
  %v55 = vmul.f32 %v47, 0.1
  %v56 = vmul.f32 %v48, 0.1
  %v57 = vmul.f32 %v49, 0.1
  %v58 = vmul.f32 %v50, 0.1
  %v59 = vsel %vm51, %v47, %v55
  %v60 = vsel %vm52, %v48, %v56
  %v61 = vsel %vm53, %v49, %v57
  %v62 = vsel %vm54, %v50, %v58
  %v63 = vpack.c.bf16 %v60, %v59
  %v64 = vpack.c.bf16 %v62, %v61
  %v65 = vld [vmem:[%s3] sm:$0xf]
  %v66 = vld [vmem:[%s3 + $0x4] sm:$0xf]
  %v67 = vld [vmem:[%s3 + $0x8] sm:$0xf]
  %v68 = vld [vmem:[%s3 + $0xc] sm:$0xf]
  %v69 = vld [vmem:[%s3 + $0x10] sm:$0xf]
  %v70 = vld [vmem:[%s3 + $0x14] sm:$0xf]
  %v71 = vld [vmem:[%s3 + $0x18] sm:$0xf]
  %v72 = vld [vmem:[%s3 + $0x1c] sm:$0xf]
  %v73 = vld [vmem:[%s3 + $0x20] sm:$0xf]
  %v74 = vld [vmem:[%s3 + $0x24] sm:$0xf]
  %v75 = vld [vmem:[%s3 + $0x28] sm:$0xf]
  %v76 = vld [vmem:[%s3 + $0x2c] sm:$0xf]
  %v77 = vld [vmem:[%s3 + $0x30] sm:$0xf]
  %v78 = vld [vmem:[%s3 + $0x34] sm:$0xf]
  %v79 = vld [vmem:[%s3 + $0x38] sm:$0xf]
  %v80 = vld [vmem:[%s3 + $0x3c] sm:$0xf]
  %v81 = vld [vmem:[%s4] sm:$0x1]
  %v83 = vlaneseq
  %v84 = vshrl.u32 %v83, 7
  %v85 = vsub.s32 0, %v84
  %v86 = vrot.slane %v81, %v85
  %v104 = vunpack.c.l.b16 %v65
  %v105 = vunpack.c.l.b16 %v66
  %v106 = vunpack.c.l.b16 %v67
  %v107 = vunpack.c.l.b16 %v68
  %v108 = vunpack.c.l.b16 %v69
  %v109 = vunpack.c.l.b16 %v70
  %v110 = vunpack.c.l.b16 %v71
  %v111 = vunpack.c.l.b16 %v72
  %v112 = vunpack.c.l.b16 %v73
  %v113 = vunpack.c.l.b16 %v74
  %v114 = vunpack.c.l.b16 %v75
  %v115 = vunpack.c.l.b16 %v76
  %v116 = vunpack.c.l.b16 %v77
  %v117 = vunpack.c.l.b16 %v78
  %v118 = vunpack.c.l.b16 %v79
  %v119 = vunpack.c.l.b16 %v80
  %v120 = vpack.c.b16 %v105, %v104
  %v121 = vpack.c.b16 %v107, %v106
  %v122 = vpack.c.b16 %v109, %v108
  %v123 = vpack.c.b16 %v111, %v110
  %v124 = vpack.c.b16 %v113, %v112
  %v125 = vpack.c.b16 %v115, %v114
  %v126 = vpack.c.b16 %v117, %v116
  %v127 = vpack.c.b16 %v119, %v118
  %136 = vmatprep.subr.bf16.mxu0 0
  %137 = vmatpush1.bf16.msra.mxu0 %v120
  %138 = vmatprep.subr.bf16.mxu0 0
  %139 = vmatpush1.bf16.msra.mxu0 %v121
  %140 = vmatprep.subr.bf16.mxu0 0
  %141 = vmatpush1.bf16.msra.mxu0 %v122
  %142 = vmatprep.subr.bf16.mxu0 0
  %143 = vmatpush1.bf16.msra.mxu0 %v123
  %144 = vmatprep.subr.bf16.mxu0 0
  %145 = vmatpush1.bf16.msra.mxu0 %v124
  %146 = vmatprep.subr.bf16.mxu0 0
  %147 = vmatpush1.bf16.msra.mxu0 %v125
  %148 = vmatprep.subr.bf16.mxu0 0
  %149 = vmatpush1.bf16.msra.mxu0 %v126
  %150 = vmatprep.subr.bf16.mxu0 0
  %151 = vmatpush1.bf16.msra.mxu0 %v127
  %152 = vmatprep.subr.bf16.mxu0 0
  %153 = vmatpush1.bf16.msra.mxu0 0
  %154 = vmatprep.subr.bf16.mxu0 0
  %155 = vmatpush1.bf16.msra.mxu0 0
  %156 = vmatprep.subr.bf16.mxu0 0
  %157 = vmatpush1.bf16.msra.mxu0 0
  %158 = vmatprep.subr.bf16.mxu0 0
  %159 = vmatpush1.bf16.msra.mxu0 0
  %160 = vmatprep.subr.bf16.mxu0 0
  %161 = vmatpush1.bf16.msra.mxu0 0
  %162 = vmatprep.subr.bf16.mxu0 0
  %163 = vmatpush1.bf16.msra.mxu0 0
  %164 = vmatprep.subr.bf16.mxu0 0
  %165 = vmatpush1.bf16.msra.mxu0 0
  %166 = vmatprep.subr.bf16.mxu0 0
  %167 = vmatpush1.bf16.msra.mxu0 0
  %168 = vmatprep.mubr.bf16.mxu0 0
  %169 = vmatmul.mubr.bf16.gmra.mrb[0].mxu0 %v63
  %v170 = vpop.f32.mrb[0].mxu0
  %v171 = vadd.f32 %v86, %v170
  %v172 = vpop.f32.mrb[0].mxu0
  %v173 = vpop.f32.mrb[0].mxu0
  %v174 = vadd.f32 %v86, %v173
  %v175 = vpop.f32.mrb[0].mxu0
  %176 = vmatprep.mubr.bf16.mxu0 0
  %177 = vmatmul.mubr.bf16.gmra.mrb[0].mxu0 %v64
  %v178 = vpop.f32.mrb[0].mxu0
  %v179 = vadd.f32 %v86, %v178
  %v180 = vpop.f32.mrb[0].mxu0
  %v181 = vpop.f32.mrb[0].mxu0
  %v182 = vadd.f32 %v86, %v181
  %v183 = vpop.f32.mrb[0].mxu0
  %184 = vdwg.mxu0
  %185 = vst [vmem:[%s5] sm:$0xff] %v171
  %186 = vst [vmem:[%s5 + $0x8] sm:$0xff] %v174
  %187 = vst [vmem:[%s5 + $0x10] sm:$0xff] %v179
  %188 = vst [vmem:[%s5 + $0x18] sm:$0xff] %v182
  // Predicated region
  $region22: #{yolop_head_forward.6} parent=0 // pred_check
    _
  $region23: #{yolop_head_forward.6} parent=0 // pred_check_branch
    %190 = sbr.rel (0) target = $region25
  $region24: #{yolop_head_forward.6} parent=0 // pred_region
    _
  $region25: #{yolop_head_forward.6} parent=0 // pred_fallthru
    _
  // Predicated region
  $region26: #{yolop_head_forward.6} parent=0 // pred_check
    _
  $region27: #{yolop_head_forward.6} parent=0 // pred_check_branch
    %192 = sbr.rel (0) target = $region29
  $region28: #{yolop_head_forward.6} parent=0 // pred_region
    _
  $region29: #{yolop_head_forward.6} parent=0 // pred_fallthru
    _

</llo_original>
